<compile_context>
chip_gen: v6e
topology: v6e:2x2x1
jax: 0.10.0
libtpu: 0.0.40
codegen_flags: <defaults>
</compile_context>

<pallas_src>
import math
import functools

import jax
import jax.numpy as jnp
from jax.experimental import pallas as pl
from jax.experimental.pallas import tpu as pltpu

# ----------------------------- hyperparameters ------------------------------
VOCAB_SIZE = 100
NUM_HIDDENS = 32          # key_size = query_size = value_size = num_hiddens
FFN_NUM_HIDDENS = 64
NUM_HEADS = 4
NUM_LAYERS = 2
DROPOUT = 0.0             # dropout disabled -> deterministic forward
SEQ_LEN = 8
BATCH = 2
VEC_PAD = 128             # lane-padded width of the packed per-layer vector rows


# ------------------------------ kernel helpers ------------------------------
def _layernorm(x, gamma, beta, eps=1e-5):
    # LayerNorm over the last dim (PyTorch default eps=1e-5, biased variance), f32.
    mu = jnp.mean(x, axis=-1, keepdims=True)
    var = jnp.mean((x - mu) ** 2, axis=-1, keepdims=True)
    return (x - mu) * jax.lax.rsqrt(var + eps) * gamma + beta


def fused_encoder_kernel(x_ref,        # (B*T, H)      f32 activations
                         mask_ref,     # (B, T, T)     f32 keep-mask (1 keep / 0 drop)
                         wqkv_ref,     # (L, H, 3H)    bf16, fused Wq|Wk|Wv
                         wo_ref,       # (L, H, H)     bf16
                         w1_ref,       # (L, H, F)     bf16
                         w2_ref,       # (L, F, H)     bf16
                         vec_ref,      # (L, 6, 128)   f32 rows: b1,b2,g1,be1,g2,be2
                         out_ref,      # (B*T, H)      f32
                         *, batch, seq_len, num_heads):
    B, T, NH = batch, seq_len, num_heads
    BT, H = x_ref.shape
    F = w1_ref.shape[2]
    dh = H // NH
    scale = 1.0 / math.sqrt(dh)

    # d2l masked_softmax key mask, shared by all layers / heads.
    keep = mask_ref[...] > 0.5                           # (B, T, T) bool
    x = x_ref[...]                                       # (B*T, H) f32

    for l in range(NUM_LAYERS):                          # both encoder blocks fused
        # --- fused QKV projection (use_bias=False), bf16 operands, f32 accumulate ---
        qkv = jnp.dot(x.astype(jnp.bfloat16), wqkv_ref[l],
                      preferred_element_type=jnp.float32)            # (B*T, 3H) f32
        qkv = qkv.reshape(B, T, 3 * H)                   # split leading dim only (safe)

        # Per-head, B-batched attention (Mosaic-supported single-batch-dim einsums).
        heads = []
        for h in range(NH):                              # static loop over heads
            qh = qkv[:, :, h * dh:(h + 1) * dh].astype(jnp.bfloat16)          # (B,T,dh)
            kh = qkv[:, :, H + h * dh:H + (h + 1) * dh].astype(jnp.bfloat16)
            vh = qkv[:, :, 2 * H + h * dh:2 * H + (h + 1) * dh].astype(jnp.bfloat16)
            s = jnp.einsum('bqd,bkd->bqk', qh, kh,
                           preferred_element_type=jnp.float32) * scale        # (B,T,T)
            s = jnp.where(keep, s, -1e6)                 # d2l masked_softmax semantics
            s = s - jnp.max(s, axis=-1, keepdims=True)   # stable softmax, f32
            p = jnp.exp(s)
            p = p / jnp.sum(p, axis=-1, keepdims=True)   # exact divide (no approx)
            heads.append(jnp.einsum('bqk,bkd->bqd', p.astype(jnp.bfloat16), vh,
                                    preferred_element_type=jnp.float32))      # (B,T,dh)
        ctx = jnp.concatenate(heads, axis=-1).reshape(BT, H)                  # (B*T, H)

        attn = jnp.dot(ctx.astype(jnp.bfloat16), wo_ref[l],
                       preferred_element_type=jnp.float32)                    # (B*T, H)

        # --- per-layer small vectors: one per sublane row, lane slices start at 0 ---
        vec = vec_ref[l]                                 # (6, 128) f32
        b1  = vec[0:1, 0:F]
        b2  = vec[1:2, 0:H]
        g1  = vec[2:3, 0:H]
        be1 = vec[3:4, 0:H]
        g2  = vec[4:5, 0:H]
        be2 = vec[5:6, 0:H]

        # --- AddNorm 1 (f32) ---
        y = _layernorm(x + attn, g1, be1)
        # --- PositionWiseFFN (with bias) + AddNorm 2 ---
        h1 = jnp.maximum(jnp.dot(y.astype(jnp.bfloat16), w1_ref[l],
                                 preferred_element_type=jnp.float32) + b1, 0.0)
        ffn = jnp.dot(h1.astype(jnp.bfloat16), w2_ref[l],
                      preferred_element_type=jnp.float32) + b2
        x = _layernorm(y + ffn, g2, be2)

    # H=32 < 128 -> masked partial store; lane-dense output repacking only matters if
    # H is scaled up (wrapper-side layout change, see perf review).
    out_ref[...] = x.astype(out_ref.dtype)


# ------------------------------- pallas wrapper ------------------------------
@jax.jit
def fused_encoder(x, keep_mask, wqkv, wo, w1, w2, vecs):
    B, T, H = x.shape
    L, _, F = w1.shape
    x2 = x.reshape(B * T, H).astype(jnp.float32)         # flatten outside (free)

    def full(shape):
        return pl.BlockSpec(shape, lambda i, n=len(shape): (0,) * n)

    out = pl.pallas_call(
        functools.partial(fused_encoder_kernel, batch=B, seq_len=T, num_heads=NUM_HEADS),
        out_shape=jax.ShapeDtypeStruct((B * T, H), jnp.float32),
        grid=(1,),                                       # whole problem, one grid step
        in_specs=[
            full((B * T, H)),                            # activations (f32)
            full((B, T, T)),                             # precomputed keep-mask (f32)
            full((L, H, 3 * H)),                         # fused Wq|Wk|Wv (bf16)
            full((L, H, H)),                             # Wo (bf16)
            full((L, H, F)),                             # W1 (bf16)
            full((L, F, H)),                             # W2 (bf16)
            full((L, 6, VEC_PAD)),                       # packed vectors, sublane-major
        ],
        out_specs=full((B * T, H)),
        compiler_params=pltpu.CompilerParams(dimension_semantics=("arbitrary",)),
        # If L/T/H are scaled up: move the layer loop onto a grid axis with
        # pipeline_mode=pl.Buffered(2) weight specs (v7x: 64 MiB VMEM) and set
        # vmem_limit_bytes explicitly (v5e default scoped VMEM is only 16 MiB).
    )(x2, keep_mask, wqkv, wo, w1, w2, vecs)
    return out.reshape(B, T, H)


# ------------------------------- glue (JAX) ----------------------------------
def positional_encoding(seq_len, num_hiddens):
    # d2l PositionalEncoding table P[:, :seq_len, :]
    pos = jnp.arange(seq_len, dtype=jnp.float32)[:, None]
    div = jnp.power(10000.0, jnp.arange(0, num_hiddens, 2, dtype=jnp.float32) / num_hiddens)
    angles = pos / div                                   # (T, H/2)
    P = jnp.zeros((seq_len, num_hiddens), jnp.float32)
    P = P.at[:, 0::2].set(jnp.sin(angles))
    P = P.at[:, 1::2].set(jnp.cos(angles))
    return P


def make_keep_mask(valid_lens, batch, seq_len):
    # d2l masked_softmax key mask for 1-D valid_lens of shape (B,).
    # TODO(synk): d2l also accepts per-query (B, T) valid_lens; not expressed here.
    col = jnp.arange(seq_len, dtype=jnp.int32)
    keep = col[None, None, :] < valid_lens[:, None, None]            # (B, 1, T)
    keep = jnp.broadcast_to(keep, (batch, seq_len, seq_len))         # (B, T, T)
    return keep.astype(jnp.float32)


def init_params(key):
    keys = jax.random.split(key, 1 + NUM_LAYERS)
    H, F = NUM_HIDDENS, FFN_NUM_HIDDENS
    params = {"embedding": jax.random.normal(keys[0], (VOCAB_SIZE, H), jnp.float32) * 0.02}
    wqkv, wo, w1, w2, vecs = [], [], [], [], []

    def pad_row(v):
        return jnp.pad(v, (0, VEC_PAD - v.shape[0]))

    for i in range(NUM_LAYERS):
        k = jax.random.split(keys[1 + i], 6)
        wq = jax.random.normal(k[0], (H, H), jnp.float32) * 0.05
        wk = jax.random.normal(k[1], (H, H), jnp.float32) * 0.05
        wv = jax.random.normal(k[2], (H, H), jnp.float32) * 0.05
        # Fused Wq|Wk|Wv; within each projection the per-head dh columns are already
        # contiguous, matching the d2l head split of the output features.
        wqkv.append(jnp.concatenate([wq, wk, wv], axis=1))           # (H, 3H)
        wo.append(jax.random.normal(k[3], (H, H), jnp.float32) * 0.05)
        w1.append(jax.random.normal(k[4], (H, F), jnp.float32) * 0.05)
        w2.append(jax.random.normal(k[5], (F, H), jnp.float32) * 0.05)
        # Packed per-layer vectors, one per sublane row, lane-padded to 128:
        #   row 0: b1 (F)   row 1: b2 (H)   row 2: g1   row 3: be1   row 4: g2   row 5: be2
        vecs.append(jnp.stack([
            pad_row(jnp.zeros((F,), jnp.float32)),   # b1
            pad_row(jnp.zeros((H,), jnp.float32)),   # b2
            pad_row(jnp.ones((H,), jnp.float32)),    # gamma1
            pad_row(jnp.zeros((H,), jnp.float32)),   # beta1
            pad_row(jnp.ones((H,), jnp.float32)),    # gamma2
            pad_row(jnp.zeros((H,), jnp.float32)),   # beta2
        ], axis=0))                                                   # (6, 128)
    # Weight stacks stored bf16 in HBM (MXU operands); accumulation stays f32 in-kernel.
    params["wqkv"] = jnp.stack(wqkv).astype(jnp.bfloat16)   # (L, H, 3H)
    params["wo"]   = jnp.stack(wo).astype(jnp.bfloat16)     # (L, H, H)
    params["w1"]   = jnp.stack(w1).astype(jnp.bfloat16)     # (L, H, F)
    params["w2"]   = jnp.stack(w2).astype(jnp.bfloat16)     # (L, F, H)
    params["vecs"] = jnp.stack(vecs)                         # (L, 6, 128) f32
    return params


def transformer_encoder(tokens, valid_lens, params):
    B, T = tokens.shape
    H = NUM_HIDDENS
    # Embedding lookup + sqrt(H) scaling + positional encoding (dropout p=0.0)
    x = jnp.take(params["embedding"], tokens, axis=0) * math.sqrt(H)   # (B, T, H)
    x = x + positional_encoding(T, H)[None, :, :]
    keep_mask = make_keep_mask(valid_lens, B, T)                       # (B, T, T)
    # TODO(synk): attention_weights side attribute of the PyTorch module is not returned;
    # only the encoder output tensor is reproduced.
    return fused_encoder(x, keep_mask, params["wqkv"], params["wo"],
                         params["w1"], params["w2"], params["vecs"])


# ----------------------------------- main ------------------------------------
if __name__ == "__main__":
    key = jax.random.PRNGKey(0)
    k_tok, k_par = jax.random.split(key)

    tokens = jax.random.randint(k_tok, (BATCH, SEQ_LEN), 0, VOCAB_SIZE, dtype=jnp.int32)
    valid_lens = jnp.array([SEQ_LEN, 5], dtype=jnp.int32)   # per-batch valid lengths

    params = init_params(k_par)

    out = transformer_encoder(tokens, valid_lens, params)
    jax.block_until_ready(out)

    assert out.shape == (BATCH, SEQ_LEN, NUM_HIDDENS)
    assert jnp.all(jnp.isfinite(out))
    print("KERNEL_OK")
</pallas_src>

<mosaic_0001>
module attributes {stable_mosaic.version = 11 : i64} {
  func.func @fused_encoder_kernel(%arg0: i32, %arg1: memref<16x32xf32, #tpu.memory_space<vmem>>, %arg2: memref<2x8x8xf32, #tpu.memory_space<vmem>>, %arg3: memref<2x32x96xbf16, #tpu.memory_space<vmem>>, %arg4: memref<2x32x32xbf16, #tpu.memory_space<vmem>>, %arg5: memref<2x32x64xbf16, #tpu.memory_space<vmem>>, %arg6: memref<2x64x32xbf16, #tpu.memory_space<vmem>>, %arg7: memref<2x6x128xf32, #tpu.memory_space<vmem>>, %arg8: memref<16x32xf32, #tpu.memory_space<vmem>>) attributes {dimension_semantics = [#tpu.dimension_semantics<arbitrary>], iteration_bounds = array<i64: 1>, scalar_prefetch = 0 : i64, scratch_operands = 0 : i64, tpu.core_type = #tpu.core_type<tc>, window_params = [{pipeline_mode = #tpu.pipeline_mode<synchronous>, transform_indices = @transform_0, window_bounds = array<i64: 16, 32>}, {pipeline_mode = #tpu.pipeline_mode<synchronous>, transform_indices = @transform_1, window_bounds = array<i64: 2, 8, 8>}, {pipeline_mode = #tpu.pipeline_mode<synchronous>, transform_indices = @transform_2, window_bounds = array<i64: 2, 32, 96>}, {pipeline_mode = #tpu.pipeline_mode<synchronous>, transform_indices = @transform_3, window_bounds = array<i64: 2, 32, 32>}, {pipeline_mode = #tpu.pipeline_mode<synchronous>, transform_indices = @transform_4, window_bounds = array<i64: 2, 32, 64>}, {pipeline_mode = #tpu.pipeline_mode<synchronous>, transform_indices = @transform_5, window_bounds = array<i64: 2, 64, 32>}, {pipeline_mode = #tpu.pipeline_mode<synchronous>, transform_indices = @transform_6, window_bounds = array<i64: 2, 6, 128>}, {pipeline_mode = #tpu.pipeline_mode<synchronous>, transform_indices = @transform_7, window_bounds = array<i64: 16, 32>}]} {
    %c0 = arith.constant 0 : index
    %c0_0 = arith.constant 0 : index
    %c0_1 = arith.constant 0 : index
    %0 = vector.load %arg2[%c0, %c0_0, %c0_1] : memref<2x8x8xf32, #tpu.memory_space<vmem>>, vector<2x8x8xf32>
    %cst = arith.constant 5.000000e-01 : f32
    %1 = vector.broadcast %cst : f32 to vector<2x8x8xf32>
    %2 = arith.cmpf ogt, %0, %1 : vector<2x8x8xf32>
    %c0_2 = arith.constant 0 : index
    %c0_3 = arith.constant 0 : index
    %3 = vector.load %arg1[%c0_2, %c0_3] : memref<16x32xf32, #tpu.memory_space<vmem>>, vector<16x32xf32>
    %4 = arith.truncf %3 : vector<16x32xf32> to vector<16x32xbf16>
    %c0_4 = arith.constant 0 : index
    %c0_5 = arith.constant 0 : index
    %c0_6 = arith.constant 0 : index
    %5 = vector.load %arg3[%c0_4, %c0_5, %c0_6] : memref<2x32x96xbf16, #tpu.memory_space<vmem>>, vector<1x32x96xbf16>
    %6 = vector.shape_cast %5 : vector<1x32x96xbf16> to vector<32x96xbf16>
    %cst_7 = arith.constant dense<0.000000e+00> : vector<16x96xf32>
    %7 = tpu.matmul %4, %6, %cst_7 {dimension_numbers = #tpu.dot_dimension_numbers<[1], [0], [0], [1], [0, 0, 1, 1], [], []>} : vector<16x32xbf16>, vector<32x96xbf16>, vector<16x96xf32> -> vector<16x96xf32>
    %8 = vector.shape_cast %7 : vector<16x96xf32> to vector<2x8x96xf32>
    %9 = vector.extract_strided_slice %8 {offsets = [0, 0, 0], sizes = [2, 8, 8], strides = [1, 1, 1]} : vector<2x8x96xf32> to vector<2x8x8xf32>
    %10 = arith.truncf %9 : vector<2x8x8xf32> to vector<2x8x8xbf16>
    %11 = vector.extract_strided_slice %8 {offsets = [0, 0, 32], sizes = [2, 8, 8], strides = [1, 1, 1]} : vector<2x8x96xf32> to vector<2x8x8xf32>
    %12 = arith.truncf %11 : vector<2x8x8xf32> to vector<2x8x8xbf16>
    %13 = vector.extract_strided_slice %8 {offsets = [0, 0, 64], sizes = [2, 8, 8], strides = [1, 1, 1]} : vector<2x8x96xf32> to vector<2x8x8xf32>
    %14 = arith.truncf %13 : vector<2x8x8xf32> to vector<2x8x8xbf16>
    "tpu.trace_start"() <{level = 10 : i32, message = "bqd,bkd->bqk"}> : () -> ()
    %cst_8 = arith.constant dense<0.000000e+00> : vector<2x8x8xf32>
    %15 = tpu.matmul %10, %12, %cst_8 {dimension_numbers = #tpu.dot_dimension_numbers<[2], [2], [1], [1], [0, 0, 0, 1, 1, 1], [0], [0]>} : vector<2x8x8xbf16>, vector<2x8x8xbf16>, vector<2x8x8xf32> -> vector<2x8x8xf32>
    "tpu.trace_stop"() : () -> ()
    %cst_9 = arith.constant 0.353553385 : f32
    %16 = vector.broadcast %cst_9 : f32 to vector<2x8x8xf32>
    %17 = arith.mulf %15, %16 : vector<2x8x8xf32>
    %cst_10 = arith.constant -1.000000e+06 : f32
    %18 = vector.broadcast %cst_10 : f32 to vector<2x8x8xf32>
    %19 = arith.select %2, %17, %18 : vector<2x8x8xi1>, vector<2x8x8xf32>
    %cst_11 = arith.constant dense<0xFF800000> : vector<2x8xf32>
    %20 = vector.multi_reduction <maximumf>, %19, %cst_11 [2] : vector<2x8x8xf32> to vector<2x8xf32>
    %21 = vector.shape_cast %20 : vector<2x8xf32> to vector<2x8x1xf32>
    %22 = vector.broadcast %21 : vector<2x8x1xf32> to vector<2x8x8xf32>
    %23 = arith.subf %19, %22 : vector<2x8x8xf32>
    %24 = math.exp %23 : vector<2x8x8xf32>
    %cst_12 = arith.constant dense<0.000000e+00> : vector<2x8xf32>
    %25 = vector.multi_reduction <add>, %24, %cst_12 [2] : vector<2x8x8xf32> to vector<2x8xf32>
    %26 = vector.shape_cast %25 : vector<2x8xf32> to vector<2x8x1xf32>
    %27 = vector.broadcast %26 : vector<2x8x1xf32> to vector<2x8x8xf32>
    %28 = arith.divf %24, %27 : vector<2x8x8xf32>
    %29 = arith.truncf %28 : vector<2x8x8xf32> to vector<2x8x8xbf16>
    "tpu.trace_start"() <{level = 10 : i32, message = "bqk,bkd->bqd"}> : () -> ()
    %cst_13 = arith.constant dense<0.000000e+00> : vector<2x8x8xf32>
    %30 = tpu.matmul %29, %14, %cst_13 {dimension_numbers = #tpu.dot_dimension_numbers<[2], [1], [1], [2], [0, 0, 0, 1, 1, 2], [0], [0]>} : vector<2x8x8xbf16>, vector<2x8x8xbf16>, vector<2x8x8xf32> -> vector<2x8x8xf32>
    "tpu.trace_stop"() : () -> ()
    %31 = vector.extract_strided_slice %8 {offsets = [0, 0, 8], sizes = [2, 8, 8], strides = [1, 1, 1]} : vector<2x8x96xf32> to vector<2x8x8xf32>
    %32 = arith.truncf %31 : vector<2x8x8xf32> to vector<2x8x8xbf16>
    %33 = vector.extract_strided_slice %8 {offsets = [0, 0, 40], sizes = [2, 8, 8], strides = [1, 1, 1]} : vector<2x8x96xf32> to vector<2x8x8xf32>
    %34 = arith.truncf %33 : vector<2x8x8xf32> to vector<2x8x8xbf16>
    %35 = vector.extract_strided_slice %8 {offsets = [0, 0, 72], sizes = [2, 8, 8], strides = [1, 1, 1]} : vector<2x8x96xf32> to vector<2x8x8xf32>
    %36 = arith.truncf %35 : vector<2x8x8xf32> to vector<2x8x8xbf16>
    "tpu.trace_start"() <{level = 10 : i32, message = "bqd,bkd->bqk"}> : () -> ()
    %cst_14 = arith.constant dense<0.000000e+00> : vector<2x8x8xf32>
    %37 = tpu.matmul %32, %34, %cst_14 {dimension_numbers = #tpu.dot_dimension_numbers<[2], [2], [1], [1], [0, 0, 0, 1, 1, 1], [0], [0]>} : vector<2x8x8xbf16>, vector<2x8x8xbf16>, vector<2x8x8xf32> -> vector<2x8x8xf32>
    "tpu.trace_stop"() : () -> ()
    %cst_15 = arith.constant 0.353553385 : f32
    %38 = vector.broadcast %cst_15 : f32 to vector<2x8x8xf32>
    %39 = arith.mulf %37, %38 : vector<2x8x8xf32>
    %cst_16 = arith.constant -1.000000e+06 : f32
    %40 = vector.broadcast %cst_16 : f32 to vector<2x8x8xf32>
    %41 = arith.select %2, %39, %40 : vector<2x8x8xi1>, vector<2x8x8xf32>
    %cst_17 = arith.constant dense<0xFF800000> : vector<2x8xf32>
    %42 = vector.multi_reduction <maximumf>, %41, %cst_17 [2] : vector<2x8x8xf32> to vector<2x8xf32>
    %43 = vector.shape_cast %42 : vector<2x8xf32> to vector<2x8x1xf32>
    %44 = vector.broadcast %43 : vector<2x8x1xf32> to vector<2x8x8xf32>
    %45 = arith.subf %41, %44 : vector<2x8x8xf32>
    %46 = math.exp %45 : vector<2x8x8xf32>
    %cst_18 = arith.constant dense<0.000000e+00> : vector<2x8xf32>
    %47 = vector.multi_reduction <add>, %46, %cst_18 [2] : vector<2x8x8xf32> to vector<2x8xf32>
    %48 = vector.shape_cast %47 : vector<2x8xf32> to vector<2x8x1xf32>
    %49 = vector.broadcast %48 : vector<2x8x1xf32> to vector<2x8x8xf32>
    %50 = arith.divf %46, %49 : vector<2x8x8xf32>
    %51 = arith.truncf %50 : vector<2x8x8xf32> to vector<2x8x8xbf16>
    "tpu.trace_start"() <{level = 10 : i32, message = "bqk,bkd->bqd"}> : () -> ()
    %cst_19 = arith.constant dense<0.000000e+00> : vector<2x8x8xf32>
    %52 = tpu.matmul %51, %36, %cst_19 {dimension_numbers = #tpu.dot_dimension_numbers<[2], [1], [1], [2], [0, 0, 0, 1, 1, 2], [0], [0]>} : vector<2x8x8xbf16>, vector<2x8x8xbf16>, vector<2x8x8xf32> -> vector<2x8x8xf32>
    "tpu.trace_stop"() : () -> ()
    %53 = vector.extract_strided_slice %8 {offsets = [0, 0, 16], sizes = [2, 8, 8], strides = [1, 1, 1]} : vector<2x8x96xf32> to vector<2x8x8xf32>
    %54 = arith.truncf %53 : vector<2x8x8xf32> to vector<2x8x8xbf16>
    %55 = vector.extract_strided_slice %8 {offsets = [0, 0, 48], sizes = [2, 8, 8], strides = [1, 1, 1]} : vector<2x8x96xf32> to vector<2x8x8xf32>
    %56 = arith.truncf %55 : vector<2x8x8xf32> to vector<2x8x8xbf16>
    %57 = vector.extract_strided_slice %8 {offsets = [0, 0, 80], sizes = [2, 8, 8], strides = [1, 1, 1]} : vector<2x8x96xf32> to vector<2x8x8xf32>
    %58 = arith.truncf %57 : vector<2x8x8xf32> to vector<2x8x8xbf16>
    "tpu.trace_start"() <{level = 10 : i32, message = "bqd,bkd->bqk"}> : () -> ()
    %cst_20 = arith.constant dense<0.000000e+00> : vector<2x8x8xf32>
    %59 = tpu.matmul %54, %56, %cst_20 {dimension_numbers = #tpu.dot_dimension_numbers<[2], [2], [1], [1], [0, 0, 0, 1, 1, 1], [0], [0]>} : vector<2x8x8xbf16>, vector<2x8x8xbf16>, vector<2x8x8xf32> -> vector<2x8x8xf32>
    "tpu.trace_stop"() : () -> ()
    %cst_21 = arith.constant 0.353553385 : f32
    %60 = vector.broadcast %cst_21 : f32 to vector<2x8x8xf32>
    %61 = arith.mulf %59, %60 : vector<2x8x8xf32>
    %cst_22 = arith.constant -1.000000e+06 : f32
    %62 = vector.broadcast %cst_22 : f32 to vector<2x8x8xf32>
    %63 = arith.select %2, %61, %62 : vector<2x8x8xi1>, vector<2x8x8xf32>
    %cst_23 = arith.constant dense<0xFF800000> : vector<2x8xf32>
    %64 = vector.multi_reduction <maximumf>, %63, %cst_23 [2] : vector<2x8x8xf32> to vector<2x8xf32>
    %65 = vector.shape_cast %64 : vector<2x8xf32> to vector<2x8x1xf32>
    %66 = vector.broadcast %65 : vector<2x8x1xf32> to vector<2x8x8xf32>
    %67 = arith.subf %63, %66 : vector<2x8x8xf32>
    %68 = math.exp %67 : vector<2x8x8xf32>
    %cst_24 = arith.constant dense<0.000000e+00> : vector<2x8xf32>
    %69 = vector.multi_reduction <add>, %68, %cst_24 [2] : vector<2x8x8xf32> to vector<2x8xf32>
    %70 = vector.shape_cast %69 : vector<2x8xf32> to vector<2x8x1xf32>
    %71 = vector.broadcast %70 : vector<2x8x1xf32> to vector<2x8x8xf32>
    %72 = arith.divf %68, %71 : vector<2x8x8xf32>
    %73 = arith.truncf %72 : vector<2x8x8xf32> to vector<2x8x8xbf16>
    "tpu.trace_start"() <{level = 10 : i32, message = "bqk,bkd->bqd"}> : () -> ()
    %cst_25 = arith.constant dense<0.000000e+00> : vector<2x8x8xf32>
    %74 = tpu.matmul %73, %58, %cst_25 {dimension_numbers = #tpu.dot_dimension_numbers<[2], [1], [1], [2], [0, 0, 0, 1, 1, 2], [0], [0]>} : vector<2x8x8xbf16>, vector<2x8x8xbf16>, vector<2x8x8xf32> -> vector<2x8x8xf32>
    "tpu.trace_stop"() : () -> ()
    %75 = vector.extract_strided_slice %8 {offsets = [0, 0, 24], sizes = [2, 8, 8], strides = [1, 1, 1]} : vector<2x8x96xf32> to vector<2x8x8xf32>
    %76 = arith.truncf %75 : vector<2x8x8xf32> to vector<2x8x8xbf16>
    %77 = vector.extract_strided_slice %8 {offsets = [0, 0, 56], sizes = [2, 8, 8], strides = [1, 1, 1]} : vector<2x8x96xf32> to vector<2x8x8xf32>
    %78 = arith.truncf %77 : vector<2x8x8xf32> to vector<2x8x8xbf16>
    %79 = vector.extract_strided_slice %8 {offsets = [0, 0, 88], sizes = [2, 8, 8], strides = [1, 1, 1]} : vector<2x8x96xf32> to vector<2x8x8xf32>
    %80 = arith.truncf %79 : vector<2x8x8xf32> to vector<2x8x8xbf16>
    "tpu.trace_start"() <{level = 10 : i32, message = "bqd,bkd->bqk"}> : () -> ()
    %cst_26 = arith.constant dense<0.000000e+00> : vector<2x8x8xf32>
    %81 = tpu.matmul %76, %78, %cst_26 {dimension_numbers = #tpu.dot_dimension_numbers<[2], [2], [1], [1], [0, 0, 0, 1, 1, 1], [0], [0]>} : vector<2x8x8xbf16>, vector<2x8x8xbf16>, vector<2x8x8xf32> -> vector<2x8x8xf32>
    "tpu.trace_stop"() : () -> ()
    %cst_27 = arith.constant 0.353553385 : f32
    %82 = vector.broadcast %cst_27 : f32 to vector<2x8x8xf32>
    %83 = arith.mulf %81, %82 : vector<2x8x8xf32>
    %cst_28 = arith.constant -1.000000e+06 : f32
    %84 = vector.broadcast %cst_28 : f32 to vector<2x8x8xf32>
    %85 = arith.select %2, %83, %84 : vector<2x8x8xi1>, vector<2x8x8xf32>
    %cst_29 = arith.constant dense<0xFF800000> : vector<2x8xf32>
    %86 = vector.multi_reduction <maximumf>, %85, %cst_29 [2] : vector<2x8x8xf32> to vector<2x8xf32>
    %87 = vector.shape_cast %86 : vector<2x8xf32> to vector<2x8x1xf32>
    %88 = vector.broadcast %87 : vector<2x8x1xf32> to vector<2x8x8xf32>
    %89 = arith.subf %85, %88 : vector<2x8x8xf32>
    %90 = math.exp %89 : vector<2x8x8xf32>
    %cst_30 = arith.constant dense<0.000000e+00> : vector<2x8xf32>
    %91 = vector.multi_reduction <add>, %90, %cst_30 [2] : vector<2x8x8xf32> to vector<2x8xf32>
    %92 = vector.shape_cast %91 : vector<2x8xf32> to vector<2x8x1xf32>
    %93 = vector.broadcast %92 : vector<2x8x1xf32> to vector<2x8x8xf32>
    %94 = arith.divf %90, %93 : vector<2x8x8xf32>
    %95 = arith.truncf %94 : vector<2x8x8xf32> to vector<2x8x8xbf16>
    "tpu.trace_start"() <{level = 10 : i32, message = "bqk,bkd->bqd"}> : () -> ()
    %cst_31 = arith.constant dense<0.000000e+00> : vector<2x8x8xf32>
    %96 = tpu.matmul %95, %80, %cst_31 {dimension_numbers = #tpu.dot_dimension_numbers<[2], [1], [1], [2], [0, 0, 0, 1, 1, 2], [0], [0]>} : vector<2x8x8xbf16>, vector<2x8x8xbf16>, vector<2x8x8xf32> -> vector<2x8x8xf32>
    "tpu.trace_stop"() : () -> ()
    %97 = tpu.concatenate %30, %52, %74, %96 in 2 : vector<2x8x8xf32>, vector<2x8x8xf32>, vector<2x8x8xf32>, vector<2x8x8xf32> -> vector<2x8x32xf32>
    %98 = vector.shape_cast %97 : vector<2x8x32xf32> to vector<16x32xf32>
    %99 = arith.truncf %98 : vector<16x32xf32> to vector<16x32xbf16>
    %c0_32 = arith.constant 0 : index
    %c0_33 = arith.constant 0 : index
    %c0_34 = arith.constant 0 : index
    %100 = vector.load %arg4[%c0_32, %c0_33, %c0_34] : memref<2x32x32xbf16, #tpu.memory_space<vmem>>, vector<1x32x32xbf16>
    %101 = vector.shape_cast %100 : vector<1x32x32xbf16> to vector<32x32xbf16>
    %cst_35 = arith.constant dense<0.000000e+00> : vector<16x32xf32>
    %102 = tpu.matmul %99, %101, %cst_35 {dimension_numbers = #tpu.dot_dimension_numbers<[1], [0], [0], [1], [0, 0, 1, 1], [], []>} : vector<16x32xbf16>, vector<32x32xbf16>, vector<16x32xf32> -> vector<16x32xf32>
    %c0_36 = arith.constant 0 : index
    %c0_37 = arith.constant 0 : index
    %c0_38 = arith.constant 0 : index
    %103 = vector.load %arg7[%c0_36, %c0_37, %c0_38] : memref<2x6x128xf32, #tpu.memory_space<vmem>>, vector<1x6x128xf32>
    %104 = vector.shape_cast %103 : vector<1x6x128xf32> to vector<6x128xf32>
    %105 = vector.extract_strided_slice %104 {offsets = [0, 0], sizes = [1, 64], strides = [1, 1]} : vector<6x128xf32> to vector<1x64xf32>
    %106 = vector.extract_strided_slice %104 {offsets = [1, 0], sizes = [1, 32], strides = [1, 1]} : vector<6x128xf32> to vector<1x32xf32>
    %107 = vector.extract_strided_slice %104 {offsets = [2, 0], sizes = [1, 32], strides = [1, 1]} : vector<6x128xf32> to vector<1x32xf32>
    %108 = vector.extract_strided_slice %104 {offsets = [3, 0], sizes = [1, 32], strides = [1, 1]} : vector<6x128xf32> to vector<1x32xf32>
    %109 = vector.extract_strided_slice %104 {offsets = [4, 0], sizes = [1, 32], strides = [1, 1]} : vector<6x128xf32> to vector<1x32xf32>
    %110 = vector.extract_strided_slice %104 {offsets = [5, 0], sizes = [1, 32], strides = [1, 1]} : vector<6x128xf32> to vector<1x32xf32>
    %111 = arith.addf %3, %102 : vector<16x32xf32>
    %cst_39 = arith.constant dense<0.000000e+00> : vector<16xf32>
    %112 = vector.multi_reduction <add>, %111, %cst_39 [1] : vector<16x32xf32> to vector<16xf32>
    %113 = vector.shape_cast %112 : vector<16xf32> to vector<16x1xf32>
    %cst_40 = arith.constant 3.200000e+01 : f32
    %114 = vector.broadcast %cst_40 : f32 to vector<16x1xf32>
    %115 = arith.divf %113, %114 : vector<16x1xf32>
    %116 = vector.broadcast %115 : vector<16x1xf32> to vector<16x32xf32>
    %117 = arith.subf %111, %116 : vector<16x32xf32>
    %118 = arith.mulf %117, %117 : vector<16x32xf32>
    %cst_41 = arith.constant dense<0.000000e+00> : vector<16xf32>
    %119 = vector.multi_reduction <add>, %118, %cst_41 [1] : vector<16x32xf32> to vector<16xf32>
    %120 = vector.shape_cast %119 : vector<16xf32> to vector<16x1xf32>
    %cst_42 = arith.constant 3.200000e+01 : f32
    %121 = vector.broadcast %cst_42 : f32 to vector<16x1xf32>
    %122 = arith.divf %120, %121 : vector<16x1xf32>
    %123 = vector.broadcast %115 : vector<16x1xf32> to vector<16x32xf32>
    %124 = arith.subf %111, %123 : vector<16x32xf32>
    %cst_43 = arith.constant 9.99999974E-6 : f32
    %125 = vector.broadcast %cst_43 : f32 to vector<16x1xf32>
    %126 = arith.addf %122, %125 : vector<16x1xf32>
    %127 = math.rsqrt %126 : vector<16x1xf32>
    %128 = vector.broadcast %127 : vector<16x1xf32> to vector<16x32xf32>
    %129 = arith.mulf %124, %128 : vector<16x32xf32>
    %130 = vector.broadcast %107 : vector<1x32xf32> to vector<16x32xf32>
    %131 = arith.mulf %129, %130 : vector<16x32xf32>
    %132 = vector.broadcast %108 : vector<1x32xf32> to vector<16x32xf32>
    %133 = arith.addf %131, %132 : vector<16x32xf32>
    %134 = arith.truncf %133 : vector<16x32xf32> to vector<16x32xbf16>
    %c0_44 = arith.constant 0 : index
    %c0_45 = arith.constant 0 : index
    %c0_46 = arith.constant 0 : index
    %135 = vector.load %arg5[%c0_44, %c0_45, %c0_46] : memref<2x32x64xbf16, #tpu.memory_space<vmem>>, vector<1x32x64xbf16>
    %136 = vector.shape_cast %135 : vector<1x32x64xbf16> to vector<32x64xbf16>
    %cst_47 = arith.constant dense<0.000000e+00> : vector<16x64xf32>
    %137 = tpu.matmul %134, %136, %cst_47 {dimension_numbers = #tpu.dot_dimension_numbers<[1], [0], [0], [1], [0, 0, 1, 1], [], []>} : vector<16x32xbf16>, vector<32x64xbf16>, vector<16x64xf32> -> vector<16x64xf32>
    %138 = vector.broadcast %105 : vector<1x64xf32> to vector<16x64xf32>
    %139 = arith.addf %137, %138 : vector<16x64xf32>
    %cst_48 = arith.constant 0.000000e+00 : f32
    %140 = vector.broadcast %cst_48 : f32 to vector<16x64xf32>
    %141 = arith.maximumf %139, %140 : vector<16x64xf32>
    %142 = arith.truncf %141 : vector<16x64xf32> to vector<16x64xbf16>
    %c0_49 = arith.constant 0 : index
    %c0_50 = arith.constant 0 : index
    %c0_51 = arith.constant 0 : index
    %143 = vector.load %arg6[%c0_49, %c0_50, %c0_51] : memref<2x64x32xbf16, #tpu.memory_space<vmem>>, vector<1x64x32xbf16>
    %144 = vector.shape_cast %143 : vector<1x64x32xbf16> to vector<64x32xbf16>
    %cst_52 = arith.constant dense<0.000000e+00> : vector<16x32xf32>
    %145 = tpu.matmul %142, %144, %cst_52 {dimension_numbers = #tpu.dot_dimension_numbers<[1], [0], [0], [1], [0, 0, 1, 1], [], []>} : vector<16x64xbf16>, vector<64x32xbf16>, vector<16x32xf32> -> vector<16x32xf32>
    %146 = vector.broadcast %106 : vector<1x32xf32> to vector<16x32xf32>
    %147 = arith.addf %145, %146 : vector<16x32xf32>
    %148 = arith.addf %133, %147 : vector<16x32xf32>
    %cst_53 = arith.constant dense<0.000000e+00> : vector<16xf32>
    %149 = vector.multi_reduction <add>, %148, %cst_53 [1] : vector<16x32xf32> to vector<16xf32>
    %150 = vector.shape_cast %149 : vector<16xf32> to vector<16x1xf32>
    %cst_54 = arith.constant 3.200000e+01 : f32
    %151 = vector.broadcast %cst_54 : f32 to vector<16x1xf32>
    %152 = arith.divf %150, %151 : vector<16x1xf32>
    %153 = vector.broadcast %152 : vector<16x1xf32> to vector<16x32xf32>
    %154 = arith.subf %148, %153 : vector<16x32xf32>
    %155 = arith.mulf %154, %154 : vector<16x32xf32>
    %cst_55 = arith.constant dense<0.000000e+00> : vector<16xf32>
    %156 = vector.multi_reduction <add>, %155, %cst_55 [1] : vector<16x32xf32> to vector<16xf32>
    %157 = vector.shape_cast %156 : vector<16xf32> to vector<16x1xf32>
    %cst_56 = arith.constant 3.200000e+01 : f32
    %158 = vector.broadcast %cst_56 : f32 to vector<16x1xf32>
    %159 = arith.divf %157, %158 : vector<16x1xf32>
    %160 = vector.broadcast %152 : vector<16x1xf32> to vector<16x32xf32>
    %161 = arith.subf %148, %160 : vector<16x32xf32>
    %cst_57 = arith.constant 9.99999974E-6 : f32
    %162 = vector.broadcast %cst_57 : f32 to vector<16x1xf32>
    %163 = arith.addf %159, %162 : vector<16x1xf32>
    %164 = math.rsqrt %163 : vector<16x1xf32>
    %165 = vector.broadcast %164 : vector<16x1xf32> to vector<16x32xf32>
    %166 = arith.mulf %161, %165 : vector<16x32xf32>
    %167 = vector.broadcast %109 : vector<1x32xf32> to vector<16x32xf32>
    %168 = arith.mulf %166, %167 : vector<16x32xf32>
    %169 = vector.broadcast %110 : vector<1x32xf32> to vector<16x32xf32>
    %170 = arith.addf %168, %169 : vector<16x32xf32>
    %171 = arith.truncf %170 : vector<16x32xf32> to vector<16x32xbf16>
    %c1 = arith.constant 1 : index
    %c0_58 = arith.constant 0 : index
    %c0_59 = arith.constant 0 : index
    %172 = vector.load %arg3[%c1, %c0_58, %c0_59] : memref<2x32x96xbf16, #tpu.memory_space<vmem>>, vector<1x32x96xbf16>
    %173 = vector.shape_cast %172 : vector<1x32x96xbf16> to vector<32x96xbf16>
    %cst_60 = arith.constant dense<0.000000e+00> : vector<16x96xf32>
    %174 = tpu.matmul %171, %173, %cst_60 {dimension_numbers = #tpu.dot_dimension_numbers<[1], [0], [0], [1], [0, 0, 1, 1], [], []>} : vector<16x32xbf16>, vector<32x96xbf16>, vector<16x96xf32> -> vector<16x96xf32>
    %175 = vector.shape_cast %174 : vector<16x96xf32> to vector<2x8x96xf32>
    %176 = vector.extract_strided_slice %175 {offsets = [0, 0, 0], sizes = [2, 8, 8], strides = [1, 1, 1]} : vector<2x8x96xf32> to vector<2x8x8xf32>
    %177 = arith.truncf %176 : vector<2x8x8xf32> to vector<2x8x8xbf16>
    %178 = vector.extract_strided_slice %175 {offsets = [0, 0, 32], sizes = [2, 8, 8], strides = [1, 1, 1]} : vector<2x8x96xf32> to vector<2x8x8xf32>
    %179 = arith.truncf %178 : vector<2x8x8xf32> to vector<2x8x8xbf16>
    %180 = vector.extract_strided_slice %175 {offsets = [0, 0, 64], sizes = [2, 8, 8], strides = [1, 1, 1]} : vector<2x8x96xf32> to vector<2x8x8xf32>
    %181 = arith.truncf %180 : vector<2x8x8xf32> to vector<2x8x8xbf16>
    "tpu.trace_start"() <{level = 10 : i32, message = "bqd,bkd->bqk"}> : () -> ()
    %cst_61 = arith.constant dense<0.000000e+00> : vector<2x8x8xf32>
    %182 = tpu.matmul %177, %179, %cst_61 {dimension_numbers = #tpu.dot_dimension_numbers<[2], [2], [1], [1], [0, 0, 0, 1, 1, 1], [0], [0]>} : vector<2x8x8xbf16>, vector<2x8x8xbf16>, vector<2x8x8xf32> -> vector<2x8x8xf32>
    "tpu.trace_stop"() : () -> ()
    %cst_62 = arith.constant 0.353553385 : f32
    %183 = vector.broadcast %cst_62 : f32 to vector<2x8x8xf32>
    %184 = arith.mulf %182, %183 : vector<2x8x8xf32>
    %cst_63 = arith.constant -1.000000e+06 : f32
    %185 = vector.broadcast %cst_63 : f32 to vector<2x8x8xf32>
    %186 = arith.select %2, %184, %185 : vector<2x8x8xi1>, vector<2x8x8xf32>
    %cst_64 = arith.constant dense<0xFF800000> : vector<2x8xf32>
    %187 = vector.multi_reduction <maximumf>, %186, %cst_64 [2] : vector<2x8x8xf32> to vector<2x8xf32>
    %188 = vector.shape_cast %187 : vector<2x8xf32> to vector<2x8x1xf32>
    %189 = vector.broadcast %188 : vector<2x8x1xf32> to vector<2x8x8xf32>
    %190 = arith.subf %186, %189 : vector<2x8x8xf32>
    %191 = math.exp %190 : vector<2x8x8xf32>
    %cst_65 = arith.constant dense<0.000000e+00> : vector<2x8xf32>
    %192 = vector.multi_reduction <add>, %191, %cst_65 [2] : vector<2x8x8xf32> to vector<2x8xf32>
    %193 = vector.shape_cast %192 : vector<2x8xf32> to vector<2x8x1xf32>
    %194 = vector.broadcast %193 : vector<2x8x1xf32> to vector<2x8x8xf32>
    %195 = arith.divf %191, %194 : vector<2x8x8xf32>
    %196 = arith.truncf %195 : vector<2x8x8xf32> to vector<2x8x8xbf16>
    "tpu.trace_start"() <{level = 10 : i32, message = "bqk,bkd->bqd"}> : () -> ()
    %cst_66 = arith.constant dense<0.000000e+00> : vector<2x8x8xf32>
    %197 = tpu.matmul %196, %181, %cst_66 {dimension_numbers = #tpu.dot_dimension_numbers<[2], [1], [1], [2], [0, 0, 0, 1, 1, 2], [0], [0]>} : vector<2x8x8xbf16>, vector<2x8x8xbf16>, vector<2x8x8xf32> -> vector<2x8x8xf32>
    "tpu.trace_stop"() : () -> ()
    %198 = vector.extract_strided_slice %175 {offsets = [0, 0, 8], sizes = [2, 8, 8], strides = [1, 1, 1]} : vector<2x8x96xf32> to vector<2x8x8xf32>
    %199 = arith.truncf %198 : vector<2x8x8xf32> to vector<2x8x8xbf16>
    %200 = vector.extract_strided_slice %175 {offsets = [0, 0, 40], sizes = [2, 8, 8], strides = [1, 1, 1]} : vector<2x8x96xf32> to vector<2x8x8xf32>
    %201 = arith.truncf %200 : vector<2x8x8xf32> to vector<2x8x8xbf16>
    %202 = vector.extract_strided_slice %175 {offsets = [0, 0, 72], sizes = [2, 8, 8], strides = [1, 1, 1]} : vector<2x8x96xf32> to vector<2x8x8xf32>
    %203 = arith.truncf %202 : vector<2x8x8xf32> to vector<2x8x8xbf16>
    "tpu.trace_start"() <{level = 10 : i32, message = "bqd,bkd->bqk"}> : () -> ()
    %cst_67 = arith.constant dense<0.000000e+00> : vector<2x8x8xf32>
    %204 = tpu.matmul %199, %201, %cst_67 {dimension_numbers = #tpu.dot_dimension_numbers<[2], [2], [1], [1], [0, 0, 0, 1, 1, 1], [0], [0]>} : vector<2x8x8xbf16>, vector<2x8x8xbf16>, vector<2x8x8xf32> -> vector<2x8x8xf32>
    "tpu.trace_stop"() : () -> ()
    %cst_68 = arith.constant 0.353553385 : f32
    %205 = vector.broadcast %cst_68 : f32 to vector<2x8x8xf32>
    %206 = arith.mulf %204, %205 : vector<2x8x8xf32>
    %cst_69 = arith.constant -1.000000e+06 : f32
    %207 = vector.broadcast %cst_69 : f32 to vector<2x8x8xf32>
    %208 = arith.select %2, %206, %207 : vector<2x8x8xi1>, vector<2x8x8xf32>
    %cst_70 = arith.constant dense<0xFF800000> : vector<2x8xf32>
    %209 = vector.multi_reduction <maximumf>, %208, %cst_70 [2] : vector<2x8x8xf32> to vector<2x8xf32>
    %210 = vector.shape_cast %209 : vector<2x8xf32> to vector<2x8x1xf32>
    %211 = vector.broadcast %210 : vector<2x8x1xf32> to vector<2x8x8xf32>
    %212 = arith.subf %208, %211 : vector<2x8x8xf32>
    %213 = math.exp %212 : vector<2x8x8xf32>
    %cst_71 = arith.constant dense<0.000000e+00> : vector<2x8xf32>
    %214 = vector.multi_reduction <add>, %213, %cst_71 [2] : vector<2x8x8xf32> to vector<2x8xf32>
    %215 = vector.shape_cast %214 : vector<2x8xf32> to vector<2x8x1xf32>
    %216 = vector.broadcast %215 : vector<2x8x1xf32> to vector<2x8x8xf32>
    %217 = arith.divf %213, %216 : vector<2x8x8xf32>
    %218 = arith.truncf %217 : vector<2x8x8xf32> to vector<2x8x8xbf16>
    "tpu.trace_start"() <{level = 10 : i32, message = "bqk,bkd->bqd"}> : () -> ()
    %cst_72 = arith.constant dense<0.000000e+00> : vector<2x8x8xf32>
    %219 = tpu.matmul %218, %203, %cst_72 {dimension_numbers = #tpu.dot_dimension_numbers<[2], [1], [1], [2], [0, 0, 0, 1, 1, 2], [0], [0]>} : vector<2x8x8xbf16>, vector<2x8x8xbf16>, vector<2x8x8xf32> -> vector<2x8x8xf32>
    "tpu.trace_stop"() : () -> ()
    %220 = vector.extract_strided_slice %175 {offsets = [0, 0, 16], sizes = [2, 8, 8], strides = [1, 1, 1]} : vector<2x8x96xf32> to vector<2x8x8xf32>
    %221 = arith.truncf %220 : vector<2x8x8xf32> to vector<2x8x8xbf16>
    %222 = vector.extract_strided_slice %175 {offsets = [0, 0, 48], sizes = [2, 8, 8], strides = [1, 1, 1]} : vector<2x8x96xf32> to vector<2x8x8xf32>
    %223 = arith.truncf %222 : vector<2x8x8xf32> to vector<2x8x8xbf16>
    %224 = vector.extract_strided_slice %175 {offsets = [0, 0, 80], sizes = [2, 8, 8], strides = [1, 1, 1]} : vector<2x8x96xf32> to vector<2x8x8xf32>
    %225 = arith.truncf %224 : vector<2x8x8xf32> to vector<2x8x8xbf16>
    "tpu.trace_start"() <{level = 10 : i32, message = "bqd,bkd->bqk"}> : () -> ()
    %cst_73 = arith.constant dense<0.000000e+00> : vector<2x8x8xf32>
    %226 = tpu.matmul %221, %223, %cst_73 {dimension_numbers = #tpu.dot_dimension_numbers<[2], [2], [1], [1], [0, 0, 0, 1, 1, 1], [0], [0]>} : vector<2x8x8xbf16>, vector<2x8x8xbf16>, vector<2x8x8xf32> -> vector<2x8x8xf32>
    "tpu.trace_stop"() : () -> ()
    %cst_74 = arith.constant 0.353553385 : f32
    %227 = vector.broadcast %cst_74 : f32 to vector<2x8x8xf32>
    %228 = arith.mulf %226, %227 : vector<2x8x8xf32>
    %cst_75 = arith.constant -1.000000e+06 : f32
    %229 = vector.broadcast %cst_75 : f32 to vector<2x8x8xf32>
    %230 = arith.select %2, %228, %229 : vector<2x8x8xi1>, vector<2x8x8xf32>
    %cst_76 = arith.constant dense<0xFF800000> : vector<2x8xf32>
    %231 = vector.multi_reduction <maximumf>, %230, %cst_76 [2] : vector<2x8x8xf32> to vector<2x8xf32>
    %232 = vector.shape_cast %231 : vector<2x8xf32> to vector<2x8x1xf32>
    %233 = vector.broadcast %232 : vector<2x8x1xf32> to vector<2x8x8xf32>
    %234 = arith.subf %230, %233 : vector<2x8x8xf32>
    %235 = math.exp %234 : vector<2x8x8xf32>
    %cst_77 = arith.constant dense<0.000000e+00> : vector<2x8xf32>
    %236 = vector.multi_reduction <add>, %235, %cst_77 [2] : vector<2x8x8xf32> to vector<2x8xf32>
    %237 = vector.shape_cast %236 : vector<2x8xf32> to vector<2x8x1xf32>
    %238 = vector.broadcast %237 : vector<2x8x1xf32> to vector<2x8x8xf32>
    %239 = arith.divf %235, %238 : vector<2x8x8xf32>
    %240 = arith.truncf %239 : vector<2x8x8xf32> to vector<2x8x8xbf16>
    "tpu.trace_start"() <{level = 10 : i32, message = "bqk,bkd->bqd"}> : () -> ()
    %cst_78 = arith.constant dense<0.000000e+00> : vector<2x8x8xf32>
    %241 = tpu.matmul %240, %225, %cst_78 {dimension_numbers = #tpu.dot_dimension_numbers<[2], [1], [1], [2], [0, 0, 0, 1, 1, 2], [0], [0]>} : vector<2x8x8xbf16>, vector<2x8x8xbf16>, vector<2x8x8xf32> -> vector<2x8x8xf32>
    "tpu.trace_stop"() : () -> ()
    %242 = vector.extract_strided_slice %175 {offsets = [0, 0, 24], sizes = [2, 8, 8], strides = [1, 1, 1]} : vector<2x8x96xf32> to vector<2x8x8xf32>
    %243 = arith.truncf %242 : vector<2x8x8xf32> to vector<2x8x8xbf16>
    %244 = vector.extract_strided_slice %175 {offsets = [0, 0, 56], sizes = [2, 8, 8], strides = [1, 1, 1]} : vector<2x8x96xf32> to vector<2x8x8xf32>
    %245 = arith.truncf %244 : vector<2x8x8xf32> to vector<2x8x8xbf16>
    %246 = vector.extract_strided_slice %175 {offsets = [0, 0, 88], sizes = [2, 8, 8], strides = [1, 1, 1]} : vector<2x8x96xf32> to vector<2x8x8xf32>
    %247 = arith.truncf %246 : vector<2x8x8xf32> to vector<2x8x8xbf16>
    "tpu.trace_start"() <{level = 10 : i32, message = "bqd,bkd->bqk"}> : () -> ()
    %cst_79 = arith.constant dense<0.000000e+00> : vector<2x8x8xf32>
    %248 = tpu.matmul %243, %245, %cst_79 {dimension_numbers = #tpu.dot_dimension_numbers<[2], [2], [1], [1], [0, 0, 0, 1, 1, 1], [0], [0]>} : vector<2x8x8xbf16>, vector<2x8x8xbf16>, vector<2x8x8xf32> -> vector<2x8x8xf32>
    "tpu.trace_stop"() : () -> ()
    %cst_80 = arith.constant 0.353553385 : f32
    %249 = vector.broadcast %cst_80 : f32 to vector<2x8x8xf32>
    %250 = arith.mulf %248, %249 : vector<2x8x8xf32>
    %cst_81 = arith.constant -1.000000e+06 : f32
    %251 = vector.broadcast %cst_81 : f32 to vector<2x8x8xf32>
    %252 = arith.select %2, %250, %251 : vector<2x8x8xi1>, vector<2x8x8xf32>
    %cst_82 = arith.constant dense<0xFF800000> : vector<2x8xf32>
    %253 = vector.multi_reduction <maximumf>, %252, %cst_82 [2] : vector<2x8x8xf32> to vector<2x8xf32>
    %254 = vector.shape_cast %253 : vector<2x8xf32> to vector<2x8x1xf32>
    %255 = vector.broadcast %254 : vector<2x8x1xf32> to vector<2x8x8xf32>
    %256 = arith.subf %252, %255 : vector<2x8x8xf32>
    %257 = math.exp %256 : vector<2x8x8xf32>
    %cst_83 = arith.constant dense<0.000000e+00> : vector<2x8xf32>
    %258 = vector.multi_reduction <add>, %257, %cst_83 [2] : vector<2x8x8xf32> to vector<2x8xf32>
    %259 = vector.shape_cast %258 : vector<2x8xf32> to vector<2x8x1xf32>
    %260 = vector.broadcast %259 : vector<2x8x1xf32> to vector<2x8x8xf32>
    %261 = arith.divf %257, %260 : vector<2x8x8xf32>
    %262 = arith.truncf %261 : vector<2x8x8xf32> to vector<2x8x8xbf16>
    "tpu.trace_start"() <{level = 10 : i32, message = "bqk,bkd->bqd"}> : () -> ()
    %cst_84 = arith.constant dense<0.000000e+00> : vector<2x8x8xf32>
    %263 = tpu.matmul %262, %247, %cst_84 {dimension_numbers = #tpu.dot_dimension_numbers<[2], [1], [1], [2], [0, 0, 0, 1, 1, 2], [0], [0]>} : vector<2x8x8xbf16>, vector<2x8x8xbf16>, vector<2x8x8xf32> -> vector<2x8x8xf32>
    "tpu.trace_stop"() : () -> ()
    %264 = tpu.concatenate %197, %219, %241, %263 in 2 : vector<2x8x8xf32>, vector<2x8x8xf32>, vector<2x8x8xf32>, vector<2x8x8xf32> -> vector<2x8x32xf32>
    %265 = vector.shape_cast %264 : vector<2x8x32xf32> to vector<16x32xf32>
    %266 = arith.truncf %265 : vector<16x32xf32> to vector<16x32xbf16>
    %c1_85 = arith.constant 1 : index
    %c0_86 = arith.constant 0 : index
    %c0_87 = arith.constant 0 : index
    %267 = vector.load %arg4[%c1_85, %c0_86, %c0_87] : memref<2x32x32xbf16, #tpu.memory_space<vmem>>, vector<1x32x32xbf16>
    %268 = vector.shape_cast %267 : vector<1x32x32xbf16> to vector<32x32xbf16>
    %cst_88 = arith.constant dense<0.000000e+00> : vector<16x32xf32>
    %269 = tpu.matmul %266, %268, %cst_88 {dimension_numbers = #tpu.dot_dimension_numbers<[1], [0], [0], [1], [0, 0, 1, 1], [], []>} : vector<16x32xbf16>, vector<32x32xbf16>, vector<16x32xf32> -> vector<16x32xf32>
    %c1_89 = arith.constant 1 : index
    %c0_90 = arith.constant 0 : index
    %c0_91 = arith.constant 0 : index
    %270 = vector.load %arg7[%c1_89, %c0_90, %c0_91] : memref<2x6x128xf32, #tpu.memory_space<vmem>>, vector<1x6x128xf32>
    %271 = vector.shape_cast %270 : vector<1x6x128xf32> to vector<6x128xf32>
    %272 = vector.extract_strided_slice %271 {offsets = [0, 0], sizes = [1, 64], strides = [1, 1]} : vector<6x128xf32> to vector<1x64xf32>
    %273 = vector.extract_strided_slice %271 {offsets = [1, 0], sizes = [1, 32], strides = [1, 1]} : vector<6x128xf32> to vector<1x32xf32>
    %274 = vector.extract_strided_slice %271 {offsets = [2, 0], sizes = [1, 32], strides = [1, 1]} : vector<6x128xf32> to vector<1x32xf32>
    %275 = vector.extract_strided_slice %271 {offsets = [3, 0], sizes = [1, 32], strides = [1, 1]} : vector<6x128xf32> to vector<1x32xf32>
    %276 = vector.extract_strided_slice %271 {offsets = [4, 0], sizes = [1, 32], strides = [1, 1]} : vector<6x128xf32> to vector<1x32xf32>
    %277 = vector.extract_strided_slice %271 {offsets = [5, 0], sizes = [1, 32], strides = [1, 1]} : vector<6x128xf32> to vector<1x32xf32>
    %278 = arith.addf %170, %269 : vector<16x32xf32>
    %cst_92 = arith.constant dense<0.000000e+00> : vector<16xf32>
    %279 = vector.multi_reduction <add>, %278, %cst_92 [1] : vector<16x32xf32> to vector<16xf32>
    %280 = vector.shape_cast %279 : vector<16xf32> to vector<16x1xf32>
    %cst_93 = arith.constant 3.200000e+01 : f32
    %281 = vector.broadcast %cst_93 : f32 to vector<16x1xf32>
    %282 = arith.divf %280, %281 : vector<16x1xf32>
    %283 = vector.broadcast %282 : vector<16x1xf32> to vector<16x32xf32>
    %284 = arith.subf %278, %283 : vector<16x32xf32>
    %285 = arith.mulf %284, %284 : vector<16x32xf32>
    %cst_94 = arith.constant dense<0.000000e+00> : vector<16xf32>
    %286 = vector.multi_reduction <add>, %285, %cst_94 [1] : vector<16x32xf32> to vector<16xf32>
    %287 = vector.shape_cast %286 : vector<16xf32> to vector<16x1xf32>
    %cst_95 = arith.constant 3.200000e+01 : f32
    %288 = vector.broadcast %cst_95 : f32 to vector<16x1xf32>
    %289 = arith.divf %287, %288 : vector<16x1xf32>
    %290 = vector.broadcast %282 : vector<16x1xf32> to vector<16x32xf32>
    %291 = arith.subf %278, %290 : vector<16x32xf32>
    %cst_96 = arith.constant 9.99999974E-6 : f32
    %292 = vector.broadcast %cst_96 : f32 to vector<16x1xf32>
    %293 = arith.addf %289, %292 : vector<16x1xf32>
    %294 = math.rsqrt %293 : vector<16x1xf32>
    %295 = vector.broadcast %294 : vector<16x1xf32> to vector<16x32xf32>
    %296 = arith.mulf %291, %295 : vector<16x32xf32>
    %297 = vector.broadcast %274 : vector<1x32xf32> to vector<16x32xf32>
    %298 = arith.mulf %296, %297 : vector<16x32xf32>
    %299 = vector.broadcast %275 : vector<1x32xf32> to vector<16x32xf32>
    %300 = arith.addf %298, %299 : vector<16x32xf32>
    %301 = arith.truncf %300 : vector<16x32xf32> to vector<16x32xbf16>
    %c1_97 = arith.constant 1 : index
    %c0_98 = arith.constant 0 : index
    %c0_99 = arith.constant 0 : index
    %302 = vector.load %arg5[%c1_97, %c0_98, %c0_99] : memref<2x32x64xbf16, #tpu.memory_space<vmem>>, vector<1x32x64xbf16>
    %303 = vector.shape_cast %302 : vector<1x32x64xbf16> to vector<32x64xbf16>
    %cst_100 = arith.constant dense<0.000000e+00> : vector<16x64xf32>
    %304 = tpu.matmul %301, %303, %cst_100 {dimension_numbers = #tpu.dot_dimension_numbers<[1], [0], [0], [1], [0, 0, 1, 1], [], []>} : vector<16x32xbf16>, vector<32x64xbf16>, vector<16x64xf32> -> vector<16x64xf32>
    %305 = vector.broadcast %272 : vector<1x64xf32> to vector<16x64xf32>
    %306 = arith.addf %304, %305 : vector<16x64xf32>
    %cst_101 = arith.constant 0.000000e+00 : f32
    %307 = vector.broadcast %cst_101 : f32 to vector<16x64xf32>
    %308 = arith.maximumf %306, %307 : vector<16x64xf32>
    %309 = arith.truncf %308 : vector<16x64xf32> to vector<16x64xbf16>
    %c1_102 = arith.constant 1 : index
    %c0_103 = arith.constant 0 : index
    %c0_104 = arith.constant 0 : index
    %310 = vector.load %arg6[%c1_102, %c0_103, %c0_104] : memref<2x64x32xbf16, #tpu.memory_space<vmem>>, vector<1x64x32xbf16>
    %311 = vector.shape_cast %310 : vector<1x64x32xbf16> to vector<64x32xbf16>
    %cst_105 = arith.constant dense<0.000000e+00> : vector<16x32xf32>
    %312 = tpu.matmul %309, %311, %cst_105 {dimension_numbers = #tpu.dot_dimension_numbers<[1], [0], [0], [1], [0, 0, 1, 1], [], []>} : vector<16x64xbf16>, vector<64x32xbf16>, vector<16x32xf32> -> vector<16x32xf32>
    %313 = vector.broadcast %273 : vector<1x32xf32> to vector<16x32xf32>
    %314 = arith.addf %312, %313 : vector<16x32xf32>
    %315 = arith.addf %300, %314 : vector<16x32xf32>
    %cst_106 = arith.constant dense<0.000000e+00> : vector<16xf32>
    %316 = vector.multi_reduction <add>, %315, %cst_106 [1] : vector<16x32xf32> to vector<16xf32>
    %317 = vector.shape_cast %316 : vector<16xf32> to vector<16x1xf32>
    %cst_107 = arith.constant 3.200000e+01 : f32
    %318 = vector.broadcast %cst_107 : f32 to vector<16x1xf32>
    %319 = arith.divf %317, %318 : vector<16x1xf32>
    %320 = vector.broadcast %319 : vector<16x1xf32> to vector<16x32xf32>
    %321 = arith.subf %315, %320 : vector<16x32xf32>
    %322 = arith.mulf %321, %321 : vector<16x32xf32>
    %cst_108 = arith.constant dense<0.000000e+00> : vector<16xf32>
    %323 = vector.multi_reduction <add>, %322, %cst_108 [1] : vector<16x32xf32> to vector<16xf32>
    %324 = vector.shape_cast %323 : vector<16xf32> to vector<16x1xf32>
    %cst_109 = arith.constant 3.200000e+01 : f32
    %325 = vector.broadcast %cst_109 : f32 to vector<16x1xf32>
    %326 = arith.divf %324, %325 : vector<16x1xf32>
    %327 = vector.broadcast %319 : vector<16x1xf32> to vector<16x32xf32>
    %328 = arith.subf %315, %327 : vector<16x32xf32>
    %cst_110 = arith.constant 9.99999974E-6 : f32
    %329 = vector.broadcast %cst_110 : f32 to vector<16x1xf32>
    %330 = arith.addf %326, %329 : vector<16x1xf32>
    %331 = math.rsqrt %330 : vector<16x1xf32>
    %332 = vector.broadcast %331 : vector<16x1xf32> to vector<16x32xf32>
    %333 = arith.mulf %328, %332 : vector<16x32xf32>
    %334 = vector.broadcast %276 : vector<1x32xf32> to vector<16x32xf32>
    %335 = arith.mulf %333, %334 : vector<16x32xf32>
    %336 = vector.broadcast %277 : vector<1x32xf32> to vector<16x32xf32>
    %337 = arith.addf %335, %336 : vector<16x32xf32>
    %c0_111 = arith.constant 0 : index
    %c0_112 = arith.constant 0 : index
    %338 = vector.load %arg8[%c0_111, %c0_112] : memref<16x32xf32, #tpu.memory_space<vmem>>, vector<16x32xf32>
    tpu.vector_store %arg8[%c0_111, %c0_112], %337 {strides = array<i32>} : memref<16x32xf32, #tpu.memory_space<vmem>>, vector<16x32xf32>,
    return
  }
  func.func @transform_0(%arg0: i32) -> (i32, i32) {
    %c0_i32 = arith.constant 0 : i32
    %c0_i32_0 = arith.constant 0 : i32
    %c0_i32_1 = arith.constant 0 : i32
    return %c0_i32, %c0_i32_0 : i32, i32
  }
  func.func @transform_1(%arg0: i32) -> (i32, i32, i32) {
    %c0_i32 = arith.constant 0 : i32
    %c0_i32_0 = arith.constant 0 : i32
    %c0_i32_1 = arith.constant 0 : i32
    %c0_i32_2 = arith.constant 0 : i32
    return %c0_i32, %c0_i32_0, %c0_i32_1 : i32, i32, i32
  }
  func.func @transform_2(%arg0: i32) -> (i32, i32, i32) {
    %c0_i32 = arith.constant 0 : i32
    %c0_i32_0 = arith.constant 0 : i32
    %c0_i32_1 = arith.constant 0 : i32
    %c0_i32_2 = arith.constant 0 : i32
    return %c0_i32, %c0_i32_0, %c0_i32_1 : i32, i32, i32
  }
  func.func @transform_3(%arg0: i32) -> (i32, i32, i32) {
    %c0_i32 = arith.constant 0 : i32
    %c0_i32_0 = arith.constant 0 : i32
    %c0_i32_1 = arith.constant 0 : i32
    %c0_i32_2 = arith.constant 0 : i32
    return %c0_i32, %c0_i32_0, %c0_i32_1 : i32, i32, i32
  }
  func.func @transform_4(%arg0: i32) -> (i32, i32, i32) {
    %c0_i32 = arith.constant 0 : i32
    %c0_i32_0 = arith.constant 0 : i32
    %c0_i32_1 = arith.constant 0 : i32
    %c0_i32_2 = arith.constant 0 : i32
    return %c0_i32, %c0_i32_0, %c0_i32_1 : i32, i32, i32
  }
  func.func @transform_5(%arg0: i32) -> (i32, i32, i32) {
    %c0_i32 = arith.constant 0 : i32
    %c0_i32_0 = arith.constant 0 : i32
    %c0_i32_1 = arith.constant 0 : i32
    %c0_i32_2 = arith.constant 0 : i32
    return %c0_i32, %c0_i32_0, %c0_i32_1 : i32, i32, i32
  }
  func.func @transform_6(%arg0: i32) -> (i32, i32, i32) {
    %c0_i32 = arith.constant 0 : i32
    %c0_i32_0 = arith.constant 0 : i32
    %c0_i32_1 = arith.constant 0 : i32
    %c0_i32_2 = arith.constant 0 : i32
    return %c0_i32, %c0_i32_0, %c0_i32_1 : i32, i32, i32
  }
  func.func @transform_7(%arg0: i32) -> (i32, i32) {
    %c0_i32 = arith.constant 0 : i32
    %c0_i32_0 = arith.constant 0 : i32
    %c0_i32_1 = arith.constant 0 : i32
    return %c0_i32, %c0_i32_0 : i32, i32
  }
}

</mosaic_0001>

<llo_original>
// kernel: fused_encoder.1
$region0: #{fused_encoder.1}
  #allocation0 [shape = 'u32[]', space=smem, size = 0x4, offset = 0x4, fixed_abs, tag = 'smem constant byte address 0x4 - core index']
  #allocation1 [shape = 'u32[144,128]{1,0:T(1,128)}', space=vmem, size = 0x12000, scoped, tag = 'internal scratch']
  %s0 = inlined_call_operand.hbm [shape: f32[16,32], index: 0, kind: input, shape index: {}]
  %s1 = inlined_call_operand.hbm [shape: f32[2,8,8], index: 1, kind: input, shape index: {}]
  %s2 = inlined_call_operand.vmem [shape: bf16[2,32,96], index: 2, kind: input, shape index: {}]
  %s3 = inlined_call_operand.vmem [shape: bf16[2,32,32], index: 3, kind: input, shape index: {}]
  %s4 = inlined_call_operand.vmem [shape: bf16[2,32,64], index: 4, kind: input, shape index: {}]
  %s5 = inlined_call_operand.vmem [shape: bf16[2,64,32], index: 5, kind: input, shape index: {}]
  %s6 = inlined_call_operand.vmem [shape: f32[2,6,128], index: 6, kind: input, shape index: {}]
  %s7 = inlined_call_operand.hbm [shape: f32[16,32], index: 7, kind: output, shape index: {}]
  %s8 = sld [smem:[#allocation0]]
  $region46: #{fused_encoder.1} parent=0
    _
  %s10 = ssub.s32 1, %s8
  %s11 = scalar_select 0, %s10, %s8
  $region1: #{fused_encoder.1} parent=0
    #allocation2 [shape = 'u8[8192]{0}', space=vmem, size = 0x2000, scoped, tag = 'input window, operand 0, single buffered']
    #allocation3 [shape = 's32[1]{0}', space=sflag, size = 0x4, scoped, tag = 'scoped memory for fused_encoder.1']
    #allocation4 [shape = 's32[1]{0}', space=sflag, size = 0x4, scoped, tag = 'scoped memory for fused_encoder.1']
    #allocation5 [shape = 'u8[8192]{0}', space=vmem, size = 0x2000, scoped, tag = 'input window, operand 1, single buffered']
    #allocation6 [shape = 's32[1]{0}', space=sflag, size = 0x4, scoped, tag = 'scoped memory for fused_encoder.1']
    #allocation7 [shape = 'u8[8192]{0}', space=vmem, size = 0x2000, scoped, tag = 'output window, operand 0, single buffered']
    %12 = vsyncpa [#allocation3], 0
    %13 = vsyncpa [#allocation6], 0
    %14 = vsyncpa [#allocation4], 0
    // Predicated region
    $region2: #{fused_encoder.1} parent=1 // pred_check
      _
    $region3: #{fused_encoder.1} parent=1 // pred_check_branch
      %16 = sbr.rel (0) target = $region5
    $region4: #{fused_encoder.1} parent=1 // pred_region
      %s18 = ssub.s32 256, 256
      %19 = vsyncadd [#allocation3], %s18
      %s20 = sshll.u32 [#allocation2], 4
      %s21 = int_to_ptr.vmem [resolvable:$true] %s20
      %26 = dma.hbm_to_vmem [thread:$0]  %s0, 256, %s21, [#allocation3], 128, 128, 8
    $region5: #{fused_encoder.1} parent=1 // pred_fallthru
      _
    // Predicated region
    $region6: #{fused_encoder.1} parent=1 // pred_check
      _
    $region7: #{fused_encoder.1} parent=1 // pred_check_branch
      %28 = sbr.rel (0) target = $region9
    $region8: #{fused_encoder.1} parent=1 // pred_region
      %s30 = ssub.s32 256, 256
      %31 = vsyncadd [#allocation6], %s30
      %s32 = sshll.u32 [#allocation5], 4
      %s33 = int_to_ptr.vmem [resolvable:$true] %s32
      %38 = dma.hbm_to_vmem [thread:$0]  %s1, 256, %s33, [#allocation6], 128, 128, 8
    $region9: #{fused_encoder.1} parent=1 // pred_fallthru
      _
    // Predicated region
    $region10: #{fused_encoder.1} parent=1 // pred_check
      _
    $region11: #{fused_encoder.1} parent=1 // pred_check_branch
      %40 = sbr.rel (0) target = $region13
    $region12: #{fused_encoder.1} parent=1 // pred_region
      _
    $region13: #{fused_encoder.1} parent=1 // pred_fallthru
      _
    // Predicated region
    $region14: #{fused_encoder.1} parent=1 // pred_check
      _
    $region15: #{fused_encoder.1} parent=1 // pred_check_branch
      %42 = sbr.rel (0) target = $region17
    $region16: #{fused_encoder.1} parent=1 // pred_region
      _
    $region17: #{fused_encoder.1} parent=1 // pred_fallthru
      _
    // Predicated region
    $region18: #{fused_encoder.1} parent=1 // pred_check
      _
    $region19: #{fused_encoder.1} parent=1 // pred_check_branch
      %44 = sbr.rel (0) target = $region21
    $region20: #{fused_encoder.1} parent=1 // pred_region
      _
    $region21: #{fused_encoder.1} parent=1 // pred_fallthru
      _
    // Predicated region
    $region22: #{fused_encoder.1} parent=1 // pred_check
      _
    $region23: #{fused_encoder.1} parent=1 // pred_check_branch
      %46 = sbr.rel (0) target = $region25
    $region24: #{fused_encoder.1} parent=1 // pred_region
      _
    $region25: #{fused_encoder.1} parent=1 // pred_fallthru
      _
    // Predicated region
    $region26: #{fused_encoder.1} parent=1 // pred_check
      _
    $region27: #{fused_encoder.1} parent=1 // pred_check_branch
      %48 = sbr.rel (0) target = $region29
    $region28: #{fused_encoder.1} parent=1 // pred_region
      _
    $region29: #{fused_encoder.1} parent=1 // pred_fallthru
      _
    // Predicated region
    $region30: #{fused_encoder.1} parent=1 // pred_check
      _
    $region31: #{fused_encoder.1} parent=1 // pred_check_branch
      %50 = sbr.rel (0) target = $region33
    $region32: #{fused_encoder.1} parent=1 // pred_region
      %51 = dma.done [#allocation3], 256
    $region33: #{fused_encoder.1} parent=1 // pred_fallthru
      _
    // Predicated region
    $region34: #{fused_encoder.1} parent=1 // pred_check
      _
    $region35: #{fused_encoder.1} parent=1 // pred_check_branch
      %53 = sbr.rel (0) target = $region37
    $region36: #{fused_encoder.1} parent=1 // pred_region
      %54 = dma.done [#allocation6], 256
    $region37: #{fused_encoder.1} parent=1 // pred_fallthru
      _
    %v56 = vld [vmem:[#allocation5] sm:$0xff]
    %v57 = vld [vmem:[#allocation5 + $0x8] sm:$0xff]
    %vm58 = vcmp.gt.f32.partialorder %v56, 0.5
    %vm59 = vcmp.gt.f32.partialorder %v57, 0.5
    %v60 = vld [vmem:[#allocation2] sm:$0xff]
    %v61 = vld [vmem:[#allocation2 + $0x8] sm:$0xff]
    %v62 = vpack.c.bf16 %v61, %v60
    %v63 = vld [vmem:[%s2] sm:$0xf]
    %v64 = vld [vmem:[%s2 + $0x4] sm:$0xf]
    %v65 = vld [vmem:[%s2 + $0x8] sm:$0xf]
    %v66 = vld [vmem:[%s2 + $0xc] sm:$0xf]
    %v71 = vunpack.c.l.b16 %v63
    %v72 = vunpack.c.l.b16 %v64
    %v73 = vunpack.c.l.b16 %v65
    %v74 = vunpack.c.l.b16 %v66
    %v75 = vpack.c.b16 %v72, %v71
    %v76 = vpack.c.b16 %v74, %v73
    %vm79 = vcmask 261120
    %v81 = vsel %vm79, %v62, 0
    %83 = vmatprep.subr.bf16.mxu0 0
    %84 = vmatpush1.bf16.msra.mxu0 0
    %85 = vmatprep.subr.bf16.mxu0 0
    %86 = vmatpush1.bf16.msra.mxu0 0
    %87 = vmatprep.subr.bf16.mxu0 0
    %88 = vmatpush1.bf16.msra.mxu0 0
    %89 = vmatprep.subr.bf16.mxu0 0
    %90 = vmatpush1.bf16.msra.mxu0 0
    %91 = vmatprep.subr.bf16.mxu0 0
    %92 = vmatpush1.bf16.msra.mxu0 0
    %93 = vmatprep.subr.bf16.mxu0 0
    %94 = vmatpush1.bf16.msra.mxu0 0
    %95 = vmatprep.subr.bf16.mxu0 0
    %96 = vmatpush1.bf16.msra.mxu0 %v76
    %97 = vmatprep.subr.bf16.mxu0 0
    %98 = vmatpush1.bf16.msra.mxu0 %v75
    %99 = vmatprep.subr.bf16.mxu0 0
    %100 = vmatpush2.bf16.msra.mxu0 0
    %101 = vmatprep.subr.bf16.mxu0 0
    %102 = vmatpush2.bf16.msra.mxu0 0
    %103 = vmatprep.subr.bf16.mxu0 0
    %104 = vmatpush2.bf16.msra.mxu0 0
    %105 = vmatprep.subr.bf16.mxu0 0
    %106 = vmatpush2.bf16.msra.mxu0 0
    %107 = vmatprep.subr.bf16.mxu0 0
    %108 = vmatpush2.bf16.msra.mxu0 0
    %109 = vmatprep.subr.bf16.mxu0 0
    %110 = vmatpush2.bf16.msra.mxu0 0
    %111 = vmatprep.subr.bf16.mxu0 0
    %112 = vmatpush2.bf16.msra.mxu0 0
    %113 = vmatprep.subr.bf16.mxu0 0
    %114 = vmatpush2.bf16.msra.mxu0 0
    %115 = vmatprep.mubr.bf16.mxu0 0
    %116 = vmatmul.mubr.bf16.gmra.mxu0 %v81
    %v117 = vpop.f32.mrf.mxu0
    %v118 = vadd.f32 0.0, %v117
    %v119 = vpop.f32.mrf.mxu0
    %v120 = vpop.f32.mrf.mxu0
    %v121 = vadd.f32 0.0, %v120
    %v122 = vpop.f32.mrf.mxu0
    %123 = vdwg.mxu0
    %v124 = vpack.c.bf16 %v118, %v118
    %v125 = vpack.c.bf16 %v121, %v121
    %127 = vrot.lane.b32.xlu0 %v124, 96
    %v128 = vpop.permute.xlu0 %127
    %vm129 = vcmask 64512
    %v131 = vsel %vm129, %v124, 0
    %v134 = vsel %vm129, %v128, 0
    %136 = vmatprep.subr.bf16.mxu0 0
    %137 = vmatpush1.bf16.xpose.msra.mxu0 0
    %138 = vmatprep.subr.bf16.mxu0 0
    %139 = vmatpush1.bf16.xpose.msra.mxu0 0
    %140 = vmatprep.subr.bf16.mxu0 0
    %141 = vmatpush1.bf16.xpose.msra.mxu0 0
    %142 = vmatprep.subr.bf16.mxu0 0
    %143 = vmatpush1.bf16.xpose.msra.mxu0 0
    %144 = vmatprep.subr.bf16.mxu0 0
    %145 = vmatpush1.bf16.xpose.msra.mxu0 0
    %146 = vmatprep.subr.bf16.mxu0 0
    %147 = vmatpush1.bf16.xpose.msra.mxu0 0
    %148 = vmatprep.subr.bf16.mxu0 0
    %149 = vmatpush1.bf16.xpose.msra.mxu0 0
    %150 = vmatprep.subr.bf16.mxu0 0
    %151 = vmatpush1.bf16.xpose.msra.mxu0 %v134
    %152 = vmatprep.subr.bf16.mxu0 0
    %153 = vmatpush2.bf16.xpose.msra.mxu0 0
    %154 = vmatprep.subr.bf16.mxu0 0
    %155 = vmatpush2.bf16.xpose.msra.mxu0 0
    %156 = vmatprep.subr.bf16.mxu0 0
    %157 = vmatpush2.bf16.xpose.msra.mxu0 0
    %158 = vmatprep.subr.bf16.mxu0 0
    %159 = vmatpush2.bf16.xpose.msra.mxu0 0
    %160 = vmatprep.subr.bf16.mxu0 0
    %161 = vmatpush2.bf16.xpose.msra.mxu0 0
    %162 = vmatprep.subr.bf16.mxu0 0
    %163 = vmatpush2.bf16.xpose.msra.mxu0 0
    %164 = vmatprep.subr.bf16.mxu0 0
    %165 = vmatpush2.bf16.xpose.msra.mxu0 0
    %166 = vmatprep.subr.bf16.mxu0 0
    %167 = vmatpush2.bf16.xpose.msra.mxu0 0
    %168 = vmatprep.mubr.bf16.mxu0 0
    %169 = vmatmul.mubr.bf16.gmra.mxu0 %v131
    %v170 = vpop.f32.mrf.mxu0
    %v171 = vadd.f32 0.0, %v170
    %v172 = vpop.f32.mrf.mxu0
    %v173 = vpop.f32.mrf.mxu0
    %v174 = vpop.f32.mrf.mxu0
    %175 = vdwg.mxu0
    %177 = vrot.lane.b32.xlu0 %v125, 96
    %v178 = vpop.permute.xlu0 %177
    %v180 = vsel %vm129, %v125, 0
    %v183 = vsel %vm129, %v178, 0
    %185 = vmatprep.subr.bf16.mxu0 0
    %186 = vmatpush1.bf16.xpose.msra.mxu0 0
    %187 = vmatprep.subr.bf16.mxu0 0
    %188 = vmatpush1.bf16.xpose.msra.mxu0 0
    %189 = vmatprep.subr.bf16.mxu0 0
    %190 = vmatpush1.bf16.xpose.msra.mxu0 0
    %191 = vmatprep.subr.bf16.mxu0 0
    %192 = vmatpush1.bf16.xpose.msra.mxu0 0
    %193 = vmatprep.subr.bf16.mxu0 0
    %194 = vmatpush1.bf16.xpose.msra.mxu0 0
    %195 = vmatprep.subr.bf16.mxu0 0
    %196 = vmatpush1.bf16.xpose.msra.mxu0 0
    %197 = vmatprep.subr.bf16.mxu0 0
    %198 = vmatpush1.bf16.xpose.msra.mxu0 0
    %199 = vmatprep.subr.bf16.mxu0 0
    %200 = vmatpush1.bf16.xpose.msra.mxu0 %v183
    %201 = vmatprep.subr.bf16.mxu0 0
    %202 = vmatpush2.bf16.xpose.msra.mxu0 0
    %203 = vmatprep.subr.bf16.mxu0 0
    %204 = vmatpush2.bf16.xpose.msra.mxu0 0
    %205 = vmatprep.subr.bf16.mxu0 0
    %206 = vmatpush2.bf16.xpose.msra.mxu0 0
    %207 = vmatprep.subr.bf16.mxu0 0
    %208 = vmatpush2.bf16.xpose.msra.mxu0 0
    %209 = vmatprep.subr.bf16.mxu0 0
    %210 = vmatpush2.bf16.xpose.msra.mxu0 0
    %211 = vmatprep.subr.bf16.mxu0 0
    %212 = vmatpush2.bf16.xpose.msra.mxu0 0
    %213 = vmatprep.subr.bf16.mxu0 0
    %214 = vmatpush2.bf16.xpose.msra.mxu0 0
    %215 = vmatprep.subr.bf16.mxu0 0
    %216 = vmatpush2.bf16.xpose.msra.mxu0 0
    %217 = vmatprep.mubr.bf16.mxu0 0
    %218 = vmatmul.mubr.bf16.gmra.mxu0 %v180
    %v219 = vpop.f32.mrf.mxu0
    %v220 = vadd.f32 0.0, %v219
    %v221 = vpop.f32.mrf.mxu0
    %v222 = vpop.f32.mrf.mxu0
    %v223 = vpop.f32.mrf.mxu0
    %224 = vdwg.mxu0
    %v225 = vmul.f32 %v171, 0.35355338
    %v226 = vmul.f32 %v220, 0.35355338
    %v227 = vsel %vm58, %v225, -1000000.0
    %v228 = vsel %vm59, %v226, -1000000.0
    %v229 = vsel %vm129, %v227, -inf
    %230 = vmax.xlane.f32.xlu0 %v229
    %v231 = vpop.xlane.xlu0 %230
    %v232 = vsel %vm129, %v228, -inf
    %233 = vmax.xlane.f32.xlu0 %v232
    %v234 = vpop.xlane.xlu0 %233
    %v235 = vsub.f32 %v227, %v231
    %v236 = vsub.f32 %v228, %v234
    %v237 = vmul.f32 %v235, 1.442695
    %v238 = vpow.pop %v237
    %v239 = vmul.f32 %v236, 1.442695
    %v240 = vpow.pop %v239
    %v241 = vsel %vm129, %v238, 0.0
    %242 = vadd.xlane.f32.xlu0 %v241
    %v243 = vpop.xlane.xlu0 %242
    %v244 = vsel %vm129, %v240, 0.0
    %245 = vadd.xlane.f32.xlu0 %v244
    %v246 = vpop.xlane.xlu0 %245
    %v247 = vrcp.pop %v243
    %v248 = vmul.f32 %v238, %v247
    %v249 = vrcp.pop %v246
    %v250 = vmul.f32 %v240, %v249
    %v251 = vpack.c.bf16 %v248, %v248
    %v252 = vpack.c.bf16 %v250, %v250
    %253 = vrot.lane.b32.xlu0 %v124, 64
    %v254 = vpop.permute.xlu0 %253
    %v256 = vsel %vm129, %v251, 0
    %vm258 = vcmask 1043456
    %v260 = vsel %vm258, %v254, 0
    %262 = vmatprep.subr.bf16.mxu0 0
    %263 = vmatpush1.bf16.msra.mxu0 0
    %264 = vmatprep.subr.bf16.mxu0 0
    %265 = vmatpush1.bf16.msra.mxu0 0
    %266 = vmatprep.subr.bf16.mxu0 0
    %267 = vmatpush1.bf16.msra.mxu0 0
    %268 = vmatprep.subr.bf16.mxu0 0
    %269 = vmatpush1.bf16.msra.mxu0 0
    %270 = vmatprep.subr.bf16.mxu0 0
    %271 = vmatpush1.bf16.msra.mxu0 0
    %272 = vmatprep.subr.bf16.mxu0 0
    %273 = vmatpush1.bf16.msra.mxu0 0
    %274 = vmatprep.subr.bf16.mxu0 0
    %275 = vmatpush1.bf16.msra.mxu0 0
    %276 = vmatprep.subr.bf16.mxu0 0
    %277 = vmatpush1.bf16.msra.mxu0 %v260
    %278 = vmatprep.subr.bf16.mxu0 0
    %279 = vmatpush2.bf16.msra.mxu0 0
    %280 = vmatprep.subr.bf16.mxu0 0
    %281 = vmatpush2.bf16.msra.mxu0 0
    %282 = vmatprep.subr.bf16.mxu0 0
    %283 = vmatpush2.bf16.msra.mxu0 0
    %284 = vmatprep.subr.bf16.mxu0 0
    %285 = vmatpush2.bf16.msra.mxu0 0
    %286 = vmatprep.subr.bf16.mxu0 0
    %287 = vmatpush2.bf16.msra.mxu0 0
    %288 = vmatprep.subr.bf16.mxu0 0
    %289 = vmatpush2.bf16.msra.mxu0 0
    %290 = vmatprep.subr.bf16.mxu0 0
    %291 = vmatpush2.bf16.msra.mxu0 0
    %292 = vmatprep.subr.bf16.mxu0 0
    %293 = vmatpush2.bf16.msra.mxu0 0
    %294 = vmatprep.mubr.bf16.mxu0 0
    %295 = vmatmul.mubr.bf16.gmra.mxu0 %v256
    %v296 = vpop.f32.mrf.mxu0
    %v297 = vadd.f32 0.0, %v296
    %v298 = vpop.f32.mrf.mxu0
    %v299 = vpop.f32.mrf.mxu0
    %v300 = vpop.f32.mrf.mxu0
    %301 = vdwg.mxu0
    %302 = vrot.lane.b32.xlu0 %v125, 64
    %v303 = vpop.permute.xlu0 %302
    %v305 = vsel %vm129, %v252, 0
    %v308 = vsel %vm258, %v303, 0
    %310 = vmatprep.subr.bf16.mxu0 0
    %311 = vmatpush1.bf16.msra.mxu0 0
    %312 = vmatprep.subr.bf16.mxu0 0
    %313 = vmatpush1.bf16.msra.mxu0 0
    %314 = vmatprep.subr.bf16.mxu0 0
    %315 = vmatpush1.bf16.msra.mxu0 0
    %316 = vmatprep.subr.bf16.mxu0 0
    %317 = vmatpush1.bf16.msra.mxu0 0
    %318 = vmatprep.subr.bf16.mxu0 0
    %319 = vmatpush1.bf16.msra.mxu0 0
    %320 = vmatprep.subr.bf16.mxu0 0
    %321 = vmatpush1.bf16.msra.mxu0 0
    %322 = vmatprep.subr.bf16.mxu0 0
    %323 = vmatpush1.bf16.msra.mxu0 0
    %324 = vmatprep.subr.bf16.mxu0 0
    %325 = vmatpush1.bf16.msra.mxu0 %v308
    %326 = vmatprep.subr.bf16.mxu0 0
    %327 = vmatpush2.bf16.msra.mxu0 0
    %328 = vmatprep.subr.bf16.mxu0 0
    %329 = vmatpush2.bf16.msra.mxu0 0
    %330 = vmatprep.subr.bf16.mxu0 0
    %331 = vmatpush2.bf16.msra.mxu0 0
    %332 = vmatprep.subr.bf16.mxu0 0
    %333 = vmatpush2.bf16.msra.mxu0 0
    %334 = vmatprep.subr.bf16.mxu0 0
    %335 = vmatpush2.bf16.msra.mxu0 0
    %336 = vmatprep.subr.bf16.mxu0 0
    %337 = vmatpush2.bf16.msra.mxu0 0
    %338 = vmatprep.subr.bf16.mxu0 0
    %339 = vmatpush2.bf16.msra.mxu0 0
    %340 = vmatprep.subr.bf16.mxu0 0
    %341 = vmatpush2.bf16.msra.mxu0 0
    %342 = vmatprep.mubr.bf16.mxu0 0
    %343 = vmatmul.mubr.bf16.gmra.mxu0 %v305
    %v344 = vpop.f32.mrf.mxu0
    %v345 = vadd.f32 0.0, %v344
    %v346 = vpop.f32.mrf.mxu0
    %v347 = vpop.f32.mrf.mxu0
    %v348 = vpop.f32.mrf.mxu0
    %349 = vdwg.mxu0
    %350 = vrot.lane.b32.xlu0 %v124, 120
    %v351 = vpop.permute.xlu0 %350
    %352 = vrot.lane.b32.xlu0 %v124, 88
    %v353 = vpop.permute.xlu0 %352
    %v355 = vsel %vm129, %v351, 0
    %v358 = vsel %vm129, %v353, 0
    %360 = vmatprep.subr.bf16.mxu0 0
    %361 = vmatpush1.bf16.xpose.msra.mxu0 0
    %362 = vmatprep.subr.bf16.mxu0 0
    %363 = vmatpush1.bf16.xpose.msra.mxu0 0
    %364 = vmatprep.subr.bf16.mxu0 0
    %365 = vmatpush1.bf16.xpose.msra.mxu0 0
    %366 = vmatprep.subr.bf16.mxu0 0
    %367 = vmatpush1.bf16.xpose.msra.mxu0 0
    %368 = vmatprep.subr.bf16.mxu0 0
    %369 = vmatpush1.bf16.xpose.msra.mxu0 0
    %370 = vmatprep.subr.bf16.mxu0 0
    %371 = vmatpush1.bf16.xpose.msra.mxu0 0
    %372 = vmatprep.subr.bf16.mxu0 0
    %373 = vmatpush1.bf16.xpose.msra.mxu0 0
    %374 = vmatprep.subr.bf16.mxu0 0
    %375 = vmatpush1.bf16.xpose.msra.mxu0 %v358
    %376 = vmatprep.subr.bf16.mxu0 0
    %377 = vmatpush2.bf16.xpose.msra.mxu0 0
    %378 = vmatprep.subr.bf16.mxu0 0
    %379 = vmatpush2.bf16.xpose.msra.mxu0 0
    %380 = vmatprep.subr.bf16.mxu0 0
    %381 = vmatpush2.bf16.xpose.msra.mxu0 0
    %382 = vmatprep.subr.bf16.mxu0 0
    %383 = vmatpush2.bf16.xpose.msra.mxu0 0
    %384 = vmatprep.subr.bf16.mxu0 0
    %385 = vmatpush2.bf16.xpose.msra.mxu0 0
    %386 = vmatprep.subr.bf16.mxu0 0
    %387 = vmatpush2.bf16.xpose.msra.mxu0 0
    %388 = vmatprep.subr.bf16.mxu0 0
    %389 = vmatpush2.bf16.xpose.msra.mxu0 0
    %390 = vmatprep.subr.bf16.mxu0 0
    %391 = vmatpush2.bf16.xpose.msra.mxu0 0
    %392 = vmatprep.mubr.bf16.mxu0 0
    %393 = vmatmul.mubr.bf16.gmra.mxu0 %v355
    %v394 = vpop.f32.mrf.mxu0
    %v395 = vadd.f32 0.0, %v394
    %v396 = vpop.f32.mrf.mxu0
    %v397 = vpop.f32.mrf.mxu0
    %v398 = vpop.f32.mrf.mxu0
    %399 = vdwg.mxu0
    %400 = vrot.lane.b32.xlu0 %v125, 120
    %v401 = vpop.permute.xlu0 %400
    %402 = vrot.lane.b32.xlu0 %v125, 88
    %v403 = vpop.permute.xlu0 %402
    %v405 = vsel %vm129, %v401, 0
    %v408 = vsel %vm129, %v403, 0
    %410 = vmatprep.subr.bf16.mxu0 0
    %411 = vmatpush1.bf16.xpose.msra.mxu0 0
    %412 = vmatprep.subr.bf16.mxu0 0
    %413 = vmatpush1.bf16.xpose.msra.mxu0 0
    %414 = vmatprep.subr.bf16.mxu0 0
    %415 = vmatpush1.bf16.xpose.msra.mxu0 0
    %416 = vmatprep.subr.bf16.mxu0 0
    %417 = vmatpush1.bf16.xpose.msra.mxu0 0
    %418 = vmatprep.subr.bf16.mxu0 0
    %419 = vmatpush1.bf16.xpose.msra.mxu0 0
    %420 = vmatprep.subr.bf16.mxu0 0
    %421 = vmatpush1.bf16.xpose.msra.mxu0 0
    %422 = vmatprep.subr.bf16.mxu0 0
    %423 = vmatpush1.bf16.xpose.msra.mxu0 0
    %424 = vmatprep.subr.bf16.mxu0 0
    %425 = vmatpush1.bf16.xpose.msra.mxu0 %v408
    %426 = vmatprep.subr.bf16.mxu0 0
    %427 = vmatpush2.bf16.xpose.msra.mxu0 0
    %428 = vmatprep.subr.bf16.mxu0 0
    %429 = vmatpush2.bf16.xpose.msra.mxu0 0
    %430 = vmatprep.subr.bf16.mxu0 0
    %431 = vmatpush2.bf16.xpose.msra.mxu0 0
    %432 = vmatprep.subr.bf16.mxu0 0
    %433 = vmatpush2.bf16.xpose.msra.mxu0 0
    %434 = vmatprep.subr.bf16.mxu0 0
    %435 = vmatpush2.bf16.xpose.msra.mxu0 0
    %436 = vmatprep.subr.bf16.mxu0 0
    %437 = vmatpush2.bf16.xpose.msra.mxu0 0
    %438 = vmatprep.subr.bf16.mxu0 0
    %439 = vmatpush2.bf16.xpose.msra.mxu0 0
    %440 = vmatprep.subr.bf16.mxu0 0
    %441 = vmatpush2.bf16.xpose.msra.mxu0 0
    %442 = vmatprep.mubr.bf16.mxu0 0
    %443 = vmatmul.mubr.bf16.gmra.mxu0 %v405
    %v444 = vpop.f32.mrf.mxu0
    %v445 = vadd.f32 0.0, %v444
    %v446 = vpop.f32.mrf.mxu0
    %v447 = vpop.f32.mrf.mxu0
    %v448 = vpop.f32.mrf.mxu0
    %449 = vdwg.mxu0
    %v450 = vmul.f32 %v395, 0.35355338
    %v451 = vmul.f32 %v445, 0.35355338
    %v452 = vsel %vm58, %v450, -1000000.0
    %v453 = vsel %vm59, %v451, -1000000.0
    %v454 = vsel %vm129, %v452, -inf
    %455 = vmax.xlane.f32.xlu0 %v454
    %v456 = vpop.xlane.xlu0 %455
    %v457 = vsel %vm129, %v453, -inf
    %458 = vmax.xlane.f32.xlu0 %v457
    %v459 = vpop.xlane.xlu0 %458
    %v460 = vsub.f32 %v452, %v456
    %v461 = vsub.f32 %v453, %v459
    %v462 = vmul.f32 %v460, 1.442695
    %v463 = vpow.pop %v462
    %v464 = vmul.f32 %v461, 1.442695
    %v465 = vpow.pop %v464
    %v466 = vsel %vm129, %v463, 0.0
    %467 = vadd.xlane.f32.xlu0 %v466
    %v468 = vpop.xlane.xlu0 %467
    %v469 = vsel %vm129, %v465, 0.0
    %470 = vadd.xlane.f32.xlu0 %v469
    %v471 = vpop.xlane.xlu0 %470
    %v472 = vrcp.pop %v468
    %v473 = vmul.f32 %v463, %v472
    %v474 = vrcp.pop %v471
    %v475 = vmul.f32 %v465, %v474
    %v476 = vpack.c.bf16 %v473, %v473
    %v477 = vpack.c.bf16 %v475, %v475
    %478 = vrot.lane.b32.xlu0 %v124, 56
    %v479 = vpop.permute.xlu0 %478
    %v481 = vsel %vm129, %v476, 0
    %v484 = vsel %vm258, %v479, 0
    %486 = vmatprep.subr.bf16.mxu0 0
    %487 = vmatpush1.bf16.msra.mxu0 0
    %488 = vmatprep.subr.bf16.mxu0 0
    %489 = vmatpush1.bf16.msra.mxu0 0
    %490 = vmatprep.subr.bf16.mxu0 0
    %491 = vmatpush1.bf16.msra.mxu0 0
    %492 = vmatprep.subr.bf16.mxu0 0
    %493 = vmatpush1.bf16.msra.mxu0 0
    %494 = vmatprep.subr.bf16.mxu0 0
    %495 = vmatpush1.bf16.msra.mxu0 0
    %496 = vmatprep.subr.bf16.mxu0 0
    %497 = vmatpush1.bf16.msra.mxu0 0
    %498 = vmatprep.subr.bf16.mxu0 0
    %499 = vmatpush1.bf16.msra.mxu0 0
    %500 = vmatprep.subr.bf16.mxu0 0
    %501 = vmatpush1.bf16.msra.mxu0 %v484
    %502 = vmatprep.subr.bf16.mxu0 0
    %503 = vmatpush2.bf16.msra.mxu0 0
    %504 = vmatprep.subr.bf16.mxu0 0
    %505 = vmatpush2.bf16.msra.mxu0 0
    %506 = vmatprep.subr.bf16.mxu0 0
    %507 = vmatpush2.bf16.msra.mxu0 0
    %508 = vmatprep.subr.bf16.mxu0 0
    %509 = vmatpush2.bf16.msra.mxu0 0
    %510 = vmatprep.subr.bf16.mxu0 0
    %511 = vmatpush2.bf16.msra.mxu0 0
    %512 = vmatprep.subr.bf16.mxu0 0
    %513 = vmatpush2.bf16.msra.mxu0 0
    %514 = vmatprep.subr.bf16.mxu0 0
    %515 = vmatpush2.bf16.msra.mxu0 0
    %516 = vmatprep.subr.bf16.mxu0 0
    %517 = vmatpush2.bf16.msra.mxu0 0
    %518 = vmatprep.mubr.bf16.mxu0 0
    %519 = vmatmul.mubr.bf16.gmra.mxu0 %v481
    %v520 = vpop.f32.mrf.mxu0
    %v521 = vadd.f32 0.0, %v520
    %v522 = vpop.f32.mrf.mxu0
    %v523 = vpop.f32.mrf.mxu0
    %v524 = vpop.f32.mrf.mxu0
    %525 = vdwg.mxu0
    %526 = vrot.lane.b32.xlu0 %v125, 56
    %v527 = vpop.permute.xlu0 %526
    %v529 = vsel %vm129, %v477, 0
    %v532 = vsel %vm258, %v527, 0
    %534 = vmatprep.subr.bf16.mxu0 0
    %535 = vmatpush1.bf16.msra.mxu0 0
    %536 = vmatprep.subr.bf16.mxu0 0
    %537 = vmatpush1.bf16.msra.mxu0 0
    %538 = vmatprep.subr.bf16.mxu0 0
    %539 = vmatpush1.bf16.msra.mxu0 0
    %540 = vmatprep.subr.bf16.mxu0 0
    %541 = vmatpush1.bf16.msra.mxu0 0
    %542 = vmatprep.subr.bf16.mxu0 0
    %543 = vmatpush1.bf16.msra.mxu0 0
    %544 = vmatprep.subr.bf16.mxu0 0
    %545 = vmatpush1.bf16.msra.mxu0 0
    %546 = vmatprep.subr.bf16.mxu0 0
    %547 = vmatpush1.bf16.msra.mxu0 0
    %548 = vmatprep.subr.bf16.mxu0 0
    %549 = vmatpush1.bf16.msra.mxu0 %v532
    %550 = vmatprep.subr.bf16.mxu0 0
    %551 = vmatpush2.bf16.msra.mxu0 0
    %552 = vmatprep.subr.bf16.mxu0 0
    %553 = vmatpush2.bf16.msra.mxu0 0
    %554 = vmatprep.subr.bf16.mxu0 0
    %555 = vmatpush2.bf16.msra.mxu0 0
    %556 = vmatprep.subr.bf16.mxu0 0
    %557 = vmatpush2.bf16.msra.mxu0 0
    %558 = vmatprep.subr.bf16.mxu0 0
    %559 = vmatpush2.bf16.msra.mxu0 0
    %560 = vmatprep.subr.bf16.mxu0 0
    %561 = vmatpush2.bf16.msra.mxu0 0
    %562 = vmatprep.subr.bf16.mxu0 0
    %563 = vmatpush2.bf16.msra.mxu0 0
    %564 = vmatprep.subr.bf16.mxu0 0
    %565 = vmatpush2.bf16.msra.mxu0 0
    %566 = vmatprep.mubr.bf16.mxu0 0
    %567 = vmatmul.mubr.bf16.gmra.mxu0 %v529
    %v568 = vpop.f32.mrf.mxu0
    %v569 = vadd.f32 0.0, %v568
    %v570 = vpop.f32.mrf.mxu0
    %v571 = vpop.f32.mrf.mxu0
    %v572 = vpop.f32.mrf.mxu0
    %573 = vdwg.mxu0
    %574 = vrot.lane.b32.xlu0 %v124, 112
    %v575 = vpop.permute.xlu0 %574
    %576 = vrot.lane.b32.xlu0 %v124, 80
    %v577 = vpop.permute.xlu0 %576
    %v579 = vsel %vm129, %v575, 0
    %v582 = vsel %vm129, %v577, 0
    %584 = vmatprep.subr.bf16.mxu0 0
    %585 = vmatpush1.bf16.xpose.msra.mxu0 0
    %586 = vmatprep.subr.bf16.mxu0 0
    %587 = vmatpush1.bf16.xpose.msra.mxu0 0
    %588 = vmatprep.subr.bf16.mxu0 0
    %589 = vmatpush1.bf16.xpose.msra.mxu0 0
    %590 = vmatprep.subr.bf16.mxu0 0
    %591 = vmatpush1.bf16.xpose.msra.mxu0 0
    %592 = vmatprep.subr.bf16.mxu0 0
    %593 = vmatpush1.bf16.xpose.msra.mxu0 0
    %594 = vmatprep.subr.bf16.mxu0 0
    %595 = vmatpush1.bf16.xpose.msra.mxu0 0
    %596 = vmatprep.subr.bf16.mxu0 0
    %597 = vmatpush1.bf16.xpose.msra.mxu0 0
    %598 = vmatprep.subr.bf16.mxu0 0
    %599 = vmatpush1.bf16.xpose.msra.mxu0 %v582
    %600 = vmatprep.subr.bf16.mxu0 0
    %601 = vmatpush2.bf16.xpose.msra.mxu0 0
    %602 = vmatprep.subr.bf16.mxu0 0
    %603 = vmatpush2.bf16.xpose.msra.mxu0 0
    %604 = vmatprep.subr.bf16.mxu0 0
    %605 = vmatpush2.bf16.xpose.msra.mxu0 0
    %606 = vmatprep.subr.bf16.mxu0 0
    %607 = vmatpush2.bf16.xpose.msra.mxu0 0
    %608 = vmatprep.subr.bf16.mxu0 0
    %609 = vmatpush2.bf16.xpose.msra.mxu0 0
    %610 = vmatprep.subr.bf16.mxu0 0
    %611 = vmatpush2.bf16.xpose.msra.mxu0 0
    %612 = vmatprep.subr.bf16.mxu0 0
    %613 = vmatpush2.bf16.xpose.msra.mxu0 0
    %614 = vmatprep.subr.bf16.mxu0 0
    %615 = vmatpush2.bf16.xpose.msra.mxu0 0
    %616 = vmatprep.mubr.bf16.mxu0 0
    %617 = vmatmul.mubr.bf16.gmra.mxu0 %v579
    %v618 = vpop.f32.mrf.mxu0
    %v619 = vadd.f32 0.0, %v618
    %v620 = vpop.f32.mrf.mxu0
    %v621 = vpop.f32.mrf.mxu0
    %v622 = vpop.f32.mrf.mxu0
    %623 = vdwg.mxu0
    %624 = vrot.lane.b32.xlu0 %v125, 112
    %v625 = vpop.permute.xlu0 %624
    %626 = vrot.lane.b32.xlu0 %v125, 80
    %v627 = vpop.permute.xlu0 %626
    %v629 = vsel %vm129, %v625, 0
    %v632 = vsel %vm129, %v627, 0
    %634 = vmatprep.subr.bf16.mxu0 0
    %635 = vmatpush1.bf16.xpose.msra.mxu0 0
    %636 = vmatprep.subr.bf16.mxu0 0
    %637 = vmatpush1.bf16.xpose.msra.mxu0 0
    %638 = vmatprep.subr.bf16.mxu0 0
    %639 = vmatpush1.bf16.xpose.msra.mxu0 0
    %640 = vmatprep.subr.bf16.mxu0 0
    %641 = vmatpush1.bf16.xpose.msra.mxu0 0
    %642 = vmatprep.subr.bf16.mxu0 0
    %643 = vmatpush1.bf16.xpose.msra.mxu0 0
    %644 = vmatprep.subr.bf16.mxu0 0
    %645 = vmatpush1.bf16.xpose.msra.mxu0 0
    %646 = vmatprep.subr.bf16.mxu0 0
    %647 = vmatpush1.bf16.xpose.msra.mxu0 0
    %648 = vmatprep.subr.bf16.mxu0 0
    %649 = vmatpush1.bf16.xpose.msra.mxu0 %v632
    %650 = vmatprep.subr.bf16.mxu0 0
    %651 = vmatpush2.bf16.xpose.msra.mxu0 0
    %652 = vmatprep.subr.bf16.mxu0 0
    %653 = vmatpush2.bf16.xpose.msra.mxu0 0
    %654 = vmatprep.subr.bf16.mxu0 0
    %655 = vmatpush2.bf16.xpose.msra.mxu0 0
    %656 = vmatprep.subr.bf16.mxu0 0
    %657 = vmatpush2.bf16.xpose.msra.mxu0 0
    %658 = vmatprep.subr.bf16.mxu0 0
    %659 = vmatpush2.bf16.xpose.msra.mxu0 0
    %660 = vmatprep.subr.bf16.mxu0 0
    %661 = vmatpush2.bf16.xpose.msra.mxu0 0
    %662 = vmatprep.subr.bf16.mxu0 0
    %663 = vmatpush2.bf16.xpose.msra.mxu0 0
    %664 = vmatprep.subr.bf16.mxu0 0
    %665 = vmatpush2.bf16.xpose.msra.mxu0 0
    %666 = vmatprep.mubr.bf16.mxu0 0
    %667 = vmatmul.mubr.bf16.gmra.mxu0 %v629
    %v668 = vpop.f32.mrf.mxu0
    %v669 = vadd.f32 0.0, %v668
    %v670 = vpop.f32.mrf.mxu0
    %v671 = vpop.f32.mrf.mxu0
    %v672 = vpop.f32.mrf.mxu0
    %673 = vdwg.mxu0
    %v674 = vmul.f32 %v619, 0.35355338
    %v675 = vmul.f32 %v669, 0.35355338
    %v676 = vsel %vm58, %v674, -1000000.0
    %v677 = vsel %vm59, %v675, -1000000.0
    %v678 = vsel %vm129, %v676, -inf
    %679 = vmax.xlane.f32.xlu0 %v678
    %v680 = vpop.xlane.xlu0 %679
    %v681 = vsel %vm129, %v677, -inf
    %682 = vmax.xlane.f32.xlu0 %v681
    %v683 = vpop.xlane.xlu0 %682
    %v684 = vsub.f32 %v676, %v680
    %v685 = vsub.f32 %v677, %v683
    %v686 = vmul.f32 %v684, 1.442695
    %v687 = vpow.pop %v686
    %v688 = vmul.f32 %v685, 1.442695
    %v689 = vpow.pop %v688
    %v690 = vsel %vm129, %v687, 0.0
    %691 = vadd.xlane.f32.xlu0 %v690
    %v692 = vpop.xlane.xlu0 %691
    %v693 = vsel %vm129, %v689, 0.0
    %694 = vadd.xlane.f32.xlu0 %v693
    %v695 = vpop.xlane.xlu0 %694
    %v696 = vrcp.pop %v692
    %v697 = vmul.f32 %v687, %v696
    %v698 = vrcp.pop %v695
    %v699 = vmul.f32 %v689, %v698
    %v700 = vpack.c.bf16 %v697, %v697
    %v701 = vpack.c.bf16 %v699, %v699
    %702 = vrot.lane.b32.xlu0 %v124, 48
    %v703 = vpop.permute.xlu0 %702
    %v705 = vsel %vm129, %v700, 0
    %v708 = vsel %vm258, %v703, 0
    %710 = vmatprep.subr.bf16.mxu0 0
    %711 = vmatpush1.bf16.msra.mxu0 0
    %712 = vmatprep.subr.bf16.mxu0 0
    %713 = vmatpush1.bf16.msra.mxu0 0
    %714 = vmatprep.subr.bf16.mxu0 0
    %715 = vmatpush1.bf16.msra.mxu0 0
    %716 = vmatprep.subr.bf16.mxu0 0
    %717 = vmatpush1.bf16.msra.mxu0 0
    %718 = vmatprep.subr.bf16.mxu0 0
    %719 = vmatpush1.bf16.msra.mxu0 0
    %720 = vmatprep.subr.bf16.mxu0 0
    %721 = vmatpush1.bf16.msra.mxu0 0
    %722 = vmatprep.subr.bf16.mxu0 0
    %723 = vmatpush1.bf16.msra.mxu0 0
    %724 = vmatprep.subr.bf16.mxu0 0
    %725 = vmatpush1.bf16.msra.mxu0 %v708
    %726 = vmatprep.subr.bf16.mxu0 0
    %727 = vmatpush2.bf16.msra.mxu0 0
    %728 = vmatprep.subr.bf16.mxu0 0
    %729 = vmatpush2.bf16.msra.mxu0 0
    %730 = vmatprep.subr.bf16.mxu0 0
    %731 = vmatpush2.bf16.msra.mxu0 0
    %732 = vmatprep.subr.bf16.mxu0 0
    %733 = vmatpush2.bf16.msra.mxu0 0
    %734 = vmatprep.subr.bf16.mxu0 0
    %735 = vmatpush2.bf16.msra.mxu0 0
    %736 = vmatprep.subr.bf16.mxu0 0
    %737 = vmatpush2.bf16.msra.mxu0 0
    %738 = vmatprep.subr.bf16.mxu0 0
    %739 = vmatpush2.bf16.msra.mxu0 0
    %740 = vmatprep.subr.bf16.mxu0 0
    %741 = vmatpush2.bf16.msra.mxu0 0
    %742 = vmatprep.mubr.bf16.mxu0 0
    %743 = vmatmul.mubr.bf16.gmra.mxu0 %v705
    %v744 = vpop.f32.mrf.mxu0
    %v745 = vadd.f32 0.0, %v744
    %v746 = vpop.f32.mrf.mxu0
    %v747 = vpop.f32.mrf.mxu0
    %v748 = vpop.f32.mrf.mxu0
    %749 = vdwg.mxu0
    %750 = vrot.lane.b32.xlu0 %v125, 48
    %v751 = vpop.permute.xlu0 %750
    %v753 = vsel %vm129, %v701, 0
    %v756 = vsel %vm258, %v751, 0
    %758 = vmatprep.subr.bf16.mxu0 0
    %759 = vmatpush1.bf16.msra.mxu0 0
    %760 = vmatprep.subr.bf16.mxu0 0
    %761 = vmatpush1.bf16.msra.mxu0 0
    %762 = vmatprep.subr.bf16.mxu0 0
    %763 = vmatpush1.bf16.msra.mxu0 0
    %764 = vmatprep.subr.bf16.mxu0 0
    %765 = vmatpush1.bf16.msra.mxu0 0
    %766 = vmatprep.subr.bf16.mxu0 0
    %767 = vmatpush1.bf16.msra.mxu0 0
    %768 = vmatprep.subr.bf16.mxu0 0
    %769 = vmatpush1.bf16.msra.mxu0 0
    %770 = vmatprep.subr.bf16.mxu0 0
    %771 = vmatpush1.bf16.msra.mxu0 0
    %772 = vmatprep.subr.bf16.mxu0 0
    %773 = vmatpush1.bf16.msra.mxu0 %v756
    %774 = vmatprep.subr.bf16.mxu0 0
    %775 = vmatpush2.bf16.msra.mxu0 0
    %776 = vmatprep.subr.bf16.mxu0 0
    %777 = vmatpush2.bf16.msra.mxu0 0
    %778 = vmatprep.subr.bf16.mxu0 0
    %779 = vmatpush2.bf16.msra.mxu0 0
    %780 = vmatprep.subr.bf16.mxu0 0
    %781 = vmatpush2.bf16.msra.mxu0 0
    %782 = vmatprep.subr.bf16.mxu0 0
    %783 = vmatpush2.bf16.msra.mxu0 0
    %784 = vmatprep.subr.bf16.mxu0 0
    %785 = vmatpush2.bf16.msra.mxu0 0
    %786 = vmatprep.subr.bf16.mxu0 0
    %787 = vmatpush2.bf16.msra.mxu0 0
    %788 = vmatprep.subr.bf16.mxu0 0
    %789 = vmatpush2.bf16.msra.mxu0 0
    %790 = vmatprep.mubr.bf16.mxu0 0
    %791 = vmatmul.mubr.bf16.gmra.mxu0 %v753
    %v792 = vpop.f32.mrf.mxu0
    %v793 = vadd.f32 0.0, %v792
    %v794 = vpop.f32.mrf.mxu0
    %v795 = vpop.f32.mrf.mxu0
    %v796 = vpop.f32.mrf.mxu0
    %797 = vdwg.mxu0
    %798 = vrot.lane.b32.xlu0 %v124, 104
    %v799 = vpop.permute.xlu0 %798
    %800 = vrot.lane.b32.xlu0 %v124, 72
    %v801 = vpop.permute.xlu0 %800
    %v803 = vsel %vm129, %v799, 0
    %v806 = vsel %vm129, %v801, 0
    %808 = vmatprep.subr.bf16.mxu0 0
    %809 = vmatpush1.bf16.xpose.msra.mxu0 0
    %810 = vmatprep.subr.bf16.mxu0 0
    %811 = vmatpush1.bf16.xpose.msra.mxu0 0
    %812 = vmatprep.subr.bf16.mxu0 0
    %813 = vmatpush1.bf16.xpose.msra.mxu0 0
    %814 = vmatprep.subr.bf16.mxu0 0
    %815 = vmatpush1.bf16.xpose.msra.mxu0 0
    %816 = vmatprep.subr.bf16.mxu0 0
    %817 = vmatpush1.bf16.xpose.msra.mxu0 0
    %818 = vmatprep.subr.bf16.mxu0 0
    %819 = vmatpush1.bf16.xpose.msra.mxu0 0
    %820 = vmatprep.subr.bf16.mxu0 0
    %821 = vmatpush1.bf16.xpose.msra.mxu0 0
    %822 = vmatprep.subr.bf16.mxu0 0
    %823 = vmatpush1.bf16.xpose.msra.mxu0 %v806
    %824 = vmatprep.subr.bf16.mxu0 0
    %825 = vmatpush2.bf16.xpose.msra.mxu0 0
    %826 = vmatprep.subr.bf16.mxu0 0
    %827 = vmatpush2.bf16.xpose.msra.mxu0 0
    %828 = vmatprep.subr.bf16.mxu0 0
    %829 = vmatpush2.bf16.xpose.msra.mxu0 0
    %830 = vmatprep.subr.bf16.mxu0 0
    %831 = vmatpush2.bf16.xpose.msra.mxu0 0
    %832 = vmatprep.subr.bf16.mxu0 0
    %833 = vmatpush2.bf16.xpose.msra.mxu0 0
    %834 = vmatprep.subr.bf16.mxu0 0
    %835 = vmatpush2.bf16.xpose.msra.mxu0 0
    %836 = vmatprep.subr.bf16.mxu0 0
    %837 = vmatpush2.bf16.xpose.msra.mxu0 0
    %838 = vmatprep.subr.bf16.mxu0 0
    %839 = vmatpush2.bf16.xpose.msra.mxu0 0
    %840 = vmatprep.mubr.bf16.mxu0 0
    %841 = vmatmul.mubr.bf16.gmra.mxu0 %v803
    %v842 = vpop.f32.mrf.mxu0
    %v843 = vadd.f32 0.0, %v842
    %v844 = vpop.f32.mrf.mxu0
    %v845 = vpop.f32.mrf.mxu0
    %v846 = vpop.f32.mrf.mxu0
    %847 = vdwg.mxu0
    %848 = vrot.lane.b32.xlu0 %v125, 104
    %v849 = vpop.permute.xlu0 %848
    %850 = vrot.lane.b32.xlu0 %v125, 72
    %v851 = vpop.permute.xlu0 %850
    %v853 = vsel %vm129, %v849, 0
    %v856 = vsel %vm129, %v851, 0
    %858 = vmatprep.subr.bf16.mxu0 0
    %859 = vmatpush1.bf16.xpose.msra.mxu0 0
    %860 = vmatprep.subr.bf16.mxu0 0
    %861 = vmatpush1.bf16.xpose.msra.mxu0 0
    %862 = vmatprep.subr.bf16.mxu0 0
    %863 = vmatpush1.bf16.xpose.msra.mxu0 0
    %864 = vmatprep.subr.bf16.mxu0 0
    %865 = vmatpush1.bf16.xpose.msra.mxu0 0
    %866 = vmatprep.subr.bf16.mxu0 0
    %867 = vmatpush1.bf16.xpose.msra.mxu0 0
    %868 = vmatprep.subr.bf16.mxu0 0
    %869 = vmatpush1.bf16.xpose.msra.mxu0 0
    %870 = vmatprep.subr.bf16.mxu0 0
    %871 = vmatpush1.bf16.xpose.msra.mxu0 0
    %872 = vmatprep.subr.bf16.mxu0 0
    %873 = vmatpush1.bf16.xpose.msra.mxu0 %v856
    %874 = vmatprep.subr.bf16.mxu0 0
    %875 = vmatpush2.bf16.xpose.msra.mxu0 0
    %876 = vmatprep.subr.bf16.mxu0 0
    %877 = vmatpush2.bf16.xpose.msra.mxu0 0
    %878 = vmatprep.subr.bf16.mxu0 0
    %879 = vmatpush2.bf16.xpose.msra.mxu0 0
    %880 = vmatprep.subr.bf16.mxu0 0
    %881 = vmatpush2.bf16.xpose.msra.mxu0 0
    %882 = vmatprep.subr.bf16.mxu0 0
    %883 = vmatpush2.bf16.xpose.msra.mxu0 0
    %884 = vmatprep.subr.bf16.mxu0 0
    %885 = vmatpush2.bf16.xpose.msra.mxu0 0
    %886 = vmatprep.subr.bf16.mxu0 0
    %887 = vmatpush2.bf16.xpose.msra.mxu0 0
    %888 = vmatprep.subr.bf16.mxu0 0
    %889 = vmatpush2.bf16.xpose.msra.mxu0 0
    %890 = vmatprep.mubr.bf16.mxu0 0
    %891 = vmatmul.mubr.bf16.gmra.mxu0 %v853
    %v892 = vpop.f32.mrf.mxu0
    %v893 = vadd.f32 0.0, %v892
    %v894 = vpop.f32.mrf.mxu0
    %v895 = vpop.f32.mrf.mxu0
    %v896 = vpop.f32.mrf.mxu0
    %897 = vdwg.mxu0
    %v898 = vmul.f32 %v843, 0.35355338
    %v899 = vmul.f32 %v893, 0.35355338
    %v900 = vsel %vm58, %v898, -1000000.0
    %v901 = vsel %vm59, %v899, -1000000.0
    %v902 = vsel %vm129, %v900, -inf
    %903 = vmax.xlane.f32.xlu0 %v902
    %v904 = vpop.xlane.xlu0 %903
    %v905 = vsel %vm129, %v901, -inf
    %906 = vmax.xlane.f32.xlu0 %v905
    %v907 = vpop.xlane.xlu0 %906
    %v908 = vsub.f32 %v900, %v904
    %v909 = vsub.f32 %v901, %v907
    %v910 = vmul.f32 %v908, 1.442695
    %v911 = vpow.pop %v910
    %v912 = vmul.f32 %v909, 1.442695
    %v913 = vpow.pop %v912
    %v914 = vsel %vm129, %v911, 0.0
    %915 = vadd.xlane.f32.xlu0 %v914
    %v916 = vpop.xlane.xlu0 %915
    %v917 = vsel %vm129, %v913, 0.0
    %918 = vadd.xlane.f32.xlu0 %v917
    %v919 = vpop.xlane.xlu0 %918
    %v920 = vrcp.pop %v916
    %v921 = vmul.f32 %v911, %v920
    %v922 = vrcp.pop %v919
    %v923 = vmul.f32 %v913, %v922
    %v924 = vpack.c.bf16 %v921, %v921
    %v925 = vpack.c.bf16 %v923, %v923
    %926 = vrot.lane.b32.xlu0 %v124, 40
    %v927 = vpop.permute.xlu0 %926
    %v929 = vsel %vm129, %v924, 0
    %v932 = vsel %vm258, %v927, 0
    %934 = vmatprep.subr.bf16.mxu0 0
    %935 = vmatpush1.bf16.msra.mxu0 0
    %936 = vmatprep.subr.bf16.mxu0 0
    %937 = vmatpush1.bf16.msra.mxu0 0
    %938 = vmatprep.subr.bf16.mxu0 0
    %939 = vmatpush1.bf16.msra.mxu0 0
    %940 = vmatprep.subr.bf16.mxu0 0
    %941 = vmatpush1.bf16.msra.mxu0 0
    %942 = vmatprep.subr.bf16.mxu0 0
    %943 = vmatpush1.bf16.msra.mxu0 0
    %944 = vmatprep.subr.bf16.mxu0 0
    %945 = vmatpush1.bf16.msra.mxu0 0
    %946 = vmatprep.subr.bf16.mxu0 0
    %947 = vmatpush1.bf16.msra.mxu0 0
    %948 = vmatprep.subr.bf16.mxu0 0
    %949 = vmatpush1.bf16.msra.mxu0 %v932
    %950 = vmatprep.subr.bf16.mxu0 0
    %951 = vmatpush2.bf16.msra.mxu0 0
    %952 = vmatprep.subr.bf16.mxu0 0
    %953 = vmatpush2.bf16.msra.mxu0 0
    %954 = vmatprep.subr.bf16.mxu0 0
    %955 = vmatpush2.bf16.msra.mxu0 0
    %956 = vmatprep.subr.bf16.mxu0 0
    %957 = vmatpush2.bf16.msra.mxu0 0
    %958 = vmatprep.subr.bf16.mxu0 0
    %959 = vmatpush2.bf16.msra.mxu0 0
    %960 = vmatprep.subr.bf16.mxu0 0
    %961 = vmatpush2.bf16.msra.mxu0 0
    %962 = vmatprep.subr.bf16.mxu0 0
    %963 = vmatpush2.bf16.msra.mxu0 0
    %964 = vmatprep.subr.bf16.mxu0 0
    %965 = vmatpush2.bf16.msra.mxu0 0
    %966 = vmatprep.mubr.bf16.mxu0 0
    %967 = vmatmul.mubr.bf16.gmra.mxu0 %v929
    %v968 = vpop.f32.mrf.mxu0
    %v969 = vadd.f32 0.0, %v968
    %v970 = vpop.f32.mrf.mxu0
    %v971 = vpop.f32.mrf.mxu0
    %v972 = vpop.f32.mrf.mxu0
    %973 = vdwg.mxu0
    %974 = vrot.lane.b32.xlu0 %v125, 40
    %v975 = vpop.permute.xlu0 %974
    %v977 = vsel %vm129, %v925, 0
    %v980 = vsel %vm258, %v975, 0
    %982 = vmatprep.subr.bf16.mxu0 0
    %983 = vmatpush1.bf16.msra.mxu0 0
    %984 = vmatprep.subr.bf16.mxu0 0
    %985 = vmatpush1.bf16.msra.mxu0 0
    %986 = vmatprep.subr.bf16.mxu0 0
    %987 = vmatpush1.bf16.msra.mxu0 0
    %988 = vmatprep.subr.bf16.mxu0 0
    %989 = vmatpush1.bf16.msra.mxu0 0
    %990 = vmatprep.subr.bf16.mxu0 0
    %991 = vmatpush1.bf16.msra.mxu0 0
    %992 = vmatprep.subr.bf16.mxu0 0
    %993 = vmatpush1.bf16.msra.mxu0 0
    %994 = vmatprep.subr.bf16.mxu0 0
    %995 = vmatpush1.bf16.msra.mxu0 0
    %996 = vmatprep.subr.bf16.mxu0 0
    %997 = vmatpush1.bf16.msra.mxu0 %v980
    %998 = vmatprep.subr.bf16.mxu0 0
    %999 = vmatpush2.bf16.msra.mxu0 0
    %1000 = vmatprep.subr.bf16.mxu0 0
    %1001 = vmatpush2.bf16.msra.mxu0 0
    %1002 = vmatprep.subr.bf16.mxu0 0
    %1003 = vmatpush2.bf16.msra.mxu0 0
    %1004 = vmatprep.subr.bf16.mxu0 0
    %1005 = vmatpush2.bf16.msra.mxu0 0
    %1006 = vmatprep.subr.bf16.mxu0 0
    %1007 = vmatpush2.bf16.msra.mxu0 0
    %1008 = vmatprep.subr.bf16.mxu0 0
    %1009 = vmatpush2.bf16.msra.mxu0 0
    %1010 = vmatprep.subr.bf16.mxu0 0
    %1011 = vmatpush2.bf16.msra.mxu0 0
    %1012 = vmatprep.subr.bf16.mxu0 0
    %1013 = vmatpush2.bf16.msra.mxu0 0
    %1014 = vmatprep.mubr.bf16.mxu0 0
    %1015 = vmatmul.mubr.bf16.gmra.mxu0 %v977
    %v1016 = vpop.f32.mrf.mxu0
    %v1017 = vadd.f32 0.0, %v1016
    %v1018 = vpop.f32.mrf.mxu0
    %v1019 = vpop.f32.mrf.mxu0
    %v1020 = vpop.f32.mrf.mxu0
    %1021 = vdwg.mxu0
    %1024 = vrot.lane.b32.xlu0 %v521, 8
    %v1025 = vpop.permute.xlu0 %1024
    %1026 = vrot.lane.b32.xlu0 %v569, 8
    %v1027 = vpop.permute.xlu0 %1026
    %1032 = vrot.lane.b32.xlu0 %v745, 16
    %v1033 = vpop.permute.xlu0 %1032
    %1034 = vrot.lane.b32.xlu0 %v793, 16
    %v1035 = vpop.permute.xlu0 %1034
    %1040 = vrot.lane.b32.xlu0 %v969, 24
    %v1041 = vpop.permute.xlu0 %1040
    %1042 = vrot.lane.b32.xlu0 %v1017, 24
    %v1043 = vpop.permute.xlu0 %1042
    %v1046 = vsel %vm129, %v297, %v1025
    %v1047 = vsel %vm129, %v345, %v1027
    %vm1048 = vcmask 130048
    %v1049 = vsel %vm1048, %v1046, %v1033
    %v1050 = vsel %vm1048, %v1047, %v1035
    %vm1051 = vcmask 195584
    %v1052 = vsel %vm1051, %v1049, %v1041
    %v1053 = vsel %vm1051, %v1050, %v1043
    %v1054 = vpack.c.bf16 %v1053, %v1052
    %v1055 = vld [vmem:[%s3] sm:$0xf]
    %v1056 = vld [vmem:[%s3 + $0x4] sm:$0xf]
    %v1057 = vld [vmem:[%s3 + $0x8] sm:$0xf]
    %v1058 = vld [vmem:[%s3 + $0xc] sm:$0xf]
    %v1063 = vunpack.c.l.b16 %v1055
    %v1064 = vunpack.c.l.b16 %v1056
    %v1065 = vunpack.c.l.b16 %v1057
    %v1066 = vunpack.c.l.b16 %v1058
    %v1067 = vpack.c.b16 %v1064, %v1063
    %v1068 = vpack.c.b16 %v1066, %v1065
    %v1072 = vsel %vm79, %v1054, 0
    %1074 = vmatprep.subr.bf16.mxu0 0
    %1075 = vmatpush1.bf16.msra.mxu0 0
    %1076 = vmatprep.subr.bf16.mxu0 0
    %1077 = vmatpush1.bf16.msra.mxu0 0
    %1078 = vmatprep.subr.bf16.mxu0 0
    %1079 = vmatpush1.bf16.msra.mxu0 0
    %1080 = vmatprep.subr.bf16.mxu0 0
    %1081 = vmatpush1.bf16.msra.mxu0 0
    %1082 = vmatprep.subr.bf16.mxu0 0
    %1083 = vmatpush1.bf16.msra.mxu0 0
    %1084 = vmatprep.subr.bf16.mxu0 0
    %1085 = vmatpush1.bf16.msra.mxu0 0
    %1086 = vmatprep.subr.bf16.mxu0 0
    %1087 = vmatpush1.bf16.msra.mxu0 %v1068
    %1088 = vmatprep.subr.bf16.mxu0 0
    %1089 = vmatpush1.bf16.msra.mxu0 %v1067
    %1090 = vmatprep.subr.bf16.mxu0 0
    %1091 = vmatpush2.bf16.msra.mxu0 0
    %1092 = vmatprep.subr.bf16.mxu0 0
    %1093 = vmatpush2.bf16.msra.mxu0 0
    %1094 = vmatprep.subr.bf16.mxu0 0
    %1095 = vmatpush2.bf16.msra.mxu0 0
    %1096 = vmatprep.subr.bf16.mxu0 0
    %1097 = vmatpush2.bf16.msra.mxu0 0
    %1098 = vmatprep.subr.bf16.mxu0 0
    %1099 = vmatpush2.bf16.msra.mxu0 0
    %1100 = vmatprep.subr.bf16.mxu0 0
    %1101 = vmatpush2.bf16.msra.mxu0 0
    %1102 = vmatprep.subr.bf16.mxu0 0
    %1103 = vmatpush2.bf16.msra.mxu0 0
    %1104 = vmatprep.subr.bf16.mxu0 0
    %1105 = vmatpush2.bf16.msra.mxu0 0
    %1106 = vmatprep.mubr.bf16.mxu0 0
    %1107 = vmatmul.mubr.bf16.gmra.mxu0 %v1072
    %v1108 = vpop.f32.mrf.mxu0
    %v1109 = vadd.f32 0.0, %v1108
    %v1110 = vpop.f32.mrf.mxu0
    %v1111 = vpop.f32.mrf.mxu0
    %v1112 = vadd.f32 0.0, %v1111
    %v1113 = vpop.f32.mrf.mxu0
    %1114 = vdwg.mxu0
    %v1115 = vld [vmem:[%s6] sm:$0x3f]
    %v1116 = vadd.f32 %v60, %v1109
    %v1117 = vadd.f32 %v61, %v1112
    %v1118 = vsel %vm79, %v1116, 0.0
    %1119 = vadd.xlane.f32.xlu0 %v1118
    %v1120 = vpop.xlane.xlu0 %1119
    %v1121 = vsel %vm79, %v1117, 0.0
    %1122 = vadd.xlane.f32.xlu0 %v1121
    %v1123 = vpop.xlane.xlu0 %1122
    %v1124 = vrcp.pop 32.0
    %v1125 = vmul.f32 %v1120, %v1124
    %v1126 = vmul.f32 %v1123, %v1124
    %v1127 = vsub.f32 %v1116, %v1125
    %v1128 = vsub.f32 %v1117, %v1126
    %v1129 = vmul.f32 %v1127, %v1127
    %v1130 = vmul.f32 %v1128, %v1128
    %v1131 = vsel %vm79, %v1129, 0.0
    %1132 = vadd.xlane.f32.xlu0 %v1131
    %v1133 = vpop.xlane.xlu0 %1132
    %v1134 = vsel %vm79, %v1130, 0.0
    %1135 = vadd.xlane.f32.xlu0 %v1134
    %v1136 = vpop.xlane.xlu0 %1135
    %v1137 = vmul.f32 %v1133, %v1124
    %v1138 = vmul.f32 %v1136, %v1124
    %v1139 = vadd.f32 %v1137, 1e-05
    %v1140 = vadd.f32 %v1138, 1e-05
    %v1141 = vrsqrt.pop %v1139
    %v1142 = vrsqrt.pop %v1140
    %v1143 = vmul.f32 %v1127, %v1141
    %v1144 = vmul.f32 %v1128, %v1142
    %v1145 = vlaneseq
    %v1146 = vshrl.u32 %v1145, 7
    %v1147 = vsub.s32 2, %v1146
    %v1148 = vrot.slane %v1115, %v1147
    %v1149 = vmul.f32 %v1143, %v1148
    %v1150 = vmul.f32 %v1144, %v1148
    %v1151 = vlaneseq
    %v1152 = vshrl.u32 %v1151, 7
    %v1153 = vsub.s32 3, %v1152
    %v1154 = vrot.slane %v1115, %v1153
    %v1155 = vadd.f32 %v1149, %v1154
    %v1156 = vadd.f32 %v1150, %v1154
    %v1157 = vpack.c.bf16 %v1156, %v1155
    %v1158 = vld [vmem:[%s4] sm:$0xf]
    %v1159 = vld [vmem:[%s4 + $0x4] sm:$0xf]
    %v1160 = vld [vmem:[%s4 + $0x8] sm:$0xf]
    %v1161 = vld [vmem:[%s4 + $0xc] sm:$0xf]
    %v1162 = vlaneseq
    %v1163 = vshrl.u32 %v1162, 7
    %v1164 = vsub.s32 0, %v1163
    %v1165 = vrot.slane %v1115, %v1164
    %v1170 = vunpack.c.l.b16 %v1158
    %v1171 = vunpack.c.l.b16 %v1159
    %v1172 = vunpack.c.l.b16 %v1160
    %v1173 = vunpack.c.l.b16 %v1161
    %v1174 = vpack.c.b16 %v1171, %v1170
    %v1175 = vpack.c.b16 %v1173, %v1172
    %v1179 = vsel %vm79, %v1157, 0
    %1181 = vmatprep.subr.bf16.mxu0 0
    %1182 = vmatpush1.bf16.msra.mxu0 0
    %1183 = vmatprep.subr.bf16.mxu0 0
    %1184 = vmatpush1.bf16.msra.mxu0 0
    %1185 = vmatprep.subr.bf16.mxu0 0
    %1186 = vmatpush1.bf16.msra.mxu0 0
    %1187 = vmatprep.subr.bf16.mxu0 0
    %1188 = vmatpush1.bf16.msra.mxu0 0
    %1189 = vmatprep.subr.bf16.mxu0 0
    %1190 = vmatpush1.bf16.msra.mxu0 0
    %1191 = vmatprep.subr.bf16.mxu0 0
    %1192 = vmatpush1.bf16.msra.mxu0 0
    %1193 = vmatprep.subr.bf16.mxu0 0
    %1194 = vmatpush1.bf16.msra.mxu0 %v1175
    %1195 = vmatprep.subr.bf16.mxu0 0
    %1196 = vmatpush1.bf16.msra.mxu0 %v1174
    %1197 = vmatprep.subr.bf16.mxu0 0
    %1198 = vmatpush2.bf16.msra.mxu0 0
    %1199 = vmatprep.subr.bf16.mxu0 0
    %1200 = vmatpush2.bf16.msra.mxu0 0
    %1201 = vmatprep.subr.bf16.mxu0 0
    %1202 = vmatpush2.bf16.msra.mxu0 0
    %1203 = vmatprep.subr.bf16.mxu0 0
    %1204 = vmatpush2.bf16.msra.mxu0 0
    %1205 = vmatprep.subr.bf16.mxu0 0
    %1206 = vmatpush2.bf16.msra.mxu0 0
    %1207 = vmatprep.subr.bf16.mxu0 0
    %1208 = vmatpush2.bf16.msra.mxu0 0
    %1209 = vmatprep.subr.bf16.mxu0 0
    %1210 = vmatpush2.bf16.msra.mxu0 0
    %1211 = vmatprep.subr.bf16.mxu0 0
    %1212 = vmatpush2.bf16.msra.mxu0 0
    %1213 = vmatprep.mubr.bf16.mxu0 0
    %1214 = vmatmul.mubr.bf16.gmra.mxu0 %v1179
    %v1215 = vpop.f32.mrf.mxu0
    %v1216 = vadd.f32 %v1165, %v1215
    %v1217 = vpop.f32.mrf.mxu0
    %v1218 = vpop.f32.mrf.mxu0
    %v1219 = vadd.f32 %v1165, %v1218
    %v1220 = vpop.f32.mrf.mxu0
    %1221 = vdwg.mxu0
    %v1222 = vmax.f32 %v1216, 0.0
    %v1223 = vmax.f32 %v1219, 0.0
    %v1224 = vpack.c.bf16 %v1223, %v1222
    %v1225 = vld [vmem:[%s5] sm:$0xf]
    %v1226 = vld [vmem:[%s5 + $0x4] sm:$0xf]
    %v1227 = vld [vmem:[%s5 + $0x8] sm:$0xf]
    %v1228 = vld [vmem:[%s5 + $0xc] sm:$0xf]
    %v1229 = vld [vmem:[%s5 + $0x10] sm:$0xf]
    %v1230 = vld [vmem:[%s5 + $0x14] sm:$0xf]
    %v1231 = vld [vmem:[%s5 + $0x18] sm:$0xf]
    %v1232 = vld [vmem:[%s5 + $0x1c] sm:$0xf]
    %v1233 = vlaneseq
    %v1234 = vshrl.u32 %v1233, 7
    %v1235 = vsub.s32 1, %v1234
    %v1236 = vrot.slane %v1115, %v1235
    %v1245 = vunpack.c.l.b16 %v1225
    %v1246 = vunpack.c.l.b16 %v1226
    %v1247 = vunpack.c.l.b16 %v1227
    %v1248 = vunpack.c.l.b16 %v1228
    %v1249 = vunpack.c.l.b16 %v1229
    %v1250 = vunpack.c.l.b16 %v1230
    %v1251 = vunpack.c.l.b16 %v1231
    %v1252 = vunpack.c.l.b16 %v1232
    %v1253 = vpack.c.b16 %v1246, %v1245
    %v1254 = vpack.c.b16 %v1248, %v1247
    %v1255 = vpack.c.b16 %v1250, %v1249
    %v1256 = vpack.c.b16 %v1252, %v1251
    %vm1261 = vcmask 523264
    %v1263 = vsel %vm1261, %v1224, 0
    %1265 = vmatprep.subr.bf16.mxu0 0
    %1266 = vmatpush1.bf16.msra.mxu0 0
    %1267 = vmatprep.subr.bf16.mxu0 0
    %1268 = vmatpush1.bf16.msra.mxu0 0
    %1269 = vmatprep.subr.bf16.mxu0 0
    %1270 = vmatpush1.bf16.msra.mxu0 0
    %1271 = vmatprep.subr.bf16.mxu0 0
    %1272 = vmatpush1.bf16.msra.mxu0 0
    %1273 = vmatprep.subr.bf16.mxu0 0
    %1274 = vmatpush1.bf16.msra.mxu0 %v1256
    %1275 = vmatprep.subr.bf16.mxu0 0
    %1276 = vmatpush1.bf16.msra.mxu0 %v1255
    %1277 = vmatprep.subr.bf16.mxu0 0
    %1278 = vmatpush1.bf16.msra.mxu0 %v1254
    %1279 = vmatprep.subr.bf16.mxu0 0
    %1280 = vmatpush1.bf16.msra.mxu0 %v1253
    %1281 = vmatprep.subr.bf16.mxu0 0
    %1282 = vmatpush2.bf16.msra.mxu0 0
    %1283 = vmatprep.subr.bf16.mxu0 0
    %1284 = vmatpush2.bf16.msra.mxu0 0
    %1285 = vmatprep.subr.bf16.mxu0 0
    %1286 = vmatpush2.bf16.msra.mxu0 0
    %1287 = vmatprep.subr.bf16.mxu0 0
    %1288 = vmatpush2.bf16.msra.mxu0 0
    %1289 = vmatprep.subr.bf16.mxu0 0
    %1290 = vmatpush2.bf16.msra.mxu0 0
    %1291 = vmatprep.subr.bf16.mxu0 0
    %1292 = vmatpush2.bf16.msra.mxu0 0
    %1293 = vmatprep.subr.bf16.mxu0 0
    %1294 = vmatpush2.bf16.msra.mxu0 0
    %1295 = vmatprep.subr.bf16.mxu0 0
    %1296 = vmatpush2.bf16.msra.mxu0 0
    %1297 = vmatprep.mubr.bf16.mxu0 0
    %1298 = vmatmul.mubr.bf16.gmra.mxu0 %v1263
    %v1299 = vpop.f32.mrf.mxu0
    %v1300 = vadd.f32 %v1236, %v1299
    %v1301 = vpop.f32.mrf.mxu0
    %v1302 = vpop.f32.mrf.mxu0
    %v1303 = vadd.f32 %v1236, %v1302
    %v1304 = vpop.f32.mrf.mxu0
    %1305 = vdwg.mxu0
    %v1306 = vadd.f32 %v1155, %v1300
    %v1307 = vadd.f32 %v1156, %v1303
    %v1308 = vsel %vm79, %v1306, 0.0
    %1309 = vadd.xlane.f32.xlu0 %v1308
    %v1310 = vpop.xlane.xlu0 %1309
    %v1311 = vsel %vm79, %v1307, 0.0
    %1312 = vadd.xlane.f32.xlu0 %v1311
    %v1313 = vpop.xlane.xlu0 %1312
    %v1314 = vmul.f32 %v1310, %v1124
    %v1315 = vmul.f32 %v1313, %v1124
    %v1316 = vsub.f32 %v1306, %v1314
    %v1317 = vsub.f32 %v1307, %v1315
    %v1318 = vmul.f32 %v1316, %v1316
    %v1319 = vmul.f32 %v1317, %v1317
    %v1320 = vsel %vm79, %v1318, 0.0
    %1321 = vadd.xlane.f32.xlu0 %v1320
    %v1322 = vpop.xlane.xlu0 %1321
    %v1323 = vsel %vm79, %v1319, 0.0
    %1324 = vadd.xlane.f32.xlu0 %v1323
    %v1325 = vpop.xlane.xlu0 %1324
    %v1326 = vmul.f32 %v1322, %v1124
    %v1327 = vmul.f32 %v1325, %v1124
    %v1328 = vadd.f32 %v1326, 1e-05
    %v1329 = vadd.f32 %v1327, 1e-05
    %v1330 = vrsqrt.pop %v1328
    %v1331 = vrsqrt.pop %v1329
    %v1332 = vmul.f32 %v1316, %v1330
    %v1333 = vmul.f32 %v1317, %v1331
    %v1334 = vlaneseq
    %v1335 = vshrl.u32 %v1334, 7
    %v1336 = vsub.s32 4, %v1335
    %v1337 = vrot.slane %v1115, %v1336
    %v1338 = vmul.f32 %v1332, %v1337
    %v1339 = vmul.f32 %v1333, %v1337
    %v1340 = vlaneseq
    %v1341 = vshrl.u32 %v1340, 7
    %v1342 = vsub.s32 5, %v1341
    %v1343 = vrot.slane %v1115, %v1342
    %v1344 = vadd.f32 %v1338, %v1343
    %v1345 = vadd.f32 %v1339, %v1343
    %v1346 = vpack.c.bf16 %v1345, %v1344
    %s1347 = scalar_lea.vmem %s2, 16
    %v1348 = vld [vmem:[%s1347] sm:$0xf]
    %v1349 = vld [vmem:[%s1347 + $0x4] sm:$0xf]
    %v1350 = vld [vmem:[%s1347 + $0x8] sm:$0xf]
    %v1351 = vld [vmem:[%s1347 + $0xc] sm:$0xf]
    %v1356 = vunpack.c.l.b16 %v1348
    %v1357 = vunpack.c.l.b16 %v1349
    %v1358 = vunpack.c.l.b16 %v1350
    %v1359 = vunpack.c.l.b16 %v1351
    %v1360 = vpack.c.b16 %v1357, %v1356
    %v1361 = vpack.c.b16 %v1359, %v1358
    %v1365 = vsel %vm79, %v1346, 0
    %1367 = vmatprep.subr.bf16.mxu0 0
    %1368 = vmatpush1.bf16.msra.mxu0 0
    %1369 = vmatprep.subr.bf16.mxu0 0
    %1370 = vmatpush1.bf16.msra.mxu0 0
    %1371 = vmatprep.subr.bf16.mxu0 0
    %1372 = vmatpush1.bf16.msra.mxu0 0
    %1373 = vmatprep.subr.bf16.mxu0 0
    %1374 = vmatpush1.bf16.msra.mxu0 0
    %1375 = vmatprep.subr.bf16.mxu0 0
    %1376 = vmatpush1.bf16.msra.mxu0 0
    %1377 = vmatprep.subr.bf16.mxu0 0
    %1378 = vmatpush1.bf16.msra.mxu0 0
    %1379 = vmatprep.subr.bf16.mxu0 0
    %1380 = vmatpush1.bf16.msra.mxu0 %v1361
    %1381 = vmatprep.subr.bf16.mxu0 0
    %1382 = vmatpush1.bf16.msra.mxu0 %v1360
    %1383 = vmatprep.subr.bf16.mxu0 0
    %1384 = vmatpush2.bf16.msra.mxu0 0
    %1385 = vmatprep.subr.bf16.mxu0 0
    %1386 = vmatpush2.bf16.msra.mxu0 0
    %1387 = vmatprep.subr.bf16.mxu0 0
    %1388 = vmatpush2.bf16.msra.mxu0 0
    %1389 = vmatprep.subr.bf16.mxu0 0
    %1390 = vmatpush2.bf16.msra.mxu0 0
    %1391 = vmatprep.subr.bf16.mxu0 0
    %1392 = vmatpush2.bf16.msra.mxu0 0
    %1393 = vmatprep.subr.bf16.mxu0 0
    %1394 = vmatpush2.bf16.msra.mxu0 0
    %1395 = vmatprep.subr.bf16.mxu0 0
    %1396 = vmatpush2.bf16.msra.mxu0 0
    %1397 = vmatprep.subr.bf16.mxu0 0
    %1398 = vmatpush2.bf16.msra.mxu0 0
    %1399 = vmatprep.mubr.bf16.mxu0 0
    %1400 = vmatmul.mubr.bf16.gmra.mxu0 %v1365
    %v1401 = vpop.f32.mrf.mxu0
    %v1402 = vadd.f32 0.0, %v1401
    %v1403 = vpop.f32.mrf.mxu0
    %v1404 = vpop.f32.mrf.mxu0
    %v1405 = vadd.f32 0.0, %v1404
    %v1406 = vpop.f32.mrf.mxu0
    %1407 = vdwg.mxu0
    %v1408 = vpack.c.bf16 %v1402, %v1402
    %v1409 = vpack.c.bf16 %v1405, %v1405
    %1411 = vrot.lane.b32.xlu0 %v1408, 96
    %v1412 = vpop.permute.xlu0 %1411
    %v1414 = vsel %vm129, %v1408, 0
    %v1417 = vsel %vm129, %v1412, 0
    %1419 = vmatprep.subr.bf16.mxu0 0
    %1420 = vmatpush1.bf16.xpose.msra.mxu0 0
    %1421 = vmatprep.subr.bf16.mxu0 0
    %1422 = vmatpush1.bf16.xpose.msra.mxu0 0
    %1423 = vmatprep.subr.bf16.mxu0 0
    %1424 = vmatpush1.bf16.xpose.msra.mxu0 0
    %1425 = vmatprep.subr.bf16.mxu0 0
    %1426 = vmatpush1.bf16.xpose.msra.mxu0 0
    %1427 = vmatprep.subr.bf16.mxu0 0
    %1428 = vmatpush1.bf16.xpose.msra.mxu0 0
    %1429 = vmatprep.subr.bf16.mxu0 0
    %1430 = vmatpush1.bf16.xpose.msra.mxu0 0
    %1431 = vmatprep.subr.bf16.mxu0 0
    %1432 = vmatpush1.bf16.xpose.msra.mxu0 0
    %1433 = vmatprep.subr.bf16.mxu0 0
    %1434 = vmatpush1.bf16.xpose.msra.mxu0 %v1417
    %1435 = vmatprep.subr.bf16.mxu0 0
    %1436 = vmatpush2.bf16.xpose.msra.mxu0 0
    %1437 = vmatprep.subr.bf16.mxu0 0
    %1438 = vmatpush2.bf16.xpose.msra.mxu0 0
    %1439 = vmatprep.subr.bf16.mxu0 0
    %1440 = vmatpush2.bf16.xpose.msra.mxu0 0
    %1441 = vmatprep.subr.bf16.mxu0 0
    %1442 = vmatpush2.bf16.xpose.msra.mxu0 0
    %1443 = vmatprep.subr.bf16.mxu0 0
    %1444 = vmatpush2.bf16.xpose.msra.mxu0 0
    %1445 = vmatprep.subr.bf16.mxu0 0
    %1446 = vmatpush2.bf16.xpose.msra.mxu0 0
    %1447 = vmatprep.subr.bf16.mxu0 0
    %1448 = vmatpush2.bf16.xpose.msra.mxu0 0
    %1449 = vmatprep.subr.bf16.mxu0 0
    %1450 = vmatpush2.bf16.xpose.msra.mxu0 0
    %1451 = vmatprep.mubr.bf16.mxu0 0
    %1452 = vmatmul.mubr.bf16.gmra.mxu0 %v1414
    %v1453 = vpop.f32.mrf.mxu0
    %v1454 = vadd.f32 0.0, %v1453
    %v1455 = vpop.f32.mrf.mxu0
    %v1456 = vpop.f32.mrf.mxu0
    %v1457 = vpop.f32.mrf.mxu0
    %1458 = vdwg.mxu0
    %1460 = vrot.lane.b32.xlu0 %v1409, 96
    %v1461 = vpop.permute.xlu0 %1460
    %v1463 = vsel %vm129, %v1409, 0
    %v1466 = vsel %vm129, %v1461, 0
    %1468 = vmatprep.subr.bf16.mxu0 0
    %1469 = vmatpush1.bf16.xpose.msra.mxu0 0
    %1470 = vmatprep.subr.bf16.mxu0 0
    %1471 = vmatpush1.bf16.xpose.msra.mxu0 0
    %1472 = vmatprep.subr.bf16.mxu0 0
    %1473 = vmatpush1.bf16.xpose.msra.mxu0 0
    %1474 = vmatprep.subr.bf16.mxu0 0
    %1475 = vmatpush1.bf16.xpose.msra.mxu0 0
    %1476 = vmatprep.subr.bf16.mxu0 0
    %1477 = vmatpush1.bf16.xpose.msra.mxu0 0
    %1478 = vmatprep.subr.bf16.mxu0 0
    %1479 = vmatpush1.bf16.xpose.msra.mxu0 0
    %1480 = vmatprep.subr.bf16.mxu0 0
    %1481 = vmatpush1.bf16.xpose.msra.mxu0 0
    %1482 = vmatprep.subr.bf16.mxu0 0
    %1483 = vmatpush1.bf16.xpose.msra.mxu0 %v1466
    %1484 = vmatprep.subr.bf16.mxu0 0
    %1485 = vmatpush2.bf16.xpose.msra.mxu0 0
    %1486 = vmatprep.subr.bf16.mxu0 0
    %1487 = vmatpush2.bf16.xpose.msra.mxu0 0
    %1488 = vmatprep.subr.bf16.mxu0 0
    %1489 = vmatpush2.bf16.xpose.msra.mxu0 0
    %1490 = vmatprep.subr.bf16.mxu0 0
    %1491 = vmatpush2.bf16.xpose.msra.mxu0 0
    %1492 = vmatprep.subr.bf16.mxu0 0
    %1493 = vmatpush2.bf16.xpose.msra.mxu0 0
    %1494 = vmatprep.subr.bf16.mxu0 0
    %1495 = vmatpush2.bf16.xpose.msra.mxu0 0
    %1496 = vmatprep.subr.bf16.mxu0 0
    %1497 = vmatpush2.bf16.xpose.msra.mxu0 0
    %1498 = vmatprep.subr.bf16.mxu0 0
    %1499 = vmatpush2.bf16.xpose.msra.mxu0 0
    %1500 = vmatprep.mubr.bf16.mxu0 0
    %1501 = vmatmul.mubr.bf16.gmra.mxu0 %v1463
    %v1502 = vpop.f32.mrf.mxu0
    %v1503 = vadd.f32 0.0, %v1502
    %v1504 = vpop.f32.mrf.mxu0
    %v1505 = vpop.f32.mrf.mxu0
    %v1506 = vpop.f32.mrf.mxu0
    %1507 = vdwg.mxu0
    %v1508 = vmul.f32 %v1454, 0.35355338
    %v1509 = vmul.f32 %v1503, 0.35355338
    %v1510 = vsel %vm58, %v1508, -1000000.0
    %v1511 = vsel %vm59, %v1509, -1000000.0
    %v1512 = vsel %vm129, %v1510, -inf
    %1513 = vmax.xlane.f32.xlu0 %v1512
    %v1514 = vpop.xlane.xlu0 %1513
    %v1515 = vsel %vm129, %v1511, -inf
    %1516 = vmax.xlane.f32.xlu0 %v1515
    %v1517 = vpop.xlane.xlu0 %1516
    %v1518 = vsub.f32 %v1510, %v1514
    %v1519 = vsub.f32 %v1511, %v1517
    %v1520 = vmul.f32 %v1518, 1.442695
    %v1521 = vpow.pop %v1520
    %v1522 = vmul.f32 %v1519, 1.442695
    %v1523 = vpow.pop %v1522
    %v1524 = vsel %vm129, %v1521, 0.0
    %1525 = vadd.xlane.f32.xlu0 %v1524
    %v1526 = vpop.xlane.xlu0 %1525
    %v1527 = vsel %vm129, %v1523, 0.0
    %1528 = vadd.xlane.f32.xlu0 %v1527
    %v1529 = vpop.xlane.xlu0 %1528
    %v1530 = vrcp.pop %v1526
    %v1531 = vmul.f32 %v1521, %v1530
    %v1532 = vrcp.pop %v1529
    %v1533 = vmul.f32 %v1523, %v1532
    %v1534 = vpack.c.bf16 %v1531, %v1531
    %v1535 = vpack.c.bf16 %v1533, %v1533
    %1536 = vrot.lane.b32.xlu0 %v1408, 64
    %v1537 = vpop.permute.xlu0 %1536
    %v1539 = vsel %vm129, %v1534, 0
    %v1542 = vsel %vm258, %v1537, 0
    %1544 = vmatprep.subr.bf16.mxu0 0
    %1545 = vmatpush1.bf16.msra.mxu0 0
    %1546 = vmatprep.subr.bf16.mxu0 0
    %1547 = vmatpush1.bf16.msra.mxu0 0
    %1548 = vmatprep.subr.bf16.mxu0 0
    %1549 = vmatpush1.bf16.msra.mxu0 0
    %1550 = vmatprep.subr.bf16.mxu0 0
    %1551 = vmatpush1.bf16.msra.mxu0 0
    %1552 = vmatprep.subr.bf16.mxu0 0
    %1553 = vmatpush1.bf16.msra.mxu0 0
    %1554 = vmatprep.subr.bf16.mxu0 0
    %1555 = vmatpush1.bf16.msra.mxu0 0
    %1556 = vmatprep.subr.bf16.mxu0 0
    %1557 = vmatpush1.bf16.msra.mxu0 0
    %1558 = vmatprep.subr.bf16.mxu0 0
    %1559 = vmatpush1.bf16.msra.mxu0 %v1542
    %1560 = vmatprep.subr.bf16.mxu0 0
    %1561 = vmatpush2.bf16.msra.mxu0 0
    %1562 = vmatprep.subr.bf16.mxu0 0
    %1563 = vmatpush2.bf16.msra.mxu0 0
    %1564 = vmatprep.subr.bf16.mxu0 0
    %1565 = vmatpush2.bf16.msra.mxu0 0
    %1566 = vmatprep.subr.bf16.mxu0 0
    %1567 = vmatpush2.bf16.msra.mxu0 0
    %1568 = vmatprep.subr.bf16.mxu0 0
    %1569 = vmatpush2.bf16.msra.mxu0 0
    %1570 = vmatprep.subr.bf16.mxu0 0
    %1571 = vmatpush2.bf16.msra.mxu0 0
    %1572 = vmatprep.subr.bf16.mxu0 0
    %1573 = vmatpush2.bf16.msra.mxu0 0
    %1574 = vmatprep.subr.bf16.mxu0 0
    %1575 = vmatpush2.bf16.msra.mxu0 0
    %1576 = vmatprep.mubr.bf16.mxu0 0
    %1577 = vmatmul.mubr.bf16.gmra.mxu0 %v1539
    %v1578 = vpop.f32.mrf.mxu0
    %v1579 = vadd.f32 0.0, %v1578
    %v1580 = vpop.f32.mrf.mxu0
    %v1581 = vpop.f32.mrf.mxu0
    %v1582 = vpop.f32.mrf.mxu0
    %1583 = vdwg.mxu0
    %1584 = vrot.lane.b32.xlu0 %v1409, 64
    %v1585 = vpop.permute.xlu0 %1584
    %v1587 = vsel %vm129, %v1535, 0
    %v1590 = vsel %vm258, %v1585, 0
    %1592 = vmatprep.subr.bf16.mxu0 0
    %1593 = vmatpush1.bf16.msra.mxu0 0
    %1594 = vmatprep.subr.bf16.mxu0 0
    %1595 = vmatpush1.bf16.msra.mxu0 0
    %1596 = vmatprep.subr.bf16.mxu0 0
    %1597 = vmatpush1.bf16.msra.mxu0 0
    %1598 = vmatprep.subr.bf16.mxu0 0
    %1599 = vmatpush1.bf16.msra.mxu0 0
    %1600 = vmatprep.subr.bf16.mxu0 0
    %1601 = vmatpush1.bf16.msra.mxu0 0
    %1602 = vmatprep.subr.bf16.mxu0 0
    %1603 = vmatpush1.bf16.msra.mxu0 0
    %1604 = vmatprep.subr.bf16.mxu0 0
    %1605 = vmatpush1.bf16.msra.mxu0 0
    %1606 = vmatprep.subr.bf16.mxu0 0
    %1607 = vmatpush1.bf16.msra.mxu0 %v1590
    %1608 = vmatprep.subr.bf16.mxu0 0
    %1609 = vmatpush2.bf16.msra.mxu0 0
    %1610 = vmatprep.subr.bf16.mxu0 0
    %1611 = vmatpush2.bf16.msra.mxu0 0
    %1612 = vmatprep.subr.bf16.mxu0 0
    %1613 = vmatpush2.bf16.msra.mxu0 0
    %1614 = vmatprep.subr.bf16.mxu0 0
    %1615 = vmatpush2.bf16.msra.mxu0 0
    %1616 = vmatprep.subr.bf16.mxu0 0
    %1617 = vmatpush2.bf16.msra.mxu0 0
    %1618 = vmatprep.subr.bf16.mxu0 0
    %1619 = vmatpush2.bf16.msra.mxu0 0
    %1620 = vmatprep.subr.bf16.mxu0 0
    %1621 = vmatpush2.bf16.msra.mxu0 0
    %1622 = vmatprep.subr.bf16.mxu0 0
    %1623 = vmatpush2.bf16.msra.mxu0 0
    %1624 = vmatprep.mubr.bf16.mxu0 0
    %1625 = vmatmul.mubr.bf16.gmra.mxu0 %v1587
    %v1626 = vpop.f32.mrf.mxu0
    %v1627 = vadd.f32 0.0, %v1626
    %v1628 = vpop.f32.mrf.mxu0
    %v1629 = vpop.f32.mrf.mxu0
    %v1630 = vpop.f32.mrf.mxu0
    %1631 = vdwg.mxu0
    %1632 = vrot.lane.b32.xlu0 %v1408, 120
    %v1633 = vpop.permute.xlu0 %1632
    %1634 = vrot.lane.b32.xlu0 %v1408, 88
    %v1635 = vpop.permute.xlu0 %1634
    %v1637 = vsel %vm129, %v1633, 0
    %v1640 = vsel %vm129, %v1635, 0
    %1642 = vmatprep.subr.bf16.mxu0 0
    %1643 = vmatpush1.bf16.xpose.msra.mxu0 0
    %1644 = vmatprep.subr.bf16.mxu0 0
    %1645 = vmatpush1.bf16.xpose.msra.mxu0 0
    %1646 = vmatprep.subr.bf16.mxu0 0
    %1647 = vmatpush1.bf16.xpose.msra.mxu0 0
    %1648 = vmatprep.subr.bf16.mxu0 0
    %1649 = vmatpush1.bf16.xpose.msra.mxu0 0
    %1650 = vmatprep.subr.bf16.mxu0 0
    %1651 = vmatpush1.bf16.xpose.msra.mxu0 0
    %1652 = vmatprep.subr.bf16.mxu0 0
    %1653 = vmatpush1.bf16.xpose.msra.mxu0 0
    %1654 = vmatprep.subr.bf16.mxu0 0
    %1655 = vmatpush1.bf16.xpose.msra.mxu0 0
    %1656 = vmatprep.subr.bf16.mxu0 0
    %1657 = vmatpush1.bf16.xpose.msra.mxu0 %v1640
    %1658 = vmatprep.subr.bf16.mxu0 0
    %1659 = vmatpush2.bf16.xpose.msra.mxu0 0
    %1660 = vmatprep.subr.bf16.mxu0 0
    %1661 = vmatpush2.bf16.xpose.msra.mxu0 0
    %1662 = vmatprep.subr.bf16.mxu0 0
    %1663 = vmatpush2.bf16.xpose.msra.mxu0 0
    %1664 = vmatprep.subr.bf16.mxu0 0
    %1665 = vmatpush2.bf16.xpose.msra.mxu0 0
    %1666 = vmatprep.subr.bf16.mxu0 0
    %1667 = vmatpush2.bf16.xpose.msra.mxu0 0
    %1668 = vmatprep.subr.bf16.mxu0 0
    %1669 = vmatpush2.bf16.xpose.msra.mxu0 0
    %1670 = vmatprep.subr.bf16.mxu0 0
    %1671 = vmatpush2.bf16.xpose.msra.mxu0 0
    %1672 = vmatprep.subr.bf16.mxu0 0
    %1673 = vmatpush2.bf16.xpose.msra.mxu0 0
    %1674 = vmatprep.mubr.bf16.mxu0 0
    %1675 = vmatmul.mubr.bf16.gmra.mxu0 %v1637
    %v1676 = vpop.f32.mrf.mxu0
    %v1677 = vadd.f32 0.0, %v1676
    %v1678 = vpop.f32.mrf.mxu0
    %v1679 = vpop.f32.mrf.mxu0
    %v1680 = vpop.f32.mrf.mxu0
    %1681 = vdwg.mxu0
    %1682 = vrot.lane.b32.xlu0 %v1409, 120
    %v1683 = vpop.permute.xlu0 %1682
    %1684 = vrot.lane.b32.xlu0 %v1409, 88
    %v1685 = vpop.permute.xlu0 %1684
    %v1687 = vsel %vm129, %v1683, 0
    %v1690 = vsel %vm129, %v1685, 0
    %1692 = vmatprep.subr.bf16.mxu0 0
    %1693 = vmatpush1.bf16.xpose.msra.mxu0 0
    %1694 = vmatprep.subr.bf16.mxu0 0
    %1695 = vmatpush1.bf16.xpose.msra.mxu0 0
    %1696 = vmatprep.subr.bf16.mxu0 0
    %1697 = vmatpush1.bf16.xpose.msra.mxu0 0
    %1698 = vmatprep.subr.bf16.mxu0 0
    %1699 = vmatpush1.bf16.xpose.msra.mxu0 0
    %1700 = vmatprep.subr.bf16.mxu0 0
    %1701 = vmatpush1.bf16.xpose.msra.mxu0 0
    %1702 = vmatprep.subr.bf16.mxu0 0
    %1703 = vmatpush1.bf16.xpose.msra.mxu0 0
    %1704 = vmatprep.subr.bf16.mxu0 0
    %1705 = vmatpush1.bf16.xpose.msra.mxu0 0
    %1706 = vmatprep.subr.bf16.mxu0 0
    %1707 = vmatpush1.bf16.xpose.msra.mxu0 %v1690
    %1708 = vmatprep.subr.bf16.mxu0 0
    %1709 = vmatpush2.bf16.xpose.msra.mxu0 0
    %1710 = vmatprep.subr.bf16.mxu0 0
    %1711 = vmatpush2.bf16.xpose.msra.mxu0 0
    %1712 = vmatprep.subr.bf16.mxu0 0
    %1713 = vmatpush2.bf16.xpose.msra.mxu0 0
    %1714 = vmatprep.subr.bf16.mxu0 0
    %1715 = vmatpush2.bf16.xpose.msra.mxu0 0
    %1716 = vmatprep.subr.bf16.mxu0 0
    %1717 = vmatpush2.bf16.xpose.msra.mxu0 0
    %1718 = vmatprep.subr.bf16.mxu0 0
    %1719 = vmatpush2.bf16.xpose.msra.mxu0 0
    %1720 = vmatprep.subr.bf16.mxu0 0
    %1721 = vmatpush2.bf16.xpose.msra.mxu0 0
    %1722 = vmatprep.subr.bf16.mxu0 0
    %1723 = vmatpush2.bf16.xpose.msra.mxu0 0
    %1724 = vmatprep.mubr.bf16.mxu0 0
    %1725 = vmatmul.mubr.bf16.gmra.mxu0 %v1687
    %v1726 = vpop.f32.mrf.mxu0
    %v1727 = vadd.f32 0.0, %v1726
    %v1728 = vpop.f32.mrf.mxu0
    %v1729 = vpop.f32.mrf.mxu0
    %v1730 = vpop.f32.mrf.mxu0
    %1731 = vdwg.mxu0
    %v1732 = vmul.f32 %v1677, 0.35355338
    %v1733 = vmul.f32 %v1727, 0.35355338
    %v1734 = vsel %vm58, %v1732, -1000000.0
    %v1735 = vsel %vm59, %v1733, -1000000.0
    %v1736 = vsel %vm129, %v1734, -inf
    %1737 = vmax.xlane.f32.xlu0 %v1736
    %v1738 = vpop.xlane.xlu0 %1737
    %v1739 = vsel %vm129, %v1735, -inf
    %1740 = vmax.xlane.f32.xlu0 %v1739
    %v1741 = vpop.xlane.xlu0 %1740
    %v1742 = vsub.f32 %v1734, %v1738
    %v1743 = vsub.f32 %v1735, %v1741
    %v1744 = vmul.f32 %v1742, 1.442695
    %v1745 = vpow.pop %v1744
    %v1746 = vmul.f32 %v1743, 1.442695
    %v1747 = vpow.pop %v1746
    %v1748 = vsel %vm129, %v1745, 0.0
    %1749 = vadd.xlane.f32.xlu0 %v1748
    %v1750 = vpop.xlane.xlu0 %1749
    %v1751 = vsel %vm129, %v1747, 0.0
    %1752 = vadd.xlane.f32.xlu0 %v1751
    %v1753 = vpop.xlane.xlu0 %1752
    %v1754 = vrcp.pop %v1750
    %v1755 = vmul.f32 %v1745, %v1754
    %v1756 = vrcp.pop %v1753
    %v1757 = vmul.f32 %v1747, %v1756
    %v1758 = vpack.c.bf16 %v1755, %v1755
    %v1759 = vpack.c.bf16 %v1757, %v1757
    %1760 = vrot.lane.b32.xlu0 %v1408, 56
    %v1761 = vpop.permute.xlu0 %1760
    %v1763 = vsel %vm129, %v1758, 0
    %v1766 = vsel %vm258, %v1761, 0
    %1768 = vmatprep.subr.bf16.mxu0 0
    %1769 = vmatpush1.bf16.msra.mxu0 0
    %1770 = vmatprep.subr.bf16.mxu0 0
    %1771 = vmatpush1.bf16.msra.mxu0 0
    %1772 = vmatprep.subr.bf16.mxu0 0
    %1773 = vmatpush1.bf16.msra.mxu0 0
    %1774 = vmatprep.subr.bf16.mxu0 0
    %1775 = vmatpush1.bf16.msra.mxu0 0
    %1776 = vmatprep.subr.bf16.mxu0 0
    %1777 = vmatpush1.bf16.msra.mxu0 0
    %1778 = vmatprep.subr.bf16.mxu0 0
    %1779 = vmatpush1.bf16.msra.mxu0 0
    %1780 = vmatprep.subr.bf16.mxu0 0
    %1781 = vmatpush1.bf16.msra.mxu0 0
    %1782 = vmatprep.subr.bf16.mxu0 0
    %1783 = vmatpush1.bf16.msra.mxu0 %v1766
    %1784 = vmatprep.subr.bf16.mxu0 0
    %1785 = vmatpush2.bf16.msra.mxu0 0
    %1786 = vmatprep.subr.bf16.mxu0 0
    %1787 = vmatpush2.bf16.msra.mxu0 0
    %1788 = vmatprep.subr.bf16.mxu0 0
    %1789 = vmatpush2.bf16.msra.mxu0 0
    %1790 = vmatprep.subr.bf16.mxu0 0
    %1791 = vmatpush2.bf16.msra.mxu0 0
    %1792 = vmatprep.subr.bf16.mxu0 0
    %1793 = vmatpush2.bf16.msra.mxu0 0
    %1794 = vmatprep.subr.bf16.mxu0 0
    %1795 = vmatpush2.bf16.msra.mxu0 0
    %1796 = vmatprep.subr.bf16.mxu0 0
    %1797 = vmatpush2.bf16.msra.mxu0 0
    %1798 = vmatprep.subr.bf16.mxu0 0
    %1799 = vmatpush2.bf16.msra.mxu0 0
    %1800 = vmatprep.mubr.bf16.mxu0 0
    %1801 = vmatmul.mubr.bf16.gmra.mxu0 %v1763
    %v1802 = vpop.f32.mrf.mxu0
    %v1803 = vadd.f32 0.0, %v1802
    %v1804 = vpop.f32.mrf.mxu0
    %v1805 = vpop.f32.mrf.mxu0
    %v1806 = vpop.f32.mrf.mxu0
    %1807 = vdwg.mxu0
    %1808 = vrot.lane.b32.xlu0 %v1409, 56
    %v1809 = vpop.permute.xlu0 %1808
    %v1811 = vsel %vm129, %v1759, 0
    %v1814 = vsel %vm258, %v1809, 0
    %1816 = vmatprep.subr.bf16.mxu0 0
    %1817 = vmatpush1.bf16.msra.mxu0 0
    %1818 = vmatprep.subr.bf16.mxu0 0
    %1819 = vmatpush1.bf16.msra.mxu0 0
    %1820 = vmatprep.subr.bf16.mxu0 0
    %1821 = vmatpush1.bf16.msra.mxu0 0
    %1822 = vmatprep.subr.bf16.mxu0 0
    %1823 = vmatpush1.bf16.msra.mxu0 0
    %1824 = vmatprep.subr.bf16.mxu0 0
    %1825 = vmatpush1.bf16.msra.mxu0 0
    %1826 = vmatprep.subr.bf16.mxu0 0
    %1827 = vmatpush1.bf16.msra.mxu0 0
    %1828 = vmatprep.subr.bf16.mxu0 0
    %1829 = vmatpush1.bf16.msra.mxu0 0
    %1830 = vmatprep.subr.bf16.mxu0 0
    %1831 = vmatpush1.bf16.msra.mxu0 %v1814
    %1832 = vmatprep.subr.bf16.mxu0 0
    %1833 = vmatpush2.bf16.msra.mxu0 0
    %1834 = vmatprep.subr.bf16.mxu0 0
    %1835 = vmatpush2.bf16.msra.mxu0 0
    %1836 = vmatprep.subr.bf16.mxu0 0
    %1837 = vmatpush2.bf16.msra.mxu0 0
    %1838 = vmatprep.subr.bf16.mxu0 0
    %1839 = vmatpush2.bf16.msra.mxu0 0
    %1840 = vmatprep.subr.bf16.mxu0 0
    %1841 = vmatpush2.bf16.msra.mxu0 0
    %1842 = vmatprep.subr.bf16.mxu0 0
    %1843 = vmatpush2.bf16.msra.mxu0 0
    %1844 = vmatprep.subr.bf16.mxu0 0
    %1845 = vmatpush2.bf16.msra.mxu0 0
    %1846 = vmatprep.subr.bf16.mxu0 0
    %1847 = vmatpush2.bf16.msra.mxu0 0
    %1848 = vmatprep.mubr.bf16.mxu0 0
    %1849 = vmatmul.mubr.bf16.gmra.mxu0 %v1811
    %v1850 = vpop.f32.mrf.mxu0
    %v1851 = vadd.f32 0.0, %v1850
    %v1852 = vpop.f32.mrf.mxu0
    %v1853 = vpop.f32.mrf.mxu0
    %v1854 = vpop.f32.mrf.mxu0
    %1855 = vdwg.mxu0
    %1856 = vrot.lane.b32.xlu0 %v1408, 112
    %v1857 = vpop.permute.xlu0 %1856
    %1858 = vrot.lane.b32.xlu0 %v1408, 80
    %v1859 = vpop.permute.xlu0 %1858
    %v1861 = vsel %vm129, %v1857, 0
    %v1864 = vsel %vm129, %v1859, 0
    %1866 = vmatprep.subr.bf16.mxu0 0
    %1867 = vmatpush1.bf16.xpose.msra.mxu0 0
    %1868 = vmatprep.subr.bf16.mxu0 0
    %1869 = vmatpush1.bf16.xpose.msra.mxu0 0
    %1870 = vmatprep.subr.bf16.mxu0 0
    %1871 = vmatpush1.bf16.xpose.msra.mxu0 0
    %1872 = vmatprep.subr.bf16.mxu0 0
    %1873 = vmatpush1.bf16.xpose.msra.mxu0 0
    %1874 = vmatprep.subr.bf16.mxu0 0
    %1875 = vmatpush1.bf16.xpose.msra.mxu0 0
    %1876 = vmatprep.subr.bf16.mxu0 0
    %1877 = vmatpush1.bf16.xpose.msra.mxu0 0
    %1878 = vmatprep.subr.bf16.mxu0 0
    %1879 = vmatpush1.bf16.xpose.msra.mxu0 0
    %1880 = vmatprep.subr.bf16.mxu0 0
    %1881 = vmatpush1.bf16.xpose.msra.mxu0 %v1864
    %1882 = vmatprep.subr.bf16.mxu0 0
    %1883 = vmatpush2.bf16.xpose.msra.mxu0 0
    %1884 = vmatprep.subr.bf16.mxu0 0
    %1885 = vmatpush2.bf16.xpose.msra.mxu0 0
    %1886 = vmatprep.subr.bf16.mxu0 0
    %1887 = vmatpush2.bf16.xpose.msra.mxu0 0
    %1888 = vmatprep.subr.bf16.mxu0 0
    %1889 = vmatpush2.bf16.xpose.msra.mxu0 0
    %1890 = vmatprep.subr.bf16.mxu0 0
    %1891 = vmatpush2.bf16.xpose.msra.mxu0 0
    %1892 = vmatprep.subr.bf16.mxu0 0
    %1893 = vmatpush2.bf16.xpose.msra.mxu0 0
    %1894 = vmatprep.subr.bf16.mxu0 0
    %1895 = vmatpush2.bf16.xpose.msra.mxu0 0
    %1896 = vmatprep.subr.bf16.mxu0 0
    %1897 = vmatpush2.bf16.xpose.msra.mxu0 0
    %1898 = vmatprep.mubr.bf16.mxu0 0
    %1899 = vmatmul.mubr.bf16.gmra.mxu0 %v1861
    %v1900 = vpop.f32.mrf.mxu0
    %v1901 = vadd.f32 0.0, %v1900
    %v1902 = vpop.f32.mrf.mxu0
    %v1903 = vpop.f32.mrf.mxu0
    %v1904 = vpop.f32.mrf.mxu0
    %1905 = vdwg.mxu0
    %1906 = vrot.lane.b32.xlu0 %v1409, 112
    %v1907 = vpop.permute.xlu0 %1906
    %1908 = vrot.lane.b32.xlu0 %v1409, 80
    %v1909 = vpop.permute.xlu0 %1908
    %v1911 = vsel %vm129, %v1907, 0
    %v1914 = vsel %vm129, %v1909, 0
    %1916 = vmatprep.subr.bf16.mxu0 0
    %1917 = vmatpush1.bf16.xpose.msra.mxu0 0
    %1918 = vmatprep.subr.bf16.mxu0 0
    %1919 = vmatpush1.bf16.xpose.msra.mxu0 0
    %1920 = vmatprep.subr.bf16.mxu0 0
    %1921 = vmatpush1.bf16.xpose.msra.mxu0 0
    %1922 = vmatprep.subr.bf16.mxu0 0
    %1923 = vmatpush1.bf16.xpose.msra.mxu0 0
    %1924 = vmatprep.subr.bf16.mxu0 0
    %1925 = vmatpush1.bf16.xpose.msra.mxu0 0
    %1926 = vmatprep.subr.bf16.mxu0 0
    %1927 = vmatpush1.bf16.xpose.msra.mxu0 0
    %1928 = vmatprep.subr.bf16.mxu0 0
    %1929 = vmatpush1.bf16.xpose.msra.mxu0 0
    %1930 = vmatprep.subr.bf16.mxu0 0
    %1931 = vmatpush1.bf16.xpose.msra.mxu0 %v1914
    %1932 = vmatprep.subr.bf16.mxu0 0
    %1933 = vmatpush2.bf16.xpose.msra.mxu0 0
    %1934 = vmatprep.subr.bf16.mxu0 0
    %1935 = vmatpush2.bf16.xpose.msra.mxu0 0
    %1936 = vmatprep.subr.bf16.mxu0 0
    %1937 = vmatpush2.bf16.xpose.msra.mxu0 0
    %1938 = vmatprep.subr.bf16.mxu0 0
    %1939 = vmatpush2.bf16.xpose.msra.mxu0 0
    %1940 = vmatprep.subr.bf16.mxu0 0
    %1941 = vmatpush2.bf16.xpose.msra.mxu0 0
    %1942 = vmatprep.subr.bf16.mxu0 0
    %1943 = vmatpush2.bf16.xpose.msra.mxu0 0
    %1944 = vmatprep.subr.bf16.mxu0 0
    %1945 = vmatpush2.bf16.xpose.msra.mxu0 0
    %1946 = vmatprep.subr.bf16.mxu0 0
    %1947 = vmatpush2.bf16.xpose.msra.mxu0 0
    %1948 = vmatprep.mubr.bf16.mxu0 0
    %1949 = vmatmul.mubr.bf16.gmra.mxu0 %v1911
    %v1950 = vpop.f32.mrf.mxu0
    %v1951 = vadd.f32 0.0, %v1950
    %v1952 = vpop.f32.mrf.mxu0
    %v1953 = vpop.f32.mrf.mxu0
    %v1954 = vpop.f32.mrf.mxu0
    %1955 = vdwg.mxu0
    %v1956 = vmul.f32 %v1901, 0.35355338
    %v1957 = vmul.f32 %v1951, 0.35355338
    %v1958 = vsel %vm58, %v1956, -1000000.0
    %v1959 = vsel %vm59, %v1957, -1000000.0
    %v1960 = vsel %vm129, %v1958, -inf
    %1961 = vmax.xlane.f32.xlu0 %v1960
    %v1962 = vpop.xlane.xlu0 %1961
    %v1963 = vsel %vm129, %v1959, -inf
    %1964 = vmax.xlane.f32.xlu0 %v1963
    %v1965 = vpop.xlane.xlu0 %1964
    %v1966 = vsub.f32 %v1958, %v1962
    %v1967 = vsub.f32 %v1959, %v1965
    %v1968 = vmul.f32 %v1966, 1.442695
    %v1969 = vpow.pop %v1968
    %v1970 = vmul.f32 %v1967, 1.442695
    %v1971 = vpow.pop %v1970
    %v1972 = vsel %vm129, %v1969, 0.0
    %1973 = vadd.xlane.f32.xlu0 %v1972
    %v1974 = vpop.xlane.xlu0 %1973
    %v1975 = vsel %vm129, %v1971, 0.0
    %1976 = vadd.xlane.f32.xlu0 %v1975
    %v1977 = vpop.xlane.xlu0 %1976
    %v1978 = vrcp.pop %v1974
    %v1979 = vmul.f32 %v1969, %v1978
    %v1980 = vrcp.pop %v1977
    %v1981 = vmul.f32 %v1971, %v1980
    %v1982 = vpack.c.bf16 %v1979, %v1979
    %v1983 = vpack.c.bf16 %v1981, %v1981
    %1984 = vrot.lane.b32.xlu0 %v1408, 48
    %v1985 = vpop.permute.xlu0 %1984
    %v1987 = vsel %vm129, %v1982, 0
    %v1990 = vsel %vm258, %v1985, 0
    %1992 = vmatprep.subr.bf16.mxu0 0
    %1993 = vmatpush1.bf16.msra.mxu0 0
    %1994 = vmatprep.subr.bf16.mxu0 0
    %1995 = vmatpush1.bf16.msra.mxu0 0
    %1996 = vmatprep.subr.bf16.mxu0 0
    %1997 = vmatpush1.bf16.msra.mxu0 0
    %1998 = vmatprep.subr.bf16.mxu0 0
    %1999 = vmatpush1.bf16.msra.mxu0 0
    %2000 = vmatprep.subr.bf16.mxu0 0
    %2001 = vmatpush1.bf16.msra.mxu0 0
    %2002 = vmatprep.subr.bf16.mxu0 0
    %2003 = vmatpush1.bf16.msra.mxu0 0
    %2004 = vmatprep.subr.bf16.mxu0 0
    %2005 = vmatpush1.bf16.msra.mxu0 0
    %2006 = vmatprep.subr.bf16.mxu0 0
    %2007 = vmatpush1.bf16.msra.mxu0 %v1990
    %2008 = vmatprep.subr.bf16.mxu0 0
    %2009 = vmatpush2.bf16.msra.mxu0 0
    %2010 = vmatprep.subr.bf16.mxu0 0
    %2011 = vmatpush2.bf16.msra.mxu0 0
    %2012 = vmatprep.subr.bf16.mxu0 0
    %2013 = vmatpush2.bf16.msra.mxu0 0
    %2014 = vmatprep.subr.bf16.mxu0 0
    %2015 = vmatpush2.bf16.msra.mxu0 0
    %2016 = vmatprep.subr.bf16.mxu0 0
    %2017 = vmatpush2.bf16.msra.mxu0 0
    %2018 = vmatprep.subr.bf16.mxu0 0
    %2019 = vmatpush2.bf16.msra.mxu0 0
    %2020 = vmatprep.subr.bf16.mxu0 0
    %2021 = vmatpush2.bf16.msra.mxu0 0
    %2022 = vmatprep.subr.bf16.mxu0 0
    %2023 = vmatpush2.bf16.msra.mxu0 0
    %2024 = vmatprep.mubr.bf16.mxu0 0
    %2025 = vmatmul.mubr.bf16.gmra.mxu0 %v1987
    %v2026 = vpop.f32.mrf.mxu0
    %v2027 = vadd.f32 0.0, %v2026
    %v2028 = vpop.f32.mrf.mxu0
    %v2029 = vpop.f32.mrf.mxu0
    %v2030 = vpop.f32.mrf.mxu0
    %2031 = vdwg.mxu0
    %2032 = vrot.lane.b32.xlu0 %v1409, 48
    %v2033 = vpop.permute.xlu0 %2032
    %v2035 = vsel %vm129, %v1983, 0
    %v2038 = vsel %vm258, %v2033, 0
    %2040 = vmatprep.subr.bf16.mxu0 0
    %2041 = vmatpush1.bf16.msra.mxu0 0
    %2042 = vmatprep.subr.bf16.mxu0 0
    %2043 = vmatpush1.bf16.msra.mxu0 0
    %2044 = vmatprep.subr.bf16.mxu0 0
    %2045 = vmatpush1.bf16.msra.mxu0 0
    %2046 = vmatprep.subr.bf16.mxu0 0
    %2047 = vmatpush1.bf16.msra.mxu0 0
    %2048 = vmatprep.subr.bf16.mxu0 0
    %2049 = vmatpush1.bf16.msra.mxu0 0
    %2050 = vmatprep.subr.bf16.mxu0 0
    %2051 = vmatpush1.bf16.msra.mxu0 0
    %2052 = vmatprep.subr.bf16.mxu0 0
    %2053 = vmatpush1.bf16.msra.mxu0 0
    %2054 = vmatprep.subr.bf16.mxu0 0
    %2055 = vmatpush1.bf16.msra.mxu0 %v2038
    %2056 = vmatprep.subr.bf16.mxu0 0
    %2057 = vmatpush2.bf16.msra.mxu0 0
    %2058 = vmatprep.subr.bf16.mxu0 0
    %2059 = vmatpush2.bf16.msra.mxu0 0
    %2060 = vmatprep.subr.bf16.mxu0 0
    %2061 = vmatpush2.bf16.msra.mxu0 0
    %2062 = vmatprep.subr.bf16.mxu0 0
    %2063 = vmatpush2.bf16.msra.mxu0 0
    %2064 = vmatprep.subr.bf16.mxu0 0
    %2065 = vmatpush2.bf16.msra.mxu0 0
    %2066 = vmatprep.subr.bf16.mxu0 0
    %2067 = vmatpush2.bf16.msra.mxu0 0
    %2068 = vmatprep.subr.bf16.mxu0 0
    %2069 = vmatpush2.bf16.msra.mxu0 0
    %2070 = vmatprep.subr.bf16.mxu0 0
    %2071 = vmatpush2.bf16.msra.mxu0 0
    %2072 = vmatprep.mubr.bf16.mxu0 0
    %2073 = vmatmul.mubr.bf16.gmra.mxu0 %v2035
    %v2074 = vpop.f32.mrf.mxu0
    %v2075 = vadd.f32 0.0, %v2074
    %v2076 = vpop.f32.mrf.mxu0
    %v2077 = vpop.f32.mrf.mxu0
    %v2078 = vpop.f32.mrf.mxu0
    %2079 = vdwg.mxu0
    %2080 = vrot.lane.b32.xlu0 %v1408, 104
    %v2081 = vpop.permute.xlu0 %2080
    %2082 = vrot.lane.b32.xlu0 %v1408, 72
    %v2083 = vpop.permute.xlu0 %2082
    %v2085 = vsel %vm129, %v2081, 0
    %v2088 = vsel %vm129, %v2083, 0
    %2090 = vmatprep.subr.bf16.mxu0 0
    %2091 = vmatpush1.bf16.xpose.msra.mxu0 0
    %2092 = vmatprep.subr.bf16.mxu0 0
    %2093 = vmatpush1.bf16.xpose.msra.mxu0 0
    %2094 = vmatprep.subr.bf16.mxu0 0
    %2095 = vmatpush1.bf16.xpose.msra.mxu0 0
    %2096 = vmatprep.subr.bf16.mxu0 0
    %2097 = vmatpush1.bf16.xpose.msra.mxu0 0
    %2098 = vmatprep.subr.bf16.mxu0 0
    %2099 = vmatpush1.bf16.xpose.msra.mxu0 0
    %2100 = vmatprep.subr.bf16.mxu0 0
    %2101 = vmatpush1.bf16.xpose.msra.mxu0 0
    %2102 = vmatprep.subr.bf16.mxu0 0
    %2103 = vmatpush1.bf16.xpose.msra.mxu0 0
    %2104 = vmatprep.subr.bf16.mxu0 0
    %2105 = vmatpush1.bf16.xpose.msra.mxu0 %v2088
    %2106 = vmatprep.subr.bf16.mxu0 0
    %2107 = vmatpush2.bf16.xpose.msra.mxu0 0
    %2108 = vmatprep.subr.bf16.mxu0 0
    %2109 = vmatpush2.bf16.xpose.msra.mxu0 0
    %2110 = vmatprep.subr.bf16.mxu0 0
    %2111 = vmatpush2.bf16.xpose.msra.mxu0 0
    %2112 = vmatprep.subr.bf16.mxu0 0
    %2113 = vmatpush2.bf16.xpose.msra.mxu0 0
    %2114 = vmatprep.subr.bf16.mxu0 0
    %2115 = vmatpush2.bf16.xpose.msra.mxu0 0
    %2116 = vmatprep.subr.bf16.mxu0 0
    %2117 = vmatpush2.bf16.xpose.msra.mxu0 0
    %2118 = vmatprep.subr.bf16.mxu0 0
    %2119 = vmatpush2.bf16.xpose.msra.mxu0 0
    %2120 = vmatprep.subr.bf16.mxu0 0
    %2121 = vmatpush2.bf16.xpose.msra.mxu0 0
    %2122 = vmatprep.mubr.bf16.mxu0 0
    %2123 = vmatmul.mubr.bf16.gmra.mxu0 %v2085
    %v2124 = vpop.f32.mrf.mxu0
    %v2125 = vadd.f32 0.0, %v2124
    %v2126 = vpop.f32.mrf.mxu0
    %v2127 = vpop.f32.mrf.mxu0
    %v2128 = vpop.f32.mrf.mxu0
    %2129 = vdwg.mxu0
    %2130 = vrot.lane.b32.xlu0 %v1409, 104
    %v2131 = vpop.permute.xlu0 %2130
    %2132 = vrot.lane.b32.xlu0 %v1409, 72
    %v2133 = vpop.permute.xlu0 %2132
    %v2135 = vsel %vm129, %v2131, 0
    %v2138 = vsel %vm129, %v2133, 0
    %2140 = vmatprep.subr.bf16.mxu0 0
    %2141 = vmatpush1.bf16.xpose.msra.mxu0 0
    %2142 = vmatprep.subr.bf16.mxu0 0
    %2143 = vmatpush1.bf16.xpose.msra.mxu0 0
    %2144 = vmatprep.subr.bf16.mxu0 0
    %2145 = vmatpush1.bf16.xpose.msra.mxu0 0
    %2146 = vmatprep.subr.bf16.mxu0 0
    %2147 = vmatpush1.bf16.xpose.msra.mxu0 0
    %2148 = vmatprep.subr.bf16.mxu0 0
    %2149 = vmatpush1.bf16.xpose.msra.mxu0 0
    %2150 = vmatprep.subr.bf16.mxu0 0
    %2151 = vmatpush1.bf16.xpose.msra.mxu0 0
    %2152 = vmatprep.subr.bf16.mxu0 0
    %2153 = vmatpush1.bf16.xpose.msra.mxu0 0
    %2154 = vmatprep.subr.bf16.mxu0 0
    %2155 = vmatpush1.bf16.xpose.msra.mxu0 %v2138
    %2156 = vmatprep.subr.bf16.mxu0 0
    %2157 = vmatpush2.bf16.xpose.msra.mxu0 0
    %2158 = vmatprep.subr.bf16.mxu0 0
    %2159 = vmatpush2.bf16.xpose.msra.mxu0 0
    %2160 = vmatprep.subr.bf16.mxu0 0
    %2161 = vmatpush2.bf16.xpose.msra.mxu0 0
    %2162 = vmatprep.subr.bf16.mxu0 0
    %2163 = vmatpush2.bf16.xpose.msra.mxu0 0
    %2164 = vmatprep.subr.bf16.mxu0 0
    %2165 = vmatpush2.bf16.xpose.msra.mxu0 0
    %2166 = vmatprep.subr.bf16.mxu0 0
    %2167 = vmatpush2.bf16.xpose.msra.mxu0 0
    %2168 = vmatprep.subr.bf16.mxu0 0
    %2169 = vmatpush2.bf16.xpose.msra.mxu0 0
    %2170 = vmatprep.subr.bf16.mxu0 0
    %2171 = vmatpush2.bf16.xpose.msra.mxu0 0
    %2172 = vmatprep.mubr.bf16.mxu0 0
    %2173 = vmatmul.mubr.bf16.gmra.mxu0 %v2135
    %v2174 = vpop.f32.mrf.mxu0
    %v2175 = vadd.f32 0.0, %v2174
    %v2176 = vpop.f32.mrf.mxu0
    %v2177 = vpop.f32.mrf.mxu0
    %v2178 = vpop.f32.mrf.mxu0
    %2179 = vdwg.mxu0
    %v2180 = vmul.f32 %v2125, 0.35355338
    %v2181 = vmul.f32 %v2175, 0.35355338
    %v2182 = vsel %vm58, %v2180, -1000000.0
    %v2183 = vsel %vm59, %v2181, -1000000.0
    %v2184 = vsel %vm129, %v2182, -inf
    %2185 = vmax.xlane.f32.xlu0 %v2184
    %v2186 = vpop.xlane.xlu0 %2185
    %v2187 = vsel %vm129, %v2183, -inf
    %2188 = vmax.xlane.f32.xlu0 %v2187
    %v2189 = vpop.xlane.xlu0 %2188
    %v2190 = vsub.f32 %v2182, %v2186
    %v2191 = vsub.f32 %v2183, %v2189
    %v2192 = vmul.f32 %v2190, 1.442695
    %v2193 = vpow.pop %v2192
    %v2194 = vmul.f32 %v2191, 1.442695
    %v2195 = vpow.pop %v2194
    %v2196 = vsel %vm129, %v2193, 0.0
    %2197 = vadd.xlane.f32.xlu0 %v2196
    %v2198 = vpop.xlane.xlu0 %2197
    %v2199 = vsel %vm129, %v2195, 0.0
    %2200 = vadd.xlane.f32.xlu0 %v2199
    %v2201 = vpop.xlane.xlu0 %2200
    %v2202 = vrcp.pop %v2198
    %v2203 = vmul.f32 %v2193, %v2202
    %v2204 = vrcp.pop %v2201
    %v2205 = vmul.f32 %v2195, %v2204
    %v2206 = vpack.c.bf16 %v2203, %v2203
    %v2207 = vpack.c.bf16 %v2205, %v2205
    %2208 = vrot.lane.b32.xlu0 %v1408, 40
    %v2209 = vpop.permute.xlu0 %2208
    %v2211 = vsel %vm129, %v2206, 0
    %v2214 = vsel %vm258, %v2209, 0
    %2216 = vmatprep.subr.bf16.mxu0 0
    %2217 = vmatpush1.bf16.msra.mxu0 0
    %2218 = vmatprep.subr.bf16.mxu0 0
    %2219 = vmatpush1.bf16.msra.mxu0 0
    %2220 = vmatprep.subr.bf16.mxu0 0
    %2221 = vmatpush1.bf16.msra.mxu0 0
    %2222 = vmatprep.subr.bf16.mxu0 0
    %2223 = vmatpush1.bf16.msra.mxu0 0
    %2224 = vmatprep.subr.bf16.mxu0 0
    %2225 = vmatpush1.bf16.msra.mxu0 0
    %2226 = vmatprep.subr.bf16.mxu0 0
    %2227 = vmatpush1.bf16.msra.mxu0 0
    %2228 = vmatprep.subr.bf16.mxu0 0
    %2229 = vmatpush1.bf16.msra.mxu0 0
    %2230 = vmatprep.subr.bf16.mxu0 0
    %2231 = vmatpush1.bf16.msra.mxu0 %v2214
    %2232 = vmatprep.subr.bf16.mxu0 0
    %2233 = vmatpush2.bf16.msra.mxu0 0
    %2234 = vmatprep.subr.bf16.mxu0 0
    %2235 = vmatpush2.bf16.msra.mxu0 0
    %2236 = vmatprep.subr.bf16.mxu0 0
    %2237 = vmatpush2.bf16.msra.mxu0 0
    %2238 = vmatprep.subr.bf16.mxu0 0
    %2239 = vmatpush2.bf16.msra.mxu0 0
    %2240 = vmatprep.subr.bf16.mxu0 0
    %2241 = vmatpush2.bf16.msra.mxu0 0
    %2242 = vmatprep.subr.bf16.mxu0 0
    %2243 = vmatpush2.bf16.msra.mxu0 0
    %2244 = vmatprep.subr.bf16.mxu0 0
    %2245 = vmatpush2.bf16.msra.mxu0 0
    %2246 = vmatprep.subr.bf16.mxu0 0
    %2247 = vmatpush2.bf16.msra.mxu0 0
    %2248 = vmatprep.mubr.bf16.mxu0 0
    %2249 = vmatmul.mubr.bf16.gmra.mxu0 %v2211
    %v2250 = vpop.f32.mrf.mxu0
    %v2251 = vadd.f32 0.0, %v2250
    %v2252 = vpop.f32.mrf.mxu0
    %v2253 = vpop.f32.mrf.mxu0
    %v2254 = vpop.f32.mrf.mxu0
    %2255 = vdwg.mxu0
    %2256 = vrot.lane.b32.xlu0 %v1409, 40
    %v2257 = vpop.permute.xlu0 %2256
    %v2259 = vsel %vm129, %v2207, 0
    %v2262 = vsel %vm258, %v2257, 0
    %2264 = vmatprep.subr.bf16.mxu0 0
    %2265 = vmatpush1.bf16.msra.mxu0 0
    %2266 = vmatprep.subr.bf16.mxu0 0
    %2267 = vmatpush1.bf16.msra.mxu0 0
    %2268 = vmatprep.subr.bf16.mxu0 0
    %2269 = vmatpush1.bf16.msra.mxu0 0
    %2270 = vmatprep.subr.bf16.mxu0 0
    %2271 = vmatpush1.bf16.msra.mxu0 0
    %2272 = vmatprep.subr.bf16.mxu0 0
    %2273 = vmatpush1.bf16.msra.mxu0 0
    %2274 = vmatprep.subr.bf16.mxu0 0
    %2275 = vmatpush1.bf16.msra.mxu0 0
    %2276 = vmatprep.subr.bf16.mxu0 0
    %2277 = vmatpush1.bf16.msra.mxu0 0
    %2278 = vmatprep.subr.bf16.mxu0 0
    %2279 = vmatpush1.bf16.msra.mxu0 %v2262
    %2280 = vmatprep.subr.bf16.mxu0 0
    %2281 = vmatpush2.bf16.msra.mxu0 0
    %2282 = vmatprep.subr.bf16.mxu0 0
    %2283 = vmatpush2.bf16.msra.mxu0 0
    %2284 = vmatprep.subr.bf16.mxu0 0
    %2285 = vmatpush2.bf16.msra.mxu0 0
    %2286 = vmatprep.subr.bf16.mxu0 0
    %2287 = vmatpush2.bf16.msra.mxu0 0
    %2288 = vmatprep.subr.bf16.mxu0 0
    %2289 = vmatpush2.bf16.msra.mxu0 0
    %2290 = vmatprep.subr.bf16.mxu0 0
    %2291 = vmatpush2.bf16.msra.mxu0 0
    %2292 = vmatprep.subr.bf16.mxu0 0
    %2293 = vmatpush2.bf16.msra.mxu0 0
    %2294 = vmatprep.subr.bf16.mxu0 0
    %2295 = vmatpush2.bf16.msra.mxu0 0
    %2296 = vmatprep.mubr.bf16.mxu0 0
    %2297 = vmatmul.mubr.bf16.gmra.mxu0 %v2259
    %v2298 = vpop.f32.mrf.mxu0
    %v2299 = vadd.f32 0.0, %v2298
    %v2300 = vpop.f32.mrf.mxu0
    %v2301 = vpop.f32.mrf.mxu0
    %v2302 = vpop.f32.mrf.mxu0
    %2303 = vdwg.mxu0
    %2306 = vrot.lane.b32.xlu0 %v1803, 8
    %v2307 = vpop.permute.xlu0 %2306
    %2308 = vrot.lane.b32.xlu0 %v1851, 8
    %v2309 = vpop.permute.xlu0 %2308
    %2314 = vrot.lane.b32.xlu0 %v2027, 16
    %v2315 = vpop.permute.xlu0 %2314
    %2316 = vrot.lane.b32.xlu0 %v2075, 16
    %v2317 = vpop.permute.xlu0 %2316
    %2322 = vrot.lane.b32.xlu0 %v2251, 24
    %v2323 = vpop.permute.xlu0 %2322
    %2324 = vrot.lane.b32.xlu0 %v2299, 24
    %v2325 = vpop.permute.xlu0 %2324
    %v2328 = vsel %vm129, %v1579, %v2307
    %v2329 = vsel %vm129, %v1627, %v2309
    %v2330 = vsel %vm1048, %v2328, %v2315
    %v2331 = vsel %vm1048, %v2329, %v2317
    %v2332 = vsel %vm1051, %v2330, %v2323
    %v2333 = vsel %vm1051, %v2331, %v2325
    %v2334 = vpack.c.bf16 %v2333, %v2332
    %s2335 = scalar_lea.vmem %s3, 16
    %v2336 = vld [vmem:[%s2335] sm:$0xf]
    %v2337 = vld [vmem:[%s2335 + $0x4] sm:$0xf]
    %v2338 = vld [vmem:[%s2335 + $0x8] sm:$0xf]
    %v2339 = vld [vmem:[%s2335 + $0xc] sm:$0xf]
    %v2344 = vunpack.c.l.b16 %v2336
    %v2345 = vunpack.c.l.b16 %v2337
    %v2346 = vunpack.c.l.b16 %v2338
    %v2347 = vunpack.c.l.b16 %v2339
    %v2348 = vpack.c.b16 %v2345, %v2344
    %v2349 = vpack.c.b16 %v2347, %v2346
    %v2353 = vsel %vm79, %v2334, 0
    %2355 = vmatprep.subr.bf16.mxu0 0
    %2356 = vmatpush1.bf16.msra.mxu0 0
    %2357 = vmatprep.subr.bf16.mxu0 0
    %2358 = vmatpush1.bf16.msra.mxu0 0
    %2359 = vmatprep.subr.bf16.mxu0 0
    %2360 = vmatpush1.bf16.msra.mxu0 0
    %2361 = vmatprep.subr.bf16.mxu0 0
    %2362 = vmatpush1.bf16.msra.mxu0 0
    %2363 = vmatprep.subr.bf16.mxu0 0
    %2364 = vmatpush1.bf16.msra.mxu0 0
    %2365 = vmatprep.subr.bf16.mxu0 0
    %2366 = vmatpush1.bf16.msra.mxu0 0
    %2367 = vmatprep.subr.bf16.mxu0 0
    %2368 = vmatpush1.bf16.msra.mxu0 %v2349
    %2369 = vmatprep.subr.bf16.mxu0 0
    %2370 = vmatpush1.bf16.msra.mxu0 %v2348
    %2371 = vmatprep.subr.bf16.mxu0 0
    %2372 = vmatpush2.bf16.msra.mxu0 0
    %2373 = vmatprep.subr.bf16.mxu0 0
    %2374 = vmatpush2.bf16.msra.mxu0 0
    %2375 = vmatprep.subr.bf16.mxu0 0
    %2376 = vmatpush2.bf16.msra.mxu0 0
    %2377 = vmatprep.subr.bf16.mxu0 0
    %2378 = vmatpush2.bf16.msra.mxu0 0
    %2379 = vmatprep.subr.bf16.mxu0 0
    %2380 = vmatpush2.bf16.msra.mxu0 0
    %2381 = vmatprep.subr.bf16.mxu0 0
    %2382 = vmatpush2.bf16.msra.mxu0 0
    %2383 = vmatprep.subr.bf16.mxu0 0
    %2384 = vmatpush2.bf16.msra.mxu0 0
    %2385 = vmatprep.subr.bf16.mxu0 0
    %2386 = vmatpush2.bf16.msra.mxu0 0
    %2387 = vmatprep.mubr.bf16.mxu0 0
    %2388 = vmatmul.mubr.bf16.gmra.mxu0 %v2353
    %v2389 = vpop.f32.mrf.mxu0
    %v2390 = vadd.f32 0.0, %v2389
    %v2391 = vpop.f32.mrf.mxu0
    %v2392 = vpop.f32.mrf.mxu0
    %v2393 = vadd.f32 0.0, %v2392
    %v2394 = vpop.f32.mrf.mxu0
    %2395 = vdwg.mxu0
    %s2396 = scalar_lea.vmem %s6, 8
    %v2397 = vld [vmem:[%s2396] sm:$0x3f]
    %v2398 = vadd.f32 %v1344, %v2390
    %v2399 = vadd.f32 %v1345, %v2393
    %v2400 = vsel %vm79, %v2398, 0.0
    %2401 = vadd.xlane.f32.xlu0 %v2400
    %v2402 = vpop.xlane.xlu0 %2401
    %v2403 = vsel %vm79, %v2399, 0.0
    %2404 = vadd.xlane.f32.xlu0 %v2403
    %v2405 = vpop.xlane.xlu0 %2404
    %v2406 = vmul.f32 %v2402, %v1124
    %v2407 = vmul.f32 %v2405, %v1124
    %v2408 = vsub.f32 %v2398, %v2406
    %v2409 = vsub.f32 %v2399, %v2407
    %v2410 = vmul.f32 %v2408, %v2408
    %v2411 = vmul.f32 %v2409, %v2409
    %v2412 = vsel %vm79, %v2410, 0.0
    %2413 = vadd.xlane.f32.xlu0 %v2412
    %v2414 = vpop.xlane.xlu0 %2413
    %v2415 = vsel %vm79, %v2411, 0.0
    %2416 = vadd.xlane.f32.xlu0 %v2415
    %v2417 = vpop.xlane.xlu0 %2416
    %v2418 = vmul.f32 %v2414, %v1124
    %v2419 = vmul.f32 %v2417, %v1124
    %v2420 = vadd.f32 %v2418, 1e-05
    %v2421 = vadd.f32 %v2419, 1e-05
    %v2422 = vrsqrt.pop %v2420
    %v2423 = vrsqrt.pop %v2421
    %v2424 = vmul.f32 %v2408, %v2422
    %v2425 = vmul.f32 %v2409, %v2423
    %v2426 = vlaneseq
    %v2427 = vshrl.u32 %v2426, 7
    %v2428 = vsub.s32 2, %v2427
    %v2429 = vrot.slane %v2397, %v2428
    %v2430 = vmul.f32 %v2424, %v2429
    %v2431 = vmul.f32 %v2425, %v2429
    %v2432 = vlaneseq
    %v2433 = vshrl.u32 %v2432, 7
    %v2434 = vsub.s32 3, %v2433
    %v2435 = vrot.slane %v2397, %v2434
    %v2436 = vadd.f32 %v2430, %v2435
    %v2437 = vadd.f32 %v2431, %v2435
    %v2438 = vpack.c.bf16 %v2437, %v2436
    %s2439 = scalar_lea.vmem %s4, 16
    %v2440 = vld [vmem:[%s2439] sm:$0xf]
    %v2441 = vld [vmem:[%s2439 + $0x4] sm:$0xf]
    %v2442 = vld [vmem:[%s2439 + $0x8] sm:$0xf]
    %v2443 = vld [vmem:[%s2439 + $0xc] sm:$0xf]
    %v2444 = vlaneseq
    %v2445 = vshrl.u32 %v2444, 7
    %v2446 = vsub.s32 0, %v2445
    %v2447 = vrot.slane %v2397, %v2446
    %v2452 = vunpack.c.l.b16 %v2440
    %v2453 = vunpack.c.l.b16 %v2441
    %v2454 = vunpack.c.l.b16 %v2442
    %v2455 = vunpack.c.l.b16 %v2443
    %v2456 = vpack.c.b16 %v2453, %v2452
    %v2457 = vpack.c.b16 %v2455, %v2454
    %v2461 = vsel %vm79, %v2438, 0
    %2463 = vmatprep.subr.bf16.mxu0 0
    %2464 = vmatpush1.bf16.msra.mxu0 0
    %2465 = vmatprep.subr.bf16.mxu0 0
    %2466 = vmatpush1.bf16.msra.mxu0 0
    %2467 = vmatprep.subr.bf16.mxu0 0
    %2468 = vmatpush1.bf16.msra.mxu0 0
    %2469 = vmatprep.subr.bf16.mxu0 0
    %2470 = vmatpush1.bf16.msra.mxu0 0
    %2471 = vmatprep.subr.bf16.mxu0 0
    %2472 = vmatpush1.bf16.msra.mxu0 0
    %2473 = vmatprep.subr.bf16.mxu0 0
    %2474 = vmatpush1.bf16.msra.mxu0 0
    %2475 = vmatprep.subr.bf16.mxu0 0
    %2476 = vmatpush1.bf16.msra.mxu0 %v2457
    %2477 = vmatprep.subr.bf16.mxu0 0
    %2478 = vmatpush1.bf16.msra.mxu0 %v2456
    %2479 = vmatprep.subr.bf16.mxu0 0
    %2480 = vmatpush2.bf16.msra.mxu0 0
    %2481 = vmatprep.subr.bf16.mxu0 0
    %2482 = vmatpush2.bf16.msra.mxu0 0
    %2483 = vmatprep.subr.bf16.mxu0 0
    %2484 = vmatpush2.bf16.msra.mxu0 0
    %2485 = vmatprep.subr.bf16.mxu0 0
    %2486 = vmatpush2.bf16.msra.mxu0 0
    %2487 = vmatprep.subr.bf16.mxu0 0
    %2488 = vmatpush2.bf16.msra.mxu0 0
    %2489 = vmatprep.subr.bf16.mxu0 0
    %2490 = vmatpush2.bf16.msra.mxu0 0
    %2491 = vmatprep.subr.bf16.mxu0 0
    %2492 = vmatpush2.bf16.msra.mxu0 0
    %2493 = vmatprep.subr.bf16.mxu0 0
    %2494 = vmatpush2.bf16.msra.mxu0 0
    %2495 = vmatprep.mubr.bf16.mxu0 0
    %2496 = vmatmul.mubr.bf16.gmra.mxu0 %v2461
    %v2497 = vpop.f32.mrf.mxu0
    %v2498 = vadd.f32 %v2447, %v2497
    %v2499 = vpop.f32.mrf.mxu0
    %v2500 = vpop.f32.mrf.mxu0
    %v2501 = vadd.f32 %v2447, %v2500
    %v2502 = vpop.f32.mrf.mxu0
    %2503 = vdwg.mxu0
    %v2504 = vmax.f32 %v2498, 0.0
    %v2505 = vmax.f32 %v2501, 0.0
    %v2506 = vpack.c.bf16 %v2505, %v2504
    %s2507 = scalar_lea.vmem %s5, 32
    %v2508 = vld [vmem:[%s2507] sm:$0xf]
    %v2509 = vld [vmem:[%s2507 + $0x4] sm:$0xf]
    %v2510 = vld [vmem:[%s2507 + $0x8] sm:$0xf]
    %v2511 = vld [vmem:[%s2507 + $0xc] sm:$0xf]
    %v2512 = vld [vmem:[%s2507 + $0x10] sm:$0xf]
    %v2513 = vld [vmem:[%s2507 + $0x14] sm:$0xf]
    %v2514 = vld [vmem:[%s2507 + $0x18] sm:$0xf]
    %v2515 = vld [vmem:[%s2507 + $0x1c] sm:$0xf]
    %v2516 = vlaneseq
    %v2517 = vshrl.u32 %v2516, 7
    %v2518 = vsub.s32 1, %v2517
    %v2519 = vrot.slane %v2397, %v2518
    %v2528 = vunpack.c.l.b16 %v2508
    %v2529 = vunpack.c.l.b16 %v2509
    %v2530 = vunpack.c.l.b16 %v2510
    %v2531 = vunpack.c.l.b16 %v2511
    %v2532 = vunpack.c.l.b16 %v2512
    %v2533 = vunpack.c.l.b16 %v2513
    %v2534 = vunpack.c.l.b16 %v2514
    %v2535 = vunpack.c.l.b16 %v2515
    %v2536 = vpack.c.b16 %v2529, %v2528
    %v2537 = vpack.c.b16 %v2531, %v2530
    %v2538 = vpack.c.b16 %v2533, %v2532
    %v2539 = vpack.c.b16 %v2535, %v2534
    %v2545 = vsel %vm1261, %v2506, 0
    %2547 = vmatprep.subr.bf16.mxu0 0
    %2548 = vmatpush1.bf16.msra.mxu0 0
    %2549 = vmatprep.subr.bf16.mxu0 0
    %2550 = vmatpush1.bf16.msra.mxu0 0
    %2551 = vmatprep.subr.bf16.mxu0 0
    %2552 = vmatpush1.bf16.msra.mxu0 0
    %2553 = vmatprep.subr.bf16.mxu0 0
    %2554 = vmatpush1.bf16.msra.mxu0 0
    %2555 = vmatprep.subr.bf16.mxu0 0
    %2556 = vmatpush1.bf16.msra.mxu0 %v2539
    %2557 = vmatprep.subr.bf16.mxu0 0
    %2558 = vmatpush1.bf16.msra.mxu0 %v2538
    %2559 = vmatprep.subr.bf16.mxu0 0
    %2560 = vmatpush1.bf16.msra.mxu0 %v2537
    %2561 = vmatprep.subr.bf16.mxu0 0
    %2562 = vmatpush1.bf16.msra.mxu0 %v2536
    %2563 = vmatprep.subr.bf16.mxu0 0
    %2564 = vmatpush2.bf16.msra.mxu0 0
    %2565 = vmatprep.subr.bf16.mxu0 0
    %2566 = vmatpush2.bf16.msra.mxu0 0
    %2567 = vmatprep.subr.bf16.mxu0 0
    %2568 = vmatpush2.bf16.msra.mxu0 0
    %2569 = vmatprep.subr.bf16.mxu0 0
    %2570 = vmatpush2.bf16.msra.mxu0 0
    %2571 = vmatprep.subr.bf16.mxu0 0
    %2572 = vmatpush2.bf16.msra.mxu0 0
    %2573 = vmatprep.subr.bf16.mxu0 0
    %2574 = vmatpush2.bf16.msra.mxu0 0
    %2575 = vmatprep.subr.bf16.mxu0 0
    %2576 = vmatpush2.bf16.msra.mxu0 0
    %2577 = vmatprep.subr.bf16.mxu0 0
    %2578 = vmatpush2.bf16.msra.mxu0 0
    %2579 = vmatprep.mubr.bf16.mxu0 0
    %2580 = vmatmul.mubr.bf16.gmra.mxu0 %v2545
    %v2581 = vpop.f32.mrf.mxu0
    %v2582 = vadd.f32 %v2519, %v2581
    %v2583 = vpop.f32.mrf.mxu0
    %v2584 = vpop.f32.mrf.mxu0
    %v2585 = vadd.f32 %v2519, %v2584
    %v2586 = vpop.f32.mrf.mxu0
    %2587 = vdwg.mxu0
    %v2588 = vadd.f32 %v2436, %v2582
    %v2589 = vadd.f32 %v2437, %v2585
    %v2590 = vsel %vm79, %v2588, 0.0
    %2591 = vadd.xlane.f32.xlu0 %v2590
    %v2592 = vpop.xlane.xlu0 %2591
    %v2593 = vsel %vm79, %v2589, 0.0
    %2594 = vadd.xlane.f32.xlu0 %v2593
    %v2595 = vpop.xlane.xlu0 %2594
    %v2596 = vmul.f32 %v2592, %v1124
    %v2597 = vmul.f32 %v2595, %v1124
    %v2598 = vsub.f32 %v2588, %v2596
    %v2599 = vsub.f32 %v2589, %v2597
    %v2600 = vmul.f32 %v2598, %v2598
    %v2601 = vmul.f32 %v2599, %v2599
    %v2602 = vsel %vm79, %v2600, 0.0
    %2603 = vadd.xlane.f32.xlu0 %v2602
    %v2604 = vpop.xlane.xlu0 %2603
    %v2605 = vsel %vm79, %v2601, 0.0
    %2606 = vadd.xlane.f32.xlu0 %v2605
    %v2607 = vpop.xlane.xlu0 %2606
    %v2608 = vmul.f32 %v2604, %v1124
    %v2609 = vmul.f32 %v2607, %v1124
    %v2610 = vadd.f32 %v2608, 1e-05
    %v2611 = vadd.f32 %v2609, 1e-05
    %v2612 = vrsqrt.pop %v2610
    %v2613 = vrsqrt.pop %v2611
    %v2614 = vmul.f32 %v2598, %v2612
    %v2615 = vmul.f32 %v2599, %v2613
    %v2616 = vlaneseq
    %v2617 = vshrl.u32 %v2616, 7
    %v2618 = vsub.s32 4, %v2617
    %v2619 = vrot.slane %v2397, %v2618
    %v2620 = vmul.f32 %v2614, %v2619
    %v2621 = vmul.f32 %v2615, %v2619
    %v2622 = vlaneseq
    %v2623 = vshrl.u32 %v2622, 7
    %v2624 = vsub.s32 5, %v2623
    %v2625 = vrot.slane %v2397, %v2624
    %v2626 = vadd.f32 %v2620, %v2625
    %v2627 = vadd.f32 %v2621, %v2625
    %2628 = vst.msk [vmem:[#allocation7] sm:$0xff] %vm79, %v2626
    %2629 = vst.msk [vmem:[#allocation7 + $0x8] sm:$0xff] %vm79, %v2627
    // Predicated region
    $region38: #{fused_encoder.1} parent=1 // pred_check
      _
    $region39: #{fused_encoder.1} parent=1 // pred_check_branch
      %2631 = sbr.rel (0) target = $region41
    $region40: #{fused_encoder.1} parent=1 // pred_region
      %s2633 = ssub.s32 256, 256
      %2634 = vsyncadd [#allocation4], %s2633
      %s2635 = sshll.u32 [#allocation7], 4
      %s2636 = int_to_ptr.vmem [resolvable:$true] %s2635
      %2641 = dma.vmem_to_hbm [thread:$0]  %s2636, 256, %s7, [#allocation4], 128, 128, 8
    $region41: #{fused_encoder.1} parent=1 // pred_fallthru
      _
    // Predicated region
    $region42: #{fused_encoder.1} parent=1 // pred_check
      _
    $region43: #{fused_encoder.1} parent=1 // pred_check_branch
      %2643 = sbr.rel (0) target = $region45
    $region44: #{fused_encoder.1} parent=1 // pred_region
      %2644 = dma.done [#allocation4], 256
    $region45: #{fused_encoder.1} parent=1 // pred_fallthru
      _
    %2645 = vsyncpa [#allocation3], 1
    %2646 = vsyncpa [#allocation6], 1
    %2647 = vsyncpa [#allocation4], 1

</llo_original>
